<compile_context>
chip_gen: v5e
topology: v5e:2x2
jax: 0.10.0
libtpu: 0.0.40
codegen_flags: <defaults>
</compile_context>

<pallas_src>
import functools

import jax
import jax.numpy as jnp
from jax import lax
from jax.experimental import pallas as pl
from jax.experimental.pallas import tpu as pltpu

LEAKY_SLOPE = 0.01   # PyTorch nn.LeakyReLU default negative_slope
BN_EPS = 1e-5        # PyTorch nn.BatchNorm1d default eps


def _round_up(v, m):
    return (v + m - 1) // m * m


# --------------------------------------------------------------------------- #
# Kernel: 5 fused matmuls + LeakyReLU + masked sigmoid, one tile of rows.
# --------------------------------------------------------------------------- #
def _mlp_kernel(x_ref,
                w1_ref, b1_ref, w2_ref, b2_ref, w3_ref, b3_ref, w4_ref, b4_ref,
                wt_ref, bt_ref,
                out_ref, *, out_dim):
    cdt = w1_ref.dtype                       # MXU operand dtype (bf16 or f32)
    h = x_ref[...].astype(cdt)               # single in-kernel cast (hidden under MXU)

    for w_ref, b_ref in ((w1_ref, b1_ref), (w2_ref, b2_ref),
                         (w3_ref, b3_ref), (w4_ref, b4_ref)):
        # Linear with folded BatchNorm/bias; f32 accumulation on the MXU.
        y = jnp.dot(h, w_ref[...], preferred_element_type=jnp.float32) + b_ref[...]
        # LeakyReLU (Dropout is identity in eval mode); max form drops the select.
        y = jnp.maximum(y, LEAKY_SLOPE * y)
        h = y.astype(cdt)

    # Fused tail: one (tb,32)@(32,out_dim+4) matmul.
    #   columns [:out_dim]  -> sigmoid(last_layer)            == y_pred
    #   columns [out_dim:]  -> last_layer_classification       == y_class
    tail = jnp.dot(h, wt_ref[...], preferred_element_type=jnp.float32) + bt_ref[...]
    col = lax.broadcasted_iota(jnp.int32, tail.shape, dimension=1)
    merged = jnp.where(col < out_dim, jax.nn.sigmoid(tail), tail)
    out_ref[...] = merged.astype(out_ref.dtype)


# --------------------------------------------------------------------------- #
# Parameter folding (BN + bias into W, tiny tail constant-fold).
# --------------------------------------------------------------------------- #
def _fold_params(params, compute_dtype):
    folded = []
    for li in range(1, 5):
        w, b = params[f"w{li}"], params[f"b{li}"]
        g, be = params[f"g{li}"], params[f"be{li}"]
        mean, var = params[f"mean{li}"], params[f"var{li}"]
        scale = g / jnp.sqrt(var + BN_EPS)                            # (1, fo) f32
        folded.append((w * scale).astype(compute_dtype))              # W'
        folded.append(((b - mean) * scale + be).astype(jnp.float32))  # b'
    wc, bc, wo, bo = params["wc"], params["bc"], params["wo"], params["bo"]
    wo_eff = wc @ wo                   # (32, out_dim) : last_layer ∘ classification
    bo_eff = bc @ wo + bo              # (1, out_dim)
    folded.append(jnp.concatenate([wo_eff, wc], axis=1).astype(compute_dtype))
    folded.append(jnp.concatenate([bo_eff, bc], axis=1).astype(jnp.float32))
    return folded


# --------------------------------------------------------------------------- #
# Hardware-aware helpers
# --------------------------------------------------------------------------- #
def _tpu_vmem_capacity_bytes():
    try:
        return int(pltpu.get_tpu_info().vmem_capacity_bytes)
    except Exception:
        return 64 << 20     # conservative fallback: v7x per-core VMEM


def _num_tensorcores_per_chip():
    try:
        kind = jax.devices()[0].device_kind.lower()
        if "v7" in kind:
            return 2
    except Exception:
        pass
    return 1                # v5e / v6e: single TensorCore per chip


def _vmem_estimate(tb, d, out_cols, x_itemsize, cdt_itemsize, param_bytes):
    """Live-set estimate (scales with tb and the chosen dtypes)."""
    x_stream = 2 * tb * d * x_itemsize                     # double-buffered x tile
    out_stream = 2 * tb * out_cols * 4                     # double-buffered f32 out
    act = (tb * d * cdt_itemsize                           # in-kernel cast of x
           + tb * 256 * (4 + cdt_itemsize)                 # layer-1 f32 result + recast
           + tb * (128 + 64 + 32) * (4 + cdt_itemsize)     # layers 2-4
           + tb * 128 * 4)                                 # tail / iota / temporaries
    margin = max(4 << 20, tb * 1024)
    return x_stream + out_stream + act + param_bytes + margin


# --------------------------------------------------------------------------- #
# Wrapper
# --------------------------------------------------------------------------- #
def mlp_readout_lddt_class(x, params, *, batch_tile=1024,
                           compute_dtype=jnp.bfloat16,
                           param_buffer_count=1):
    """Runs the full readout MLP in a single fused Pallas kernel.

    x:      [N, input_dim]  (f32 or bf16; streamed as-is, cast once in-kernel)
    params: dict of weights (see init_params)
    returns (y_pred [N, output_dim], y_class [N, 4])
    """
    n, d = x.shape
    out_dim = params["wo"].shape[1]
    out_cols = out_dim + 4

    folded = _fold_params(params, compute_dtype)
    param_bufs = 1 if param_buffer_count == 1 else 2
    param_bytes = param_bufs * sum(
        int(p.size) * jnp.dtype(p.dtype).itemsize for p in folded)

    x_itemsize = jnp.dtype(x.dtype).itemsize
    cdt_itemsize = jnp.dtype(compute_dtype).itemsize

    vmem_cap = _tpu_vmem_capacity_bytes()
    budget = (vmem_cap * 3) // 4

    # ---- batch tile --------------------------------------------------------
    # Multiples of 16 (bf16 sublane packing); ragged N is handled by Pallas'
    # edge-block masking, so no wrapper-side pad / cast over x.
    tb = min(_round_up(batch_tile, 16), _round_up(n, 16))
    # Only split a small batch into >=2 grid steps when the chip actually has
    # 2 TensorCores (v7x) to shard the "parallel" axis across.
    if _num_tensorcores_per_chip() >= 2 and n >= 32 and pl.cdiv(n, tb) < 2:
        tb = _round_up(pl.cdiv(n, 2), 16)
    # Cap tb against this generation's VMEM capacity (v7x: 64 MiB per core).
    # TODO(synk): for very large input_dim, add a second ("arbitrary") grid
    # axis that K-tiles layer 1 instead of shrinking tb further.
    while tb > 16 and _vmem_estimate(tb, d, out_cols, x_itemsize,
                                     cdt_itemsize, param_bytes) > budget:
        tb = max(16, _round_up(tb // 2, 16))

    grid = (pl.cdiv(n, tb),)
    est = _vmem_estimate(tb, d, out_cols, x_itemsize, cdt_itemsize, param_bytes)
    vmem_limit = int(min((vmem_cap * 9) // 10, max(est, 32 << 20)))

    # ---- specs --------------------------------------------------------------
    x_spec = pl.BlockSpec((tb, d), lambda i: (i, 0))
    out_spec = pl.BlockSpec((tb, out_cols), lambda i: (i, 0))
    out_shape = jax.ShapeDtypeStruct((n, out_cols), jnp.float32)

    def const_spec(arr, buffers):
        nd = arr.ndim
        idx = lambda i, _nd=nd: (0,) * _nd
        if buffers == 1:
            try:
                # Constant index_map => double-buffering buys nothing; halve
                # the resident parameter VMEM (matters inside v7x's 64 MiB).
                return pl.BlockSpec(arr.shape, idx, pipeline_mode=pl.Buffered(1))
            except TypeError:
                pass
        return pl.BlockSpec(arr.shape, idx)

    def run(buffers):
        return pl.pallas_call(
            functools.partial(_mlp_kernel, out_dim=out_dim),
            grid=grid,
            in_specs=[x_spec] + [const_spec(p, buffers) for p in folded],
            out_specs=out_spec,
            out_shape=out_shape,
            compiler_params=pltpu.CompilerParams(
                dimension_semantics=("parallel",),
                vmem_limit_bytes=vmem_limit,
            ),
        )(x, *folded)

    if param_bufs == 1:
        try:
            merged = run(1)
        except Exception:
            merged = run(2)          # runtime without single-buffer support
    else:
        merged = run(2)

    y_pred = merged[:, :out_dim]
    y_class = merged[:, out_dim:]
    return y_pred, y_class


# --------------------------------------------------------------------------- #
# Synthetic parameters (PyTorch-style uniform fan-in init; BN in eval mode).
# --------------------------------------------------------------------------- #
def init_params(key, input_dim, output_dim):
    dims = [(input_dim, 256), (256, 128), (128, 64), (64, 32)]
    params = {}
    keys = jax.random.split(key, 12)
    k_i = 0

    def linear(kw, kb, fan_in, fan_out):
        bound = 1.0 / jnp.sqrt(jnp.float32(fan_in))
        w = jax.random.uniform(kw, (fan_in, fan_out), jnp.float32, -bound, bound)
        b = jax.random.uniform(kb, (1, fan_out), jnp.float32, -bound, bound)
        return w, b

    for li, (fi, fo) in enumerate(dims, start=1):
        w, b = linear(keys[k_i], keys[k_i + 1], fi, fo); k_i += 2
        params[f"w{li}"], params[f"b{li}"] = w, b
        params[f"g{li}"] = jnp.ones((1, fo), jnp.float32)       # BN gamma
        params[f"be{li}"] = jnp.zeros((1, fo), jnp.float32)     # BN beta
        params[f"mean{li}"] = jnp.zeros((1, fo), jnp.float32)   # BN running_mean
        params[f"var{li}"] = jnp.ones((1, fo), jnp.float32)     # BN running_var
    wc, bc = linear(keys[k_i], keys[k_i + 1], 32, 4); k_i += 2
    wo, bo = linear(keys[k_i], keys[k_i + 1], 4, output_dim); k_i += 2
    params.update({"wc": wc, "bc": bc, "wo": wo, "bo": bo})
    return params


def _reference(x, p):
    """Pure-JAX reference (unfolded BN math) for the correctness check."""
    h = x
    for li in range(1, 5):
        h = h @ p[f"w{li}"] + p[f"b{li}"]
        h = (h - p[f"mean{li}"]) / jnp.sqrt(p[f"var{li}"] + BN_EPS) \
            * p[f"g{li}"] + p[f"be{li}"]
        h = jnp.where(h > 0, h, LEAKY_SLOPE * h)
    y_class = h @ p["wc"] + p["bc"]
    y_pred = jax.nn.sigmoid(y_class @ p["wo"] + p["bo"])
    return y_pred, y_class


if __name__ == "__main__":
    key = jax.random.PRNGKey(0)
    k_param, k_x = jax.random.split(key)

    input_dim, output_dim = 32, 2
    batch = 200  # not a tile multiple -> exercises Pallas edge-block masking

    params = init_params(k_param, input_dim, output_dim)
    x = jax.random.normal(k_x, (batch, input_dim), jnp.float32)

    ref_pred, ref_class = _reference(x, params)

    # float32 path: near-exact vs reference.
    yp32, yc32 = mlp_readout_lddt_class(x, params, compute_dtype=jnp.float32)
    jax.block_until_ready((yp32, yc32))
    assert yp32.shape == (batch, output_dim) and yc32.shape == (batch, 4)
    assert jnp.allclose(yp32, ref_pred, atol=1e-4, rtol=1e-4)
    assert jnp.allclose(yc32, ref_class, atol=1e-4, rtol=1e-4)

    # bfloat16 path (default, fast): f32 MXU accumulation, looser tolerance.
    ypbf, ycbf = mlp_readout_lddt_class(x, params)
    jax.block_until_ready((ypbf, ycbf))
    assert jnp.allclose(ypbf, ref_pred, atol=5e-2, rtol=5e-2)
    assert jnp.allclose(ycbf, ref_class, atol=5e-2, rtol=5e-2)

    print("KERNEL_OK")
</pallas_src>

<mosaic_0001>
module attributes {stable_mosaic.version = 11 : i64} {
  func.func @_mlp_kernel(%arg0: i32, %arg1: memref<208x32xf32, #tpu.memory_space<vmem>>, %arg2: memref<32x256xf32, #tpu.memory_space<vmem>>, %arg3: memref<1x256xf32, #tpu.memory_space<vmem>>, %arg4: memref<256x128xf32, #tpu.memory_space<vmem>>, %arg5: memref<1x128xf32, #tpu.memory_space<vmem>>, %arg6: memref<128x64xf32, #tpu.memory_space<vmem>>, %arg7: memref<1x64xf32, #tpu.memory_space<vmem>>, %arg8: memref<64x32xf32, #tpu.memory_space<vmem>>, %arg9: memref<1x32xf32, #tpu.memory_space<vmem>>, %arg10: memref<32x6xf32, #tpu.memory_space<vmem>>, %arg11: memref<1x6xf32, #tpu.memory_space<vmem>>, %arg12: memref<208x6xf32, #tpu.memory_space<vmem>>) attributes {dimension_semantics = [#tpu.dimension_semantics<parallel>], iteration_bounds = array<i64: 1>, scalar_prefetch = 0 : i64, scratch_operands = 0 : i64, tpu.core_type = #tpu.core_type<tc>, window_params = [{transform_indices = @transform_0, window_bounds = array<i64: 208, 32>}, {pipeline_mode = #tpu.pipeline_mode<synchronous>, transform_indices = @transform_1, window_bounds = array<i64: 32, 256>}, {pipeline_mode = #tpu.pipeline_mode<synchronous>, transform_indices = @transform_2, window_bounds = array<i64: 1, 256>}, {pipeline_mode = #tpu.pipeline_mode<synchronous>, transform_indices = @transform_3, window_bounds = array<i64: 256, 128>}, {pipeline_mode = #tpu.pipeline_mode<synchronous>, transform_indices = @transform_4, window_bounds = array<i64: 1, 128>}, {pipeline_mode = #tpu.pipeline_mode<synchronous>, transform_indices = @transform_5, window_bounds = array<i64: 128, 64>}, {pipeline_mode = #tpu.pipeline_mode<synchronous>, transform_indices = @transform_6, window_bounds = array<i64: 1, 64>}, {pipeline_mode = #tpu.pipeline_mode<synchronous>, transform_indices = @transform_7, window_bounds = array<i64: 64, 32>}, {pipeline_mode = #tpu.pipeline_mode<synchronous>, transform_indices = @transform_8, window_bounds = array<i64: 1, 32>}, {pipeline_mode = #tpu.pipeline_mode<synchronous>, transform_indices = @transform_9, window_bounds = array<i64: 32, 6>}, {pipeline_mode = #tpu.pipeline_mode<synchronous>, transform_indices = @transform_10, window_bounds = array<i64: 1, 6>}, {transform_indices = @transform_11, window_bounds = array<i64: 208, 6>}]} {
    %c0 = arith.constant 0 : index
    %c0_0 = arith.constant 0 : index
    %0 = vector.load %arg1[%c0, %c0_0] : memref<208x32xf32, #tpu.memory_space<vmem>>, vector<208x32xf32>
    %c0_1 = arith.constant 0 : index
    %c0_2 = arith.constant 0 : index
    %1 = vector.load %arg2[%c0_1, %c0_2] : memref<32x256xf32, #tpu.memory_space<vmem>>, vector<32x256xf32>
    %cst = arith.constant dense<0.000000e+00> : vector<208x256xf32>
    %2 = tpu.matmul %0, %1, %cst {dimension_numbers = #tpu.dot_dimension_numbers<[1], [0], [0], [1], [0, 0, 1, 1], [], []>} : vector<208x32xf32>, vector<32x256xf32>, vector<208x256xf32> -> vector<208x256xf32>
    %c0_3 = arith.constant 0 : index
    %c0_4 = arith.constant 0 : index
    %3 = vector.load %arg3[%c0_3, %c0_4] : memref<1x256xf32, #tpu.memory_space<vmem>>, vector<1x256xf32>
    %4 = vector.broadcast %3 : vector<1x256xf32> to vector<208x256xf32>
    %5 = arith.addf %2, %4 : vector<208x256xf32>
    %cst_5 = arith.constant 0.00999999977 : f32
    %6 = vector.broadcast %cst_5 : f32 to vector<208x256xf32>
    %7 = arith.mulf %6, %5 : vector<208x256xf32>
    %8 = arith.maximumf %5, %7 : vector<208x256xf32>
    %c0_6 = arith.constant 0 : index
    %c0_7 = arith.constant 0 : index
    %9 = vector.load %arg4[%c0_6, %c0_7] : memref<256x128xf32, #tpu.memory_space<vmem>>, vector<256x128xf32>
    %cst_8 = arith.constant dense<0.000000e+00> : vector<208x128xf32>
    %10 = tpu.matmul %8, %9, %cst_8 {dimension_numbers = #tpu.dot_dimension_numbers<[1], [0], [0], [1], [0, 0, 1, 1], [], []>} : vector<208x256xf32>, vector<256x128xf32>, vector<208x128xf32> -> vector<208x128xf32>
    %c0_9 = arith.constant 0 : index
    %c0_10 = arith.constant 0 : index
    %11 = vector.load %arg5[%c0_9, %c0_10] : memref<1x128xf32, #tpu.memory_space<vmem>>, vector<1x128xf32>
    %12 = vector.broadcast %11 : vector<1x128xf32> to vector<208x128xf32>
    %13 = arith.addf %10, %12 : vector<208x128xf32>
    %cst_11 = arith.constant 0.00999999977 : f32
    %14 = vector.broadcast %cst_11 : f32 to vector<208x128xf32>
    %15 = arith.mulf %14, %13 : vector<208x128xf32>
    %16 = arith.maximumf %13, %15 : vector<208x128xf32>
    %c0_12 = arith.constant 0 : index
    %c0_13 = arith.constant 0 : index
    %17 = vector.load %arg6[%c0_12, %c0_13] : memref<128x64xf32, #tpu.memory_space<vmem>>, vector<128x64xf32>
    %cst_14 = arith.constant dense<0.000000e+00> : vector<208x64xf32>
    %18 = tpu.matmul %16, %17, %cst_14 {dimension_numbers = #tpu.dot_dimension_numbers<[1], [0], [0], [1], [0, 0, 1, 1], [], []>} : vector<208x128xf32>, vector<128x64xf32>, vector<208x64xf32> -> vector<208x64xf32>
    %c0_15 = arith.constant 0 : index
    %c0_16 = arith.constant 0 : index
    %19 = vector.load %arg7[%c0_15, %c0_16] : memref<1x64xf32, #tpu.memory_space<vmem>>, vector<1x64xf32>
    %20 = vector.broadcast %19 : vector<1x64xf32> to vector<208x64xf32>
    %21 = arith.addf %18, %20 : vector<208x64xf32>
    %cst_17 = arith.constant 0.00999999977 : f32
    %22 = vector.broadcast %cst_17 : f32 to vector<208x64xf32>
    %23 = arith.mulf %22, %21 : vector<208x64xf32>
    %24 = arith.maximumf %21, %23 : vector<208x64xf32>
    %c0_18 = arith.constant 0 : index
    %c0_19 = arith.constant 0 : index
    %25 = vector.load %arg8[%c0_18, %c0_19] : memref<64x32xf32, #tpu.memory_space<vmem>>, vector<64x32xf32>
    %cst_20 = arith.constant dense<0.000000e+00> : vector<208x32xf32>
    %26 = tpu.matmul %24, %25, %cst_20 {dimension_numbers = #tpu.dot_dimension_numbers<[1], [0], [0], [1], [0, 0, 1, 1], [], []>} : vector<208x64xf32>, vector<64x32xf32>, vector<208x32xf32> -> vector<208x32xf32>
    %c0_21 = arith.constant 0 : index
    %c0_22 = arith.constant 0 : index
    %27 = vector.load %arg9[%c0_21, %c0_22] : memref<1x32xf32, #tpu.memory_space<vmem>>, vector<1x32xf32>
    %28 = vector.broadcast %27 : vector<1x32xf32> to vector<208x32xf32>
    %29 = arith.addf %26, %28 : vector<208x32xf32>
    %cst_23 = arith.constant 0.00999999977 : f32
    %30 = vector.broadcast %cst_23 : f32 to vector<208x32xf32>
    %31 = arith.mulf %30, %29 : vector<208x32xf32>
    %32 = arith.maximumf %29, %31 : vector<208x32xf32>
    %c0_24 = arith.constant 0 : index
    %c0_25 = arith.constant 0 : index
    %33 = vector.load %arg10[%c0_24, %c0_25] : memref<32x6xf32, #tpu.memory_space<vmem>>, vector<32x6xf32>
    %cst_26 = arith.constant dense<0.000000e+00> : vector<208x6xf32>
    %34 = tpu.matmul %32, %33, %cst_26 {dimension_numbers = #tpu.dot_dimension_numbers<[1], [0], [0], [1], [0, 0, 1, 1], [], []>} : vector<208x32xf32>, vector<32x6xf32>, vector<208x6xf32> -> vector<208x6xf32>
    %c0_27 = arith.constant 0 : index
    %c0_28 = arith.constant 0 : index
    %35 = vector.load %arg11[%c0_27, %c0_28] : memref<1x6xf32, #tpu.memory_space<vmem>>, vector<1x6xf32>
    %36 = vector.broadcast %35 : vector<1x6xf32> to vector<208x6xf32>
    %37 = arith.addf %34, %36 : vector<208x6xf32>
    %38 = tpu.iota {dimensions = array<i32: 1>} : vector<208x6xi32>
    %c2_i32 = arith.constant 2 : i32
    %39 = vector.broadcast %c2_i32 : i32 to vector<208x6xi32>
    %40 = arith.cmpi slt, %38, %39 : vector<208x6xi32>
    %41 = arith.negf %37 : vector<208x6xf32>
    %42 = math.exp %41 : vector<208x6xf32>
    %cst_29 = arith.constant 1.000000e+00 : f32
    %43 = vector.broadcast %cst_29 : f32 to vector<208x6xf32>
    %44 = arith.addf %43, %42 : vector<208x6xf32>
    %45 = arith.divf %43, %44 : vector<208x6xf32>
    %46 = arith.select %40, %45, %37 : vector<208x6xi1>, vector<208x6xf32>
    %c0_30 = arith.constant 0 : index
    %c0_31 = arith.constant 0 : index
    %47 = vector.load %arg12[%c0_30, %c0_31] : memref<208x6xf32, #tpu.memory_space<vmem>>, vector<208x6xf32>
    tpu.vector_store %arg12[%c0_30, %c0_31], %46 {strides = array<i32>} : memref<208x6xf32, #tpu.memory_space<vmem>>, vector<208x6xf32>,
    return
  }
  func.func @transform_0(%arg0: i32) -> (i32, i32) {
    %c0_i32 = arith.constant 0 : i32
    %c0_i32_0 = arith.constant 0 : i32
    return %arg0, %c0_i32 : i32, i32
  }
  func.func @transform_1(%arg0: i32) -> (i32, i32) {
    %c0_i32 = arith.constant 0 : i32
    %c0_i32_0 = arith.constant 0 : i32
    %c0_i32_1 = arith.constant 0 : i32
    return %c0_i32, %c0_i32_0 : i32, i32
  }
  func.func @transform_2(%arg0: i32) -> (i32, i32) {
    %c0_i32 = arith.constant 0 : i32
    %c0_i32_0 = arith.constant 0 : i32
    %c0_i32_1 = arith.constant 0 : i32
    return %c0_i32, %c0_i32_0 : i32, i32
  }
  func.func @transform_3(%arg0: i32) -> (i32, i32) {
    %c0_i32 = arith.constant 0 : i32
    %c0_i32_0 = arith.constant 0 : i32
    %c0_i32_1 = arith.constant 0 : i32
    return %c0_i32, %c0_i32_0 : i32, i32
  }
  func.func @transform_4(%arg0: i32) -> (i32, i32) {
    %c0_i32 = arith.constant 0 : i32
    %c0_i32_0 = arith.constant 0 : i32
    %c0_i32_1 = arith.constant 0 : i32
    return %c0_i32, %c0_i32_0 : i32, i32
  }
  func.func @transform_5(%arg0: i32) -> (i32, i32) {
    %c0_i32 = arith.constant 0 : i32
    %c0_i32_0 = arith.constant 0 : i32
    %c0_i32_1 = arith.constant 0 : i32
    return %c0_i32, %c0_i32_0 : i32, i32
  }
  func.func @transform_6(%arg0: i32) -> (i32, i32) {
    %c0_i32 = arith.constant 0 : i32
    %c0_i32_0 = arith.constant 0 : i32
    %c0_i32_1 = arith.constant 0 : i32
    return %c0_i32, %c0_i32_0 : i32, i32
  }
  func.func @transform_7(%arg0: i32) -> (i32, i32) {
    %c0_i32 = arith.constant 0 : i32
    %c0_i32_0 = arith.constant 0 : i32
    %c0_i32_1 = arith.constant 0 : i32
    return %c0_i32, %c0_i32_0 : i32, i32
  }
  func.func @transform_8(%arg0: i32) -> (i32, i32) {
    %c0_i32 = arith.constant 0 : i32
    %c0_i32_0 = arith.constant 0 : i32
    %c0_i32_1 = arith.constant 0 : i32
    return %c0_i32, %c0_i32_0 : i32, i32
  }
  func.func @transform_9(%arg0: i32) -> (i32, i32) {
    %c0_i32 = arith.constant 0 : i32
    %c0_i32_0 = arith.constant 0 : i32
    %c0_i32_1 = arith.constant 0 : i32
    return %c0_i32, %c0_i32_0 : i32, i32
  }
  func.func @transform_10(%arg0: i32) -> (i32, i32) {
    %c0_i32 = arith.constant 0 : i32
    %c0_i32_0 = arith.constant 0 : i32
    %c0_i32_1 = arith.constant 0 : i32
    return %c0_i32, %c0_i32_0 : i32, i32
  }
  func.func @transform_11(%arg0: i32) -> (i32, i32) {
    %c0_i32 = arith.constant 0 : i32
    %c0_i32_0 = arith.constant 0 : i32
    return %arg0, %c0_i32 : i32, i32
  }
}

module attributes {stable_mosaic.version = 11 : i64} {
  func.func @_mlp_kernel(%arg0: i32, %arg1: memref<208x32xf32, #tpu.memory_space<vmem>>, %arg2: memref<32x256xf32, #tpu.memory_space<vmem>>, %arg3: memref<1x256xf32, #tpu.memory_space<vmem>>, %arg4: memref<256x128xf32, #tpu.memory_space<vmem>>, %arg5: memref<1x128xf32, #tpu.memory_space<vmem>>, %arg6: memref<128x64xf32, #tpu.memory_space<vmem>>, %arg7: memref<1x64xf32, #tpu.memory_space<vmem>>, %arg8: memref<64x32xf32, #tpu.memory_space<vmem>>, %arg9: memref<1x32xf32, #tpu.memory_space<vmem>>, %arg10: memref<32x6xf32, #tpu.memory_space<vmem>>, %arg11: memref<1x6xf32, #tpu.memory_space<vmem>>, %arg12: memref<208x6xf32, #tpu.memory_space<vmem>>) attributes {dimension_semantics = [#tpu.dimension_semantics<parallel>], iteration_bounds = array<i64: 1>, scalar_prefetch = 0 : i64, scratch_operands = 0 : i64, tpu.core_type = #tpu.core_type<tc>, window_params = [{transform_indices = @transform_0, window_bounds = array<i64: 208, 32>}, {pipeline_mode = #tpu.pipeline_mode<synchronous>, transform_indices = @transform_1, window_bounds = array<i64: 32, 256>}, {pipeline_mode = #tpu.pipeline_mode<synchronous>, transform_indices = @transform_2, window_bounds = array<i64: 1, 256>}, {pipeline_mode = #tpu.pipeline_mode<synchronous>, transform_indices = @transform_3, window_bounds = array<i64: 256, 128>}, {pipeline_mode = #tpu.pipeline_mode<synchronous>, transform_indices = @transform_4, window_bounds = array<i64: 1, 128>}, {pipeline_mode = #tpu.pipeline_mode<synchronous>, transform_indices = @transform_5, window_bounds = array<i64: 128, 64>}, {pipeline_mode = #tpu.pipeline_mode<synchronous>, transform_indices = @transform_6, window_bounds = array<i64: 1, 64>}, {pipeline_mode = #tpu.pipeline_mode<synchronous>, transform_indices = @transform_7, window_bounds = array<i64: 64, 32>}, {pipeline_mode = #tpu.pipeline_mode<synchronous>, transform_indices = @transform_8, window_bounds = array<i64: 1, 32>}, {pipeline_mode = #tpu.pipeline_mode<synchronous>, transform_indices = @transform_9, window_bounds = array<i64: 32, 6>}, {pipeline_mode = #tpu.pipeline_mode<synchronous>, transform_indices = @transform_10, window_bounds = array<i64: 1, 6>}, {transform_indices = @transform_11, window_bounds = array<i64: 208, 6>}]} {
    %c0 = arith.constant 0 : index
    %c0_0 = arith.constant 0 : index
    %0 = vector.load %arg1[%c0, %c0_0] : memref<208x32xf32, #tpu.memory_space<vmem>>, vector<208x32xf32>
    %c0_1 = arith.constant 0 : index
    %c0_2 = arith.constant 0 : index
    %1 = vector.load %arg2[%c0_1, %c0_2] : memref<32x256xf32, #tpu.memory_space<vmem>>, vector<32x256xf32>
    %cst = arith.constant dense<0.000000e+00> : vector<208x256xf32>
    %2 = tpu.matmul %0, %1, %cst {dimension_numbers = #tpu.dot_dimension_numbers<[1], [0], [0], [1], [0, 0, 1, 1], [], []>} : vector<208x32xf32>, vector<32x256xf32>, vector<208x256xf32> -> vector<208x256xf32>
    %c0_3 = arith.constant 0 : index
    %c0_4 = arith.constant 0 : index
    %3 = vector.load %arg3[%c0_3, %c0_4] : memref<1x256xf32, #tpu.memory_space<vmem>>, vector<1x256xf32>
    %4 = vector.broadcast %3 : vector<1x256xf32> to vector<208x256xf32>
    %5 = arith.addf %2, %4 : vector<208x256xf32>
    %cst_5 = arith.constant 0.00999999977 : f32
    %6 = vector.broadcast %cst_5 : f32 to vector<208x256xf32>
    %7 = arith.mulf %6, %5 : vector<208x256xf32>
    %8 = arith.maximumf %5, %7 : vector<208x256xf32>
    %c0_6 = arith.constant 0 : index
    %c0_7 = arith.constant 0 : index
    %9 = vector.load %arg4[%c0_6, %c0_7] : memref<256x128xf32, #tpu.memory_space<vmem>>, vector<256x128xf32>
    %cst_8 = arith.constant dense<0.000000e+00> : vector<208x128xf32>
    %10 = tpu.matmul %8, %9, %cst_8 {dimension_numbers = #tpu.dot_dimension_numbers<[1], [0], [0], [1], [0, 0, 1, 1], [], []>} : vector<208x256xf32>, vector<256x128xf32>, vector<208x128xf32> -> vector<208x128xf32>
    %c0_9 = arith.constant 0 : index
    %c0_10 = arith.constant 0 : index
    %11 = vector.load %arg5[%c0_9, %c0_10] : memref<1x128xf32, #tpu.memory_space<vmem>>, vector<1x128xf32>
    %12 = vector.broadcast %11 : vector<1x128xf32> to vector<208x128xf32>
    %13 = arith.addf %10, %12 : vector<208x128xf32>
    %cst_11 = arith.constant 0.00999999977 : f32
    %14 = vector.broadcast %cst_11 : f32 to vector<208x128xf32>
    %15 = arith.mulf %14, %13 : vector<208x128xf32>
    %16 = arith.maximumf %13, %15 : vector<208x128xf32>
    %c0_12 = arith.constant 0 : index
    %c0_13 = arith.constant 0 : index
    %17 = vector.load %arg6[%c0_12, %c0_13] : memref<128x64xf32, #tpu.memory_space<vmem>>, vector<128x64xf32>
    %cst_14 = arith.constant dense<0.000000e+00> : vector<208x64xf32>
    %18 = tpu.matmul %16, %17, %cst_14 {dimension_numbers = #tpu.dot_dimension_numbers<[1], [0], [0], [1], [0, 0, 1, 1], [], []>} : vector<208x128xf32>, vector<128x64xf32>, vector<208x64xf32> -> vector<208x64xf32>
    %c0_15 = arith.constant 0 : index
    %c0_16 = arith.constant 0 : index
    %19 = vector.load %arg7[%c0_15, %c0_16] : memref<1x64xf32, #tpu.memory_space<vmem>>, vector<1x64xf32>
    %20 = vector.broadcast %19 : vector<1x64xf32> to vector<208x64xf32>
    %21 = arith.addf %18, %20 : vector<208x64xf32>
    %cst_17 = arith.constant 0.00999999977 : f32
    %22 = vector.broadcast %cst_17 : f32 to vector<208x64xf32>
    %23 = arith.mulf %22, %21 : vector<208x64xf32>
    %24 = arith.maximumf %21, %23 : vector<208x64xf32>
    %c0_18 = arith.constant 0 : index
    %c0_19 = arith.constant 0 : index
    %25 = vector.load %arg8[%c0_18, %c0_19] : memref<64x32xf32, #tpu.memory_space<vmem>>, vector<64x32xf32>
    %cst_20 = arith.constant dense<0.000000e+00> : vector<208x32xf32>
    %26 = tpu.matmul %24, %25, %cst_20 {dimension_numbers = #tpu.dot_dimension_numbers<[1], [0], [0], [1], [0, 0, 1, 1], [], []>} : vector<208x64xf32>, vector<64x32xf32>, vector<208x32xf32> -> vector<208x32xf32>
    %c0_21 = arith.constant 0 : index
    %c0_22 = arith.constant 0 : index
    %27 = vector.load %arg9[%c0_21, %c0_22] : memref<1x32xf32, #tpu.memory_space<vmem>>, vector<1x32xf32>
    %28 = vector.broadcast %27 : vector<1x32xf32> to vector<208x32xf32>
    %29 = arith.addf %26, %28 : vector<208x32xf32>
    %cst_23 = arith.constant 0.00999999977 : f32
    %30 = vector.broadcast %cst_23 : f32 to vector<208x32xf32>
    %31 = arith.mulf %30, %29 : vector<208x32xf32>
    %32 = arith.maximumf %29, %31 : vector<208x32xf32>
    %c0_24 = arith.constant 0 : index
    %c0_25 = arith.constant 0 : index
    %33 = vector.load %arg10[%c0_24, %c0_25] : memref<32x6xf32, #tpu.memory_space<vmem>>, vector<32x6xf32>
    %cst_26 = arith.constant dense<0.000000e+00> : vector<208x6xf32>
    %34 = tpu.matmul %32, %33, %cst_26 {dimension_numbers = #tpu.dot_dimension_numbers<[1], [0], [0], [1], [0, 0, 1, 1], [], []>} : vector<208x32xf32>, vector<32x6xf32>, vector<208x6xf32> -> vector<208x6xf32>
    %c0_27 = arith.constant 0 : index
    %c0_28 = arith.constant 0 : index
    %35 = vector.load %arg11[%c0_27, %c0_28] : memref<1x6xf32, #tpu.memory_space<vmem>>, vector<1x6xf32>
    %36 = vector.broadcast %35 : vector<1x6xf32> to vector<208x6xf32>
    %37 = arith.addf %34, %36 : vector<208x6xf32>
    %38 = tpu.iota {dimensions = array<i32: 1>} : vector<208x6xi32>
    %c2_i32 = arith.constant 2 : i32
    %39 = vector.broadcast %c2_i32 : i32 to vector<208x6xi32>
    %40 = arith.cmpi slt, %38, %39 : vector<208x6xi32>
    %41 = arith.negf %37 : vector<208x6xf32>
    %42 = math.exp %41 : vector<208x6xf32>
    %cst_29 = arith.constant 1.000000e+00 : f32
    %43 = vector.broadcast %cst_29 : f32 to vector<208x6xf32>
    %44 = arith.addf %43, %42 : vector<208x6xf32>
    %45 = arith.divf %43, %44 : vector<208x6xf32>
    %46 = arith.select %40, %45, %37 : vector<208x6xi1>, vector<208x6xf32>
    %c0_30 = arith.constant 0 : index
    %c0_31 = arith.constant 0 : index
    %47 = vector.load %arg12[%c0_30, %c0_31] : memref<208x6xf32, #tpu.memory_space<vmem>>, vector<208x6xf32>
    tpu.vector_store %arg12[%c0_30, %c0_31], %46 {strides = array<i32>} : memref<208x6xf32, #tpu.memory_space<vmem>>, vector<208x6xf32>,
    return
  }
  func.func @transform_0(%arg0: i32) -> (i32, i32) {
    %c0_i32 = arith.constant 0 : i32
    %c0_i32_0 = arith.constant 0 : i32
    return %arg0, %c0_i32 : i32, i32
  }
  func.func @transform_1(%arg0: i32) -> (i32, i32) {
    %c0_i32 = arith.constant 0 : i32
    %c0_i32_0 = arith.constant 0 : i32
    %c0_i32_1 = arith.constant 0 : i32
    return %c0_i32, %c0_i32_0 : i32, i32
  }
  func.func @transform_2(%arg0: i32) -> (i32, i32) {
    %c0_i32 = arith.constant 0 : i32
    %c0_i32_0 = arith.constant 0 : i32
    %c0_i32_1 = arith.constant 0 : i32
    return %c0_i32, %c0_i32_0 : i32, i32
  }
  func.func @transform_3(%arg0: i32) -> (i32, i32) {
    %c0_i32 = arith.constant 0 : i32
    %c0_i32_0 = arith.constant 0 : i32
    %c0_i32_1 = arith.constant 0 : i32
    return %c0_i32, %c0_i32_0 : i32, i32
  }
  func.func @transform_4(%arg0: i32) -> (i32, i32) {
    %c0_i32 = arith.constant 0 : i32
    %c0_i32_0 = arith.constant 0 : i32
    %c0_i32_1 = arith.constant 0 : i32
    return %c0_i32, %c0_i32_0 : i32, i32
  }
  func.func @transform_5(%arg0: i32) -> (i32, i32) {
    %c0_i32 = arith.constant 0 : i32
    %c0_i32_0 = arith.constant 0 : i32
    %c0_i32_1 = arith.constant 0 : i32
    return %c0_i32, %c0_i32_0 : i32, i32
  }
  func.func @transform_6(%arg0: i32) -> (i32, i32) {
    %c0_i32 = arith.constant 0 : i32
    %c0_i32_0 = arith.constant 0 : i32
    %c0_i32_1 = arith.constant 0 : i32
    return %c0_i32, %c0_i32_0 : i32, i32
  }
  func.func @transform_7(%arg0: i32) -> (i32, i32) {
    %c0_i32 = arith.constant 0 : i32
    %c0_i32_0 = arith.constant 0 : i32
    %c0_i32_1 = arith.constant 0 : i32
    return %c0_i32, %c0_i32_0 : i32, i32
  }
  func.func @transform_8(%arg0: i32) -> (i32, i32) {
    %c0_i32 = arith.constant 0 : i32
    %c0_i32_0 = arith.constant 0 : i32
    %c0_i32_1 = arith.constant 0 : i32
    return %c0_i32, %c0_i32_0 : i32, i32
  }
  func.func @transform_9(%arg0: i32) -> (i32, i32) {
    %c0_i32 = arith.constant 0 : i32
    %c0_i32_0 = arith.constant 0 : i32
    %c0_i32_1 = arith.constant 0 : i32
    return %c0_i32, %c0_i32_0 : i32, i32
  }
  func.func @transform_10(%arg0: i32) -> (i32, i32) {
    %c0_i32 = arith.constant 0 : i32
    %c0_i32_0 = arith.constant 0 : i32
    %c0_i32_1 = arith.constant 0 : i32
    return %c0_i32, %c0_i32_0 : i32, i32
  }
  func.func @transform_11(%arg0: i32) -> (i32, i32) {
    %c0_i32 = arith.constant 0 : i32
    %c0_i32_0 = arith.constant 0 : i32
    return %arg0, %c0_i32 : i32, i32
  }
}

</mosaic_0001>

<llo_original>
// kernel: tpu_custom_call.1
$region0: #{tpu_custom_call.1}
  #allocation0 [shape = 'u32[]', space=smem, size = 0x4, offset = 0x4, fixed_abs, tag = 'smem constant byte address 0x4 - core index']
  #allocation1 [shape = 'u32[72,128]{1,0:T(1,128)}', space=vmem, size = 0x9000, scoped, tag = 'internal scratch']
  %s0 = inlined_call_operand.vmem [shape: f32[200,32], index: 0, kind: input, shape index: {}]
  %s1 = inlined_call_operand.vmem [shape: f32[32,256], index: 1, kind: input, shape index: {}]
  %s2 = inlined_call_operand.vmem [shape: f32[1,256], index: 2, kind: input, shape index: {}]
  %s3 = inlined_call_operand.vmem [shape: f32[256,128], index: 3, kind: input, shape index: {}]
  %s4 = inlined_call_operand.vmem [shape: f32[1,128], index: 4, kind: input, shape index: {}]
  %s5 = inlined_call_operand.vmem [shape: f32[128,64], index: 5, kind: input, shape index: {}]
  %s6 = inlined_call_operand.vmem [shape: f32[1,64], index: 6, kind: input, shape index: {}]
  %s7 = inlined_call_operand.vmem [shape: f32[64,32], index: 7, kind: input, shape index: {}]
  %s8 = inlined_call_operand.vmem [shape: f32[1,32], index: 8, kind: input, shape index: {}]
  %s9 = inlined_call_operand.vmem [shape: f32[32,6], index: 9, kind: input, shape index: {}]
  %s10 = inlined_call_operand.vmem [shape: f32[1,6], index: 10, kind: input, shape index: {}]
  %s11 = inlined_call_operand.vmem [shape: f32[200,6], index: 11, kind: output, shape index: {}]
  %s12 = sld [smem:[#allocation0]]
  $region88: #{tpu_custom_call.1} parent=0
    _
  %s14 = ssub.s32 1, %s12
  %s15 = scalar_select 0, %s14, %s12
  $region1: #{tpu_custom_call.1} parent=0
    #allocation2 [shape = 'u8[106496]{0}', space=vmem, size = 0x1a000, scoped, tag = 'output window, operand 0, single buffered']
    // Predicated region
    $region2: #{tpu_custom_call.1} parent=1 // pred_check
      _
    $region3: #{tpu_custom_call.1} parent=1 // pred_check_branch
      %17 = sbr.rel (0) target = $region5
    $region4: #{tpu_custom_call.1} parent=1 // pred_region
      _
    $region5: #{tpu_custom_call.1} parent=1 // pred_fallthru
      _
    // Predicated region
    $region6: #{tpu_custom_call.1} parent=1 // pred_check
      _
    $region7: #{tpu_custom_call.1} parent=1 // pred_check_branch
      %19 = sbr.rel (0) target = $region9
    $region8: #{tpu_custom_call.1} parent=1 // pred_region
      _
    $region9: #{tpu_custom_call.1} parent=1 // pred_fallthru
      _
    // Predicated region
    $region10: #{tpu_custom_call.1} parent=1 // pred_check
      _
    $region11: #{tpu_custom_call.1} parent=1 // pred_check_branch
      %21 = sbr.rel (0) target = $region13
    $region12: #{tpu_custom_call.1} parent=1 // pred_region
      _
    $region13: #{tpu_custom_call.1} parent=1 // pred_fallthru
      _
    // Predicated region
    $region14: #{tpu_custom_call.1} parent=1 // pred_check
      _
    $region15: #{tpu_custom_call.1} parent=1 // pred_check_branch
      %23 = sbr.rel (0) target = $region17
    $region16: #{tpu_custom_call.1} parent=1 // pred_region
      _
    $region17: #{tpu_custom_call.1} parent=1 // pred_fallthru
      _
    // Predicated region
    $region18: #{tpu_custom_call.1} parent=1 // pred_check
      _
    $region19: #{tpu_custom_call.1} parent=1 // pred_check_branch
      %25 = sbr.rel (0) target = $region21
    $region20: #{tpu_custom_call.1} parent=1 // pred_region
      _
    $region21: #{tpu_custom_call.1} parent=1 // pred_fallthru
      _
    // Predicated region
    $region22: #{tpu_custom_call.1} parent=1 // pred_check
      _
    $region23: #{tpu_custom_call.1} parent=1 // pred_check_branch
      %27 = sbr.rel (0) target = $region25
    $region24: #{tpu_custom_call.1} parent=1 // pred_region
      _
    $region25: #{tpu_custom_call.1} parent=1 // pred_fallthru
      _
    // Predicated region
    $region26: #{tpu_custom_call.1} parent=1 // pred_check
      _
    $region27: #{tpu_custom_call.1} parent=1 // pred_check_branch
      %29 = sbr.rel (0) target = $region29
    $region28: #{tpu_custom_call.1} parent=1 // pred_region
      _
    $region29: #{tpu_custom_call.1} parent=1 // pred_fallthru
      _
    // Predicated region
    $region30: #{tpu_custom_call.1} parent=1 // pred_check
      _
    $region31: #{tpu_custom_call.1} parent=1 // pred_check_branch
      %31 = sbr.rel (0) target = $region33
    $region32: #{tpu_custom_call.1} parent=1 // pred_region
      _
    $region33: #{tpu_custom_call.1} parent=1 // pred_fallthru
      _
    // Predicated region
    $region34: #{tpu_custom_call.1} parent=1 // pred_check
      _
    $region35: #{tpu_custom_call.1} parent=1 // pred_check_branch
      %33 = sbr.rel (0) target = $region37
    $region36: #{tpu_custom_call.1} parent=1 // pred_region
      _
    $region37: #{tpu_custom_call.1} parent=1 // pred_fallthru
      _
    // Predicated region
    $region38: #{tpu_custom_call.1} parent=1 // pred_check
      _
    $region39: #{tpu_custom_call.1} parent=1 // pred_check_branch
      %35 = sbr.rel (0) target = $region41
    $region40: #{tpu_custom_call.1} parent=1 // pred_region
      _
    $region41: #{tpu_custom_call.1} parent=1 // pred_fallthru
      _
    // Predicated region
    $region42: #{tpu_custom_call.1} parent=1 // pred_check
      _
    $region43: #{tpu_custom_call.1} parent=1 // pred_check_branch
      %37 = sbr.rel (0) target = $region45
    $region44: #{tpu_custom_call.1} parent=1 // pred_region
      _
    $region45: #{tpu_custom_call.1} parent=1 // pred_fallthru
      _
    %v38 = vld [vmem:[%s0] sm:$0xff]
    %v39 = vld [vmem:[%s0 + $0x8] sm:$0xff]
    %v40 = vld [vmem:[%s0 + $0x10] sm:$0xff]
    %v41 = vld [vmem:[%s0 + $0x18] sm:$0xff]
    %v42 = vld [vmem:[%s0 + $0x20] sm:$0xff]
    %v43 = vld [vmem:[%s0 + $0x28] sm:$0xff]
    %v44 = vld [vmem:[%s0 + $0x30] sm:$0xff]
    %v45 = vld [vmem:[%s0 + $0x38] sm:$0xff]
    %v46 = vld [vmem:[%s0 + $0x40] sm:$0xff]
    %v47 = vld [vmem:[%s0 + $0x48] sm:$0xff]
    %v48 = vld [vmem:[%s0 + $0x50] sm:$0xff]
    %v49 = vld [vmem:[%s0 + $0x58] sm:$0xff]
    %v50 = vld [vmem:[%s0 + $0x60] sm:$0xff]
    %v51 = vld [vmem:[%s0 + $0x68] sm:$0xff]
    %v52 = vld [vmem:[%s0 + $0x70] sm:$0xff]
    %v53 = vld [vmem:[%s0 + $0x78] sm:$0xff]
    %v54 = vld [vmem:[%s0 + $0x80] sm:$0xff]
    %v55 = vld [vmem:[%s0 + $0x88] sm:$0xff]
    %v56 = vld [vmem:[%s0 + $0x90] sm:$0xff]
    %v57 = vld [vmem:[%s0 + $0x98] sm:$0xff]
    %v58 = vld [vmem:[%s0 + $0xa0] sm:$0xff]
    %v59 = vld [vmem:[%s0 + $0xa8] sm:$0xff]
    %v60 = vld [vmem:[%s0 + $0xb0] sm:$0xff]
    %v61 = vld [vmem:[%s0 + $0xb8] sm:$0xff]
    %v62 = vld [vmem:[%s0 + $0xc0] sm:$0xff]
    %v63 = vld [vmem:[%s0 + $0xc8] sm:$0xff]
    %v64 = vld [vmem:[%s1] sm:$0xff]
    %v65 = vld [vmem:[%s1 + $0x8] sm:$0xff]
    %v66 = vld [vmem:[%s1 + $0x10] sm:$0xff]
    %v67 = vld [vmem:[%s1 + $0x18] sm:$0xff]
    %v68 = vld [vmem:[%s1 + $0x20] sm:$0xff]
    %v69 = vld [vmem:[%s1 + $0x28] sm:$0xff]
    %v70 = vld [vmem:[%s1 + $0x30] sm:$0xff]
    %v71 = vld [vmem:[%s1 + $0x38] sm:$0xff]
    %v72 = vld [vmem:[%s2] sm:$0x3]
    %v74 = vperm.slane %v72, 0
    %v75 = vperm.slane %v72, 1
    %vm78 = vcmask 261120
    %v80 = vsel %vm78, %v38, 0
    %v83 = vsel %vm78, %v39, 0
    %v86 = vsel %vm78, %v40, 0
    %v89 = vsel %vm78, %v41, 0
    %v92 = vsel %vm78, %v42, 0
    %v95 = vsel %vm78, %v43, 0
    %v98 = vsel %vm78, %v44, 0
    %v101 = vsel %vm78, %v45, 0
    %v104 = vsel %vm78, %v46, 0
    %v107 = vsel %vm78, %v47, 0
    %v110 = vsel %vm78, %v48, 0
    %v113 = vsel %vm78, %v49, 0
    %v116 = vsel %vm78, %v50, 0
    %v119 = vsel %vm78, %v51, 0
    %v122 = vsel %vm78, %v52, 0
    %v125 = vsel %vm78, %v53, 0
    %v128 = vsel %vm78, %v54, 0
    %v131 = vsel %vm78, %v55, 0
    %v134 = vsel %vm78, %v56, 0
    %v137 = vsel %vm78, %v57, 0
    %v140 = vsel %vm78, %v58, 0
    %v143 = vsel %vm78, %v59, 0
    %v146 = vsel %vm78, %v60, 0
    %v149 = vsel %vm78, %v61, 0
    %v152 = vsel %vm78, %v62, 0
    %v155 = vsel %vm78, %v63, 0
    %157 = vmatpush.msra.mxu0 0.0
    %158 = vmatpush.msra.mxu0 0.0
    %159 = vmatpush.msra.mxu0 0.0
    %160 = vmatpush.msra.mxu0 0.0
    %161 = vmatpush.msra.mxu0 0.0
    %162 = vmatpush.msra.mxu0 0.0
    %163 = vmatpush.msra.mxu0 0.0
    %164 = vmatpush.msra.mxu0 0.0
    %165 = vmatpush.msra.mxu0 0.0
    %166 = vmatpush.msra.mxu0 0.0
    %167 = vmatpush.msra.mxu0 0.0
    %168 = vmatpush.msra.mxu0 0.0
    %169 = vmatpush.msra.mxu0 %v70
    %170 = vmatpush.msra.mxu0 %v68
    %171 = vmatpush.msra.mxu0 %v66
    %172 = vmatpush.msra.mxu0 %v64
    %173 = vmatmul.f32.gmra.mxu0 %v80
    %v174 = vpop.f32.mrf.mxu0
    %v175 = vadd.f32 %v74, %v174
    %176 = vmatmul.f32.gmra.mxu0 %v83
    %v177 = vpop.f32.mrf.mxu0
    %v178 = vadd.f32 %v74, %v177
    %179 = vmatmul.f32.gmra.mxu0 %v86
    %v180 = vpop.f32.mrf.mxu0
    %v181 = vadd.f32 %v74, %v180
    %182 = vmatmul.f32.gmra.mxu0 %v89
    %v183 = vpop.f32.mrf.mxu0
    %v184 = vadd.f32 %v74, %v183
    %185 = vmatmul.f32.gmra.mxu0 %v92
    %v186 = vpop.f32.mrf.mxu0
    %v187 = vadd.f32 %v74, %v186
    %188 = vmatmul.f32.gmra.mxu0 %v95
    %v189 = vpop.f32.mrf.mxu0
    %v190 = vadd.f32 %v74, %v189
    %191 = vmatmul.f32.gmra.mxu0 %v98
    %v192 = vpop.f32.mrf.mxu0
    %v193 = vadd.f32 %v74, %v192
    %194 = vmatmul.f32.gmra.mxu0 %v101
    %v195 = vpop.f32.mrf.mxu0
    %v196 = vadd.f32 %v74, %v195
    %197 = vmatmul.f32.gmra.mxu0 %v104
    %v198 = vpop.f32.mrf.mxu0
    %v199 = vadd.f32 %v74, %v198
    %200 = vmatmul.f32.gmra.mxu0 %v107
    %v201 = vpop.f32.mrf.mxu0
    %v202 = vadd.f32 %v74, %v201
    %203 = vmatmul.f32.gmra.mxu0 %v110
    %v204 = vpop.f32.mrf.mxu0
    %v205 = vadd.f32 %v74, %v204
    %206 = vmatmul.f32.gmra.mxu0 %v113
    %v207 = vpop.f32.mrf.mxu0
    %v208 = vadd.f32 %v74, %v207
    %209 = vmatmul.f32.gmra.mxu0 %v116
    %v210 = vpop.f32.mrf.mxu0
    %v211 = vadd.f32 %v74, %v210
    %212 = vmatmul.f32.gmra.mxu0 %v119
    %v213 = vpop.f32.mrf.mxu0
    %v214 = vadd.f32 %v74, %v213
    %215 = vmatmul.f32.gmra.mxu0 %v122
    %v216 = vpop.f32.mrf.mxu0
    %v217 = vadd.f32 %v74, %v216
    %218 = vmatmul.f32.gmra.mxu0 %v125
    %v219 = vpop.f32.mrf.mxu0
    %v220 = vadd.f32 %v74, %v219
    %221 = vmatmul.f32.gmra.mxu0 %v128
    %v222 = vpop.f32.mrf.mxu0
    %v223 = vadd.f32 %v74, %v222
    %224 = vmatmul.f32.gmra.mxu0 %v131
    %v225 = vpop.f32.mrf.mxu0
    %v226 = vadd.f32 %v74, %v225
    %227 = vmatmul.f32.gmra.mxu0 %v134
    %v228 = vpop.f32.mrf.mxu0
    %v229 = vadd.f32 %v74, %v228
    %230 = vmatmul.f32.gmra.mxu0 %v137
    %v231 = vpop.f32.mrf.mxu0
    %v232 = vadd.f32 %v74, %v231
    %233 = vmatmul.f32.gmra.mxu0 %v140
    %v234 = vpop.f32.mrf.mxu0
    %v235 = vadd.f32 %v74, %v234
    %236 = vmatmul.f32.gmra.mxu0 %v143
    %v237 = vpop.f32.mrf.mxu0
    %v238 = vadd.f32 %v74, %v237
    %239 = vmatmul.f32.gmra.mxu0 %v146
    %v240 = vpop.f32.mrf.mxu0
    %v241 = vadd.f32 %v74, %v240
    %242 = vmatmul.f32.gmra.mxu0 %v149
    %v243 = vpop.f32.mrf.mxu0
    %v244 = vadd.f32 %v74, %v243
    %245 = vmatmul.f32.gmra.mxu0 %v152
    %v246 = vpop.f32.mrf.mxu0
    %v247 = vadd.f32 %v74, %v246
    %248 = vmatmul.f32.gmra.mxu0 %v155
    %v249 = vpop.f32.mrf.mxu0
    %v250 = vadd.f32 %v74, %v249
    %251 = vdwg.mxu0
    %252 = vmatpush.msra.mxu0 0.0
    %253 = vmatpush.msra.mxu0 0.0
    %254 = vmatpush.msra.mxu0 0.0
    %255 = vmatpush.msra.mxu0 0.0
    %256 = vmatpush.msra.mxu0 0.0
    %257 = vmatpush.msra.mxu0 0.0
    %258 = vmatpush.msra.mxu0 0.0
    %259 = vmatpush.msra.mxu0 0.0
    %260 = vmatpush.msra.mxu0 0.0
    %261 = vmatpush.msra.mxu0 0.0
    %262 = vmatpush.msra.mxu0 0.0
    %263 = vmatpush.msra.mxu0 0.0
    %264 = vmatpush.msra.mxu0 %v71
    %265 = vmatpush.msra.mxu0 %v69
    %266 = vmatpush.msra.mxu0 %v67
    %267 = vmatpush.msra.mxu0 %v65
    %268 = vmatmul.f32.gmra.mxu0 %v80
    %v269 = vpop.f32.mrf.mxu0
    %v270 = vadd.f32 %v75, %v269
    %271 = vmatmul.f32.gmra.mxu0 %v83
    %v272 = vpop.f32.mrf.mxu0
    %v273 = vadd.f32 %v75, %v272
    %274 = vmatmul.f32.gmra.mxu0 %v86
    %v275 = vpop.f32.mrf.mxu0
    %v276 = vadd.f32 %v75, %v275
    %277 = vmatmul.f32.gmra.mxu0 %v89
    %v278 = vpop.f32.mrf.mxu0
    %v279 = vadd.f32 %v75, %v278
    %280 = vmatmul.f32.gmra.mxu0 %v92
    %v281 = vpop.f32.mrf.mxu0
    %v282 = vadd.f32 %v75, %v281
    %283 = vmatmul.f32.gmra.mxu0 %v95
    %v284 = vpop.f32.mrf.mxu0
    %v285 = vadd.f32 %v75, %v284
    %286 = vmatmul.f32.gmra.mxu0 %v98
    %v287 = vpop.f32.mrf.mxu0
    %v288 = vadd.f32 %v75, %v287
    %289 = vmatmul.f32.gmra.mxu0 %v101
    %v290 = vpop.f32.mrf.mxu0
    %v291 = vadd.f32 %v75, %v290
    %292 = vmatmul.f32.gmra.mxu0 %v104
    %v293 = vpop.f32.mrf.mxu0
    %v294 = vadd.f32 %v75, %v293
    %295 = vmatmul.f32.gmra.mxu0 %v107
    %v296 = vpop.f32.mrf.mxu0
    %v297 = vadd.f32 %v75, %v296
    %298 = vmatmul.f32.gmra.mxu0 %v110
    %v299 = vpop.f32.mrf.mxu0
    %v300 = vadd.f32 %v75, %v299
    %301 = vmatmul.f32.gmra.mxu0 %v113
    %v302 = vpop.f32.mrf.mxu0
    %v303 = vadd.f32 %v75, %v302
    %304 = vmatmul.f32.gmra.mxu0 %v116
    %v305 = vpop.f32.mrf.mxu0
    %v306 = vadd.f32 %v75, %v305
    %307 = vmatmul.f32.gmra.mxu0 %v119
    %v308 = vpop.f32.mrf.mxu0
    %v309 = vadd.f32 %v75, %v308
    %310 = vmatmul.f32.gmra.mxu0 %v122
    %v311 = vpop.f32.mrf.mxu0
    %v312 = vadd.f32 %v75, %v311
    %313 = vmatmul.f32.gmra.mxu0 %v125
    %v314 = vpop.f32.mrf.mxu0
    %v315 = vadd.f32 %v75, %v314
    %316 = vmatmul.f32.gmra.mxu0 %v128
    %v317 = vpop.f32.mrf.mxu0
    %v318 = vadd.f32 %v75, %v317
    %319 = vmatmul.f32.gmra.mxu0 %v131
    %v320 = vpop.f32.mrf.mxu0
    %v321 = vadd.f32 %v75, %v320
    %322 = vmatmul.f32.gmra.mxu0 %v134
    %v323 = vpop.f32.mrf.mxu0
    %v324 = vadd.f32 %v75, %v323
    %325 = vmatmul.f32.gmra.mxu0 %v137
    %v326 = vpop.f32.mrf.mxu0
    %v327 = vadd.f32 %v75, %v326
    %328 = vmatmul.f32.gmra.mxu0 %v140
    %v329 = vpop.f32.mrf.mxu0
    %v330 = vadd.f32 %v75, %v329
    %331 = vmatmul.f32.gmra.mxu0 %v143
    %v332 = vpop.f32.mrf.mxu0
    %v333 = vadd.f32 %v75, %v332
    %334 = vmatmul.f32.gmra.mxu0 %v146
    %v335 = vpop.f32.mrf.mxu0
    %v336 = vadd.f32 %v75, %v335
    %337 = vmatmul.f32.gmra.mxu0 %v149
    %v338 = vpop.f32.mrf.mxu0
    %v339 = vadd.f32 %v75, %v338
    %340 = vmatmul.f32.gmra.mxu0 %v152
    %v341 = vpop.f32.mrf.mxu0
    %v342 = vadd.f32 %v75, %v341
    %343 = vmatmul.f32.gmra.mxu0 %v155
    %v344 = vpop.f32.mrf.mxu0
    %v345 = vadd.f32 %v75, %v344
    %346 = vdwg.mxu0
    %v347 = vmul.f32 %v175, 0.01
    %v348 = vmul.f32 %v270, 0.01
    %v349 = vmul.f32 %v178, 0.01
    %v350 = vmul.f32 %v273, 0.01
    %v351 = vmul.f32 %v181, 0.01
    %v352 = vmul.f32 %v276, 0.01
    %v353 = vmul.f32 %v184, 0.01
    %v354 = vmul.f32 %v279, 0.01
    %v355 = vmul.f32 %v187, 0.01
    %v356 = vmul.f32 %v282, 0.01
    %v357 = vmul.f32 %v190, 0.01
    %v358 = vmul.f32 %v285, 0.01
    %v359 = vmul.f32 %v193, 0.01
    %v360 = vmul.f32 %v288, 0.01
    %v361 = vmul.f32 %v196, 0.01
    %v362 = vmul.f32 %v291, 0.01
    %v363 = vmul.f32 %v199, 0.01
    %v364 = vmul.f32 %v294, 0.01
    %v365 = vmul.f32 %v202, 0.01
    %v366 = vmul.f32 %v297, 0.01
    %v367 = vmul.f32 %v205, 0.01
    %v368 = vmul.f32 %v300, 0.01
    %v369 = vmul.f32 %v208, 0.01
    %v370 = vmul.f32 %v303, 0.01
    %v371 = vmul.f32 %v211, 0.01
    %v372 = vmul.f32 %v306, 0.01
    %v373 = vmul.f32 %v214, 0.01
    %v374 = vmul.f32 %v309, 0.01
    %v375 = vmul.f32 %v217, 0.01
    %v376 = vmul.f32 %v312, 0.01
    %v377 = vmul.f32 %v220, 0.01
    %v378 = vmul.f32 %v315, 0.01
    %v379 = vmul.f32 %v223, 0.01
    %v380 = vmul.f32 %v318, 0.01
    %v381 = vmul.f32 %v226, 0.01
    %v382 = vmul.f32 %v321, 0.01
    %v383 = vmul.f32 %v229, 0.01
    %v384 = vmul.f32 %v324, 0.01
    %v385 = vmul.f32 %v232, 0.01
    %v386 = vmul.f32 %v327, 0.01
    %v387 = vmul.f32 %v235, 0.01
    %v388 = vmul.f32 %v330, 0.01
    %v389 = vmul.f32 %v238, 0.01
    %v390 = vmul.f32 %v333, 0.01
    %v391 = vmul.f32 %v241, 0.01
    %v392 = vmul.f32 %v336, 0.01
    %v393 = vmul.f32 %v244, 0.01
    %v394 = vmul.f32 %v339, 0.01
    %v395 = vmul.f32 %v247, 0.01
    %v396 = vmul.f32 %v342, 0.01
    %v397 = vmul.f32 %v250, 0.01
    %v398 = vmul.f32 %v345, 0.01
    %v399 = vmax.f32 %v175, %v347
    %v400 = vmax.f32 %v270, %v348
    %v401 = vmax.f32 %v178, %v349
    %v402 = vmax.f32 %v273, %v350
    %v403 = vmax.f32 %v181, %v351
    %v404 = vmax.f32 %v276, %v352
    %v405 = vmax.f32 %v184, %v353
    %v406 = vmax.f32 %v279, %v354
    %v407 = vmax.f32 %v187, %v355
    %v408 = vmax.f32 %v282, %v356
    %v409 = vmax.f32 %v190, %v357
    %v410 = vmax.f32 %v285, %v358
    %v411 = vmax.f32 %v193, %v359
    %v412 = vmax.f32 %v288, %v360
    %v413 = vmax.f32 %v196, %v361
    %v414 = vmax.f32 %v291, %v362
    %v415 = vmax.f32 %v199, %v363
    %v416 = vmax.f32 %v294, %v364
    %v417 = vmax.f32 %v202, %v365
    %v418 = vmax.f32 %v297, %v366
    %v419 = vmax.f32 %v205, %v367
    %v420 = vmax.f32 %v300, %v368
    %v421 = vmax.f32 %v208, %v369
    %v422 = vmax.f32 %v303, %v370
    %v423 = vmax.f32 %v211, %v371
    %v424 = vmax.f32 %v306, %v372
    %v425 = vmax.f32 %v214, %v373
    %v426 = vmax.f32 %v309, %v374
    %v427 = vmax.f32 %v217, %v375
    %v428 = vmax.f32 %v312, %v376
    %v429 = vmax.f32 %v220, %v377
    %v430 = vmax.f32 %v315, %v378
    %v431 = vmax.f32 %v223, %v379
    %v432 = vmax.f32 %v318, %v380
    %v433 = vmax.f32 %v226, %v381
    %v434 = vmax.f32 %v321, %v382
    %v435 = vmax.f32 %v229, %v383
    %v436 = vmax.f32 %v324, %v384
    %v437 = vmax.f32 %v232, %v385
    %v438 = vmax.f32 %v327, %v386
    %v439 = vmax.f32 %v235, %v387
    %v440 = vmax.f32 %v330, %v388
    %v441 = vmax.f32 %v238, %v389
    %v442 = vmax.f32 %v333, %v390
    %v443 = vmax.f32 %v241, %v391
    %v444 = vmax.f32 %v336, %v392
    %v445 = vmax.f32 %v244, %v393
    %v446 = vmax.f32 %v339, %v394
    %v447 = vmax.f32 %v247, %v395
    %v448 = vmax.f32 %v342, %v396
    %v449 = vmax.f32 %v250, %v397
    %v450 = vmax.f32 %v345, %v398
    %v451 = vld [vmem:[%s3] sm:$0xff]
    %v452 = vld [vmem:[%s3 + $0x8] sm:$0xff]
    %v453 = vld [vmem:[%s3 + $0x10] sm:$0xff]
    %v454 = vld [vmem:[%s3 + $0x18] sm:$0xff]
    %v455 = vld [vmem:[%s3 + $0x20] sm:$0xff]
    %v456 = vld [vmem:[%s3 + $0x28] sm:$0xff]
    %v457 = vld [vmem:[%s3 + $0x30] sm:$0xff]
    %v458 = vld [vmem:[%s3 + $0x38] sm:$0xff]
    %v459 = vld [vmem:[%s3 + $0x40] sm:$0xff]
    %v460 = vld [vmem:[%s3 + $0x48] sm:$0xff]
    %v461 = vld [vmem:[%s3 + $0x50] sm:$0xff]
    %v462 = vld [vmem:[%s3 + $0x58] sm:$0xff]
    %v463 = vld [vmem:[%s3 + $0x60] sm:$0xff]
    %v464 = vld [vmem:[%s3 + $0x68] sm:$0xff]
    %v465 = vld [vmem:[%s3 + $0x70] sm:$0xff]
    %v466 = vld [vmem:[%s3 + $0x78] sm:$0xff]
    %v467 = vld [vmem:[%s3 + $0x80] sm:$0xff]
    %v468 = vld [vmem:[%s3 + $0x88] sm:$0xff]
    %v469 = vld [vmem:[%s3 + $0x90] sm:$0xff]
    %v470 = vld [vmem:[%s3 + $0x98] sm:$0xff]
    %v471 = vld [vmem:[%s3 + $0xa0] sm:$0xff]
    %v472 = vld [vmem:[%s3 + $0xa8] sm:$0xff]
    %v473 = vld [vmem:[%s3 + $0xb0] sm:$0xff]
    %v474 = vld [vmem:[%s3 + $0xb8] sm:$0xff]
    %v475 = vld [vmem:[%s3 + $0xc0] sm:$0xff]
    %v476 = vld [vmem:[%s3 + $0xc8] sm:$0xff]
    %v477 = vld [vmem:[%s3 + $0xd0] sm:$0xff]
    %v478 = vld [vmem:[%s3 + $0xd8] sm:$0xff]
    %v479 = vld [vmem:[%s3 + $0xe0] sm:$0xff]
    %v480 = vld [vmem:[%s3 + $0xe8] sm:$0xff]
    %v481 = vld [vmem:[%s3 + $0xf0] sm:$0xff]
    %v482 = vld [vmem:[%s3 + $0xf8] sm:$0xff]
    %v483 = vld [vmem:[%s4] sm:$0x1]
    %v485 = vperm.slane %v483, 0
    %487 = vmatpush.msra.mxu0 %v466
    %488 = vmatpush.msra.mxu0 %v465
    %489 = vmatpush.msra.mxu0 %v464
    %490 = vmatpush.msra.mxu0 %v463
    %491 = vmatpush.msra.mxu0 %v462
    %492 = vmatpush.msra.mxu0 %v461
    %493 = vmatpush.msra.mxu0 %v460
    %494 = vmatpush.msra.mxu0 %v459
    %495 = vmatpush.msra.mxu0 %v458
    %496 = vmatpush.msra.mxu0 %v457
    %497 = vmatpush.msra.mxu0 %v456
    %498 = vmatpush.msra.mxu0 %v455
    %499 = vmatpush.msra.mxu0 %v454
    %500 = vmatpush.msra.mxu0 %v453
    %501 = vmatpush.msra.mxu0 %v452
    %502 = vmatpush.msra.mxu0 %v451
    %503 = vmatmul.f32.gmra.mxu0 %v399
    %v504 = vpop.f32.mrf.mxu0
    %v505 = vadd.f32 %v485, %v504
    %506 = vmatmul.f32.gmra.mxu0 %v401
    %v507 = vpop.f32.mrf.mxu0
    %v508 = vadd.f32 %v485, %v507
    %509 = vmatmul.f32.gmra.mxu0 %v403
    %v510 = vpop.f32.mrf.mxu0
    %v511 = vadd.f32 %v485, %v510
    %512 = vmatmul.f32.gmra.mxu0 %v405
    %v513 = vpop.f32.mrf.mxu0
    %v514 = vadd.f32 %v485, %v513
    %515 = vmatmul.f32.gmra.mxu0 %v407
    %v516 = vpop.f32.mrf.mxu0
    %v517 = vadd.f32 %v485, %v516
    %518 = vmatmul.f32.gmra.mxu0 %v409
    %v519 = vpop.f32.mrf.mxu0
    %v520 = vadd.f32 %v485, %v519
    %521 = vmatmul.f32.gmra.mxu0 %v411
    %v522 = vpop.f32.mrf.mxu0
    %v523 = vadd.f32 %v485, %v522
    %524 = vmatmul.f32.gmra.mxu0 %v413
    %v525 = vpop.f32.mrf.mxu0
    %v526 = vadd.f32 %v485, %v525
    %527 = vmatmul.f32.gmra.mxu0 %v415
    %v528 = vpop.f32.mrf.mxu0
    %v529 = vadd.f32 %v485, %v528
    %530 = vmatmul.f32.gmra.mxu0 %v417
    %v531 = vpop.f32.mrf.mxu0
    %v532 = vadd.f32 %v485, %v531
    %533 = vmatmul.f32.gmra.mxu0 %v419
    %v534 = vpop.f32.mrf.mxu0
    %v535 = vadd.f32 %v485, %v534
    %536 = vmatmul.f32.gmra.mxu0 %v421
    %v537 = vpop.f32.mrf.mxu0
    %v538 = vadd.f32 %v485, %v537
    %539 = vmatmul.f32.gmra.mxu0 %v423
    %v540 = vpop.f32.mrf.mxu0
    %v541 = vadd.f32 %v485, %v540
    %542 = vmatmul.f32.gmra.mxu0 %v425
    %v543 = vpop.f32.mrf.mxu0
    %v544 = vadd.f32 %v485, %v543
    %545 = vmatmul.f32.gmra.mxu0 %v427
    %v546 = vpop.f32.mrf.mxu0
    %v547 = vadd.f32 %v485, %v546
    %548 = vmatmul.f32.gmra.mxu0 %v429
    %v549 = vpop.f32.mrf.mxu0
    %v550 = vadd.f32 %v485, %v549
    %551 = vmatmul.f32.gmra.mxu0 %v431
    %v552 = vpop.f32.mrf.mxu0
    %v553 = vadd.f32 %v485, %v552
    %554 = vmatmul.f32.gmra.mxu0 %v433
    %v555 = vpop.f32.mrf.mxu0
    %v556 = vadd.f32 %v485, %v555
    %557 = vmatmul.f32.gmra.mxu0 %v435
    %v558 = vpop.f32.mrf.mxu0
    %v559 = vadd.f32 %v485, %v558
    %560 = vmatmul.f32.gmra.mxu0 %v437
    %v561 = vpop.f32.mrf.mxu0
    %v562 = vadd.f32 %v485, %v561
    %563 = vmatmul.f32.gmra.mxu0 %v439
    %v564 = vpop.f32.mrf.mxu0
    %v565 = vadd.f32 %v485, %v564
    %566 = vmatmul.f32.gmra.mxu0 %v441
    %v567 = vpop.f32.mrf.mxu0
    %v568 = vadd.f32 %v485, %v567
    %569 = vmatmul.f32.gmra.mxu0 %v443
    %v570 = vpop.f32.mrf.mxu0
    %v571 = vadd.f32 %v485, %v570
    %572 = vmatmul.f32.gmra.mxu0 %v445
    %v573 = vpop.f32.mrf.mxu0
    %v574 = vadd.f32 %v485, %v573
    %575 = vmatmul.f32.gmra.mxu0 %v447
    %v576 = vpop.f32.mrf.mxu0
    %v577 = vadd.f32 %v485, %v576
    %578 = vmatmul.f32.gmra.mxu0 %v449
    %v579 = vpop.f32.mrf.mxu0
    %v580 = vadd.f32 %v485, %v579
    %581 = vdwg.mxu0
    %582 = vmatpush.msra.mxu0 %v482
    %583 = vmatpush.msra.mxu0 %v481
    %584 = vmatpush.msra.mxu0 %v480
    %585 = vmatpush.msra.mxu0 %v479
    %586 = vmatpush.msra.mxu0 %v478
    %587 = vmatpush.msra.mxu0 %v477
    %588 = vmatpush.msra.mxu0 %v476
    %589 = vmatpush.msra.mxu0 %v475
    %590 = vmatpush.msra.mxu0 %v474
    %591 = vmatpush.msra.mxu0 %v473
    %592 = vmatpush.msra.mxu0 %v472
    %593 = vmatpush.msra.mxu0 %v471
    %594 = vmatpush.msra.mxu0 %v470
    %595 = vmatpush.msra.mxu0 %v469
    %596 = vmatpush.msra.mxu0 %v468
    %597 = vmatpush.msra.mxu0 %v467
    %598 = vmatmul.f32.gmra.mxu0 %v400
    %v599 = vpop.f32.mrf.mxu0
    %v600 = vadd.f32 %v505, %v599
    %601 = vmatmul.f32.gmra.mxu0 %v402
    %v602 = vpop.f32.mrf.mxu0
    %v603 = vadd.f32 %v508, %v602
    %604 = vmatmul.f32.gmra.mxu0 %v404
    %v605 = vpop.f32.mrf.mxu0
    %v606 = vadd.f32 %v511, %v605
    %607 = vmatmul.f32.gmra.mxu0 %v406
    %v608 = vpop.f32.mrf.mxu0
    %v609 = vadd.f32 %v514, %v608
    %610 = vmatmul.f32.gmra.mxu0 %v408
    %v611 = vpop.f32.mrf.mxu0
    %v612 = vadd.f32 %v517, %v611
    %613 = vmatmul.f32.gmra.mxu0 %v410
    %v614 = vpop.f32.mrf.mxu0
    %v615 = vadd.f32 %v520, %v614
    %616 = vmatmul.f32.gmra.mxu0 %v412
    %v617 = vpop.f32.mrf.mxu0
    %v618 = vadd.f32 %v523, %v617
    %619 = vmatmul.f32.gmra.mxu0 %v414
    %v620 = vpop.f32.mrf.mxu0
    %v621 = vadd.f32 %v526, %v620
    %622 = vmatmul.f32.gmra.mxu0 %v416
    %v623 = vpop.f32.mrf.mxu0
    %v624 = vadd.f32 %v529, %v623
    %625 = vmatmul.f32.gmra.mxu0 %v418
    %v626 = vpop.f32.mrf.mxu0
    %v627 = vadd.f32 %v532, %v626
    %628 = vmatmul.f32.gmra.mxu0 %v420
    %v629 = vpop.f32.mrf.mxu0
    %v630 = vadd.f32 %v535, %v629
    %631 = vmatmul.f32.gmra.mxu0 %v422
    %v632 = vpop.f32.mrf.mxu0
    %v633 = vadd.f32 %v538, %v632
    %634 = vmatmul.f32.gmra.mxu0 %v424
    %v635 = vpop.f32.mrf.mxu0
    %v636 = vadd.f32 %v541, %v635
    %637 = vmatmul.f32.gmra.mxu0 %v426
    %v638 = vpop.f32.mrf.mxu0
    %v639 = vadd.f32 %v544, %v638
    %640 = vmatmul.f32.gmra.mxu0 %v428
    %v641 = vpop.f32.mrf.mxu0
    %v642 = vadd.f32 %v547, %v641
    %643 = vmatmul.f32.gmra.mxu0 %v430
    %v644 = vpop.f32.mrf.mxu0
    %v645 = vadd.f32 %v550, %v644
    %646 = vmatmul.f32.gmra.mxu0 %v432
    %v647 = vpop.f32.mrf.mxu0
    %v648 = vadd.f32 %v553, %v647
    %649 = vmatmul.f32.gmra.mxu0 %v434
    %v650 = vpop.f32.mrf.mxu0
    %v651 = vadd.f32 %v556, %v650
    %652 = vmatmul.f32.gmra.mxu0 %v436
    %v653 = vpop.f32.mrf.mxu0
    %v654 = vadd.f32 %v559, %v653
    %655 = vmatmul.f32.gmra.mxu0 %v438
    %v656 = vpop.f32.mrf.mxu0
    %v657 = vadd.f32 %v562, %v656
    %658 = vmatmul.f32.gmra.mxu0 %v440
    %v659 = vpop.f32.mrf.mxu0
    %v660 = vadd.f32 %v565, %v659
    %661 = vmatmul.f32.gmra.mxu0 %v442
    %v662 = vpop.f32.mrf.mxu0
    %v663 = vadd.f32 %v568, %v662
    %664 = vmatmul.f32.gmra.mxu0 %v444
    %v665 = vpop.f32.mrf.mxu0
    %v666 = vadd.f32 %v571, %v665
    %667 = vmatmul.f32.gmra.mxu0 %v446
    %v668 = vpop.f32.mrf.mxu0
    %v669 = vadd.f32 %v574, %v668
    %670 = vmatmul.f32.gmra.mxu0 %v448
    %v671 = vpop.f32.mrf.mxu0
    %v672 = vadd.f32 %v577, %v671
    %673 = vmatmul.f32.gmra.mxu0 %v450
    %v674 = vpop.f32.mrf.mxu0
    %v675 = vadd.f32 %v580, %v674
    %676 = vdwg.mxu0
    %v677 = vmul.f32 %v600, 0.01
    %v678 = vmul.f32 %v603, 0.01
    %v679 = vmul.f32 %v606, 0.01
    %v680 = vmul.f32 %v609, 0.01
    %v681 = vmul.f32 %v612, 0.01
    %v682 = vmul.f32 %v615, 0.01
    %v683 = vmul.f32 %v618, 0.01
    %v684 = vmul.f32 %v621, 0.01
    %v685 = vmul.f32 %v624, 0.01
    %v686 = vmul.f32 %v627, 0.01
    %v687 = vmul.f32 %v630, 0.01
    %v688 = vmul.f32 %v633, 0.01
    %v689 = vmul.f32 %v636, 0.01
    %v690 = vmul.f32 %v639, 0.01
    %v691 = vmul.f32 %v642, 0.01
    %v692 = vmul.f32 %v645, 0.01
    %v693 = vmul.f32 %v648, 0.01
    %v694 = vmul.f32 %v651, 0.01
    %v695 = vmul.f32 %v654, 0.01
    %v696 = vmul.f32 %v657, 0.01
    %v697 = vmul.f32 %v660, 0.01
    %v698 = vmul.f32 %v663, 0.01
    %v699 = vmul.f32 %v666, 0.01
    %v700 = vmul.f32 %v669, 0.01
    %v701 = vmul.f32 %v672, 0.01
    %v702 = vmul.f32 %v675, 0.01
    %v703 = vmax.f32 %v600, %v677
    %v704 = vmax.f32 %v603, %v678
    %v705 = vmax.f32 %v606, %v679
    %v706 = vmax.f32 %v609, %v680
    %v707 = vmax.f32 %v612, %v681
    %v708 = vmax.f32 %v615, %v682
    %v709 = vmax.f32 %v618, %v683
    %v710 = vmax.f32 %v621, %v684
    %v711 = vmax.f32 %v624, %v685
    %v712 = vmax.f32 %v627, %v686
    %v713 = vmax.f32 %v630, %v687
    %v714 = vmax.f32 %v633, %v688
    %v715 = vmax.f32 %v636, %v689
    %v716 = vmax.f32 %v639, %v690
    %v717 = vmax.f32 %v642, %v691
    %v718 = vmax.f32 %v645, %v692
    %v719 = vmax.f32 %v648, %v693
    %v720 = vmax.f32 %v651, %v694
    %v721 = vmax.f32 %v654, %v695
    %v722 = vmax.f32 %v657, %v696
    %v723 = vmax.f32 %v660, %v697
    %v724 = vmax.f32 %v663, %v698
    %v725 = vmax.f32 %v666, %v699
    %v726 = vmax.f32 %v669, %v700
    %v727 = vmax.f32 %v672, %v701
    %v728 = vmax.f32 %v675, %v702
    %v729 = vld [vmem:[%s5] sm:$0xff]
    %v730 = vld [vmem:[%s5 + $0x8] sm:$0xff]
    %v731 = vld [vmem:[%s5 + $0x10] sm:$0xff]
    %v732 = vld [vmem:[%s5 + $0x18] sm:$0xff]
    %v733 = vld [vmem:[%s5 + $0x20] sm:$0xff]
    %v734 = vld [vmem:[%s5 + $0x28] sm:$0xff]
    %v735 = vld [vmem:[%s5 + $0x30] sm:$0xff]
    %v736 = vld [vmem:[%s5 + $0x38] sm:$0xff]
    %v737 = vld [vmem:[%s5 + $0x40] sm:$0xff]
    %v738 = vld [vmem:[%s5 + $0x48] sm:$0xff]
    %v739 = vld [vmem:[%s5 + $0x50] sm:$0xff]
    %v740 = vld [vmem:[%s5 + $0x58] sm:$0xff]
    %v741 = vld [vmem:[%s5 + $0x60] sm:$0xff]
    %v742 = vld [vmem:[%s5 + $0x68] sm:$0xff]
    %v743 = vld [vmem:[%s5 + $0x70] sm:$0xff]
    %v744 = vld [vmem:[%s5 + $0x78] sm:$0xff]
    %v745 = vld [vmem:[%s6] sm:$0x1]
    %v747 = vperm.slane %v745, 0
    %749 = vmatpush.msra.mxu0 %v744
    %750 = vmatpush.msra.mxu0 %v743
    %751 = vmatpush.msra.mxu0 %v742
    %752 = vmatpush.msra.mxu0 %v741
    %753 = vmatpush.msra.mxu0 %v740
    %754 = vmatpush.msra.mxu0 %v739
    %755 = vmatpush.msra.mxu0 %v738
    %756 = vmatpush.msra.mxu0 %v737
    %757 = vmatpush.msra.mxu0 %v736
    %758 = vmatpush.msra.mxu0 %v735
    %759 = vmatpush.msra.mxu0 %v734
    %760 = vmatpush.msra.mxu0 %v733
    %761 = vmatpush.msra.mxu0 %v732
    %762 = vmatpush.msra.mxu0 %v731
    %763 = vmatpush.msra.mxu0 %v730
    %764 = vmatpush.msra.mxu0 %v729
    %765 = vmatmul.f32.gmra.mxu0 %v703
    %v766 = vpop.f32.mrf.mxu0
    %v767 = vadd.f32 %v747, %v766
    %768 = vmatmul.f32.gmra.mxu0 %v704
    %v769 = vpop.f32.mrf.mxu0
    %v770 = vadd.f32 %v747, %v769
    %771 = vmatmul.f32.gmra.mxu0 %v705
    %v772 = vpop.f32.mrf.mxu0
    %v773 = vadd.f32 %v747, %v772
    %774 = vmatmul.f32.gmra.mxu0 %v706
    %v775 = vpop.f32.mrf.mxu0
    %v776 = vadd.f32 %v747, %v775
    %777 = vmatmul.f32.gmra.mxu0 %v707
    %v778 = vpop.f32.mrf.mxu0
    %v779 = vadd.f32 %v747, %v778
    %780 = vmatmul.f32.gmra.mxu0 %v708
    %v781 = vpop.f32.mrf.mxu0
    %v782 = vadd.f32 %v747, %v781
    %783 = vmatmul.f32.gmra.mxu0 %v709
    %v784 = vpop.f32.mrf.mxu0
    %v785 = vadd.f32 %v747, %v784
    %786 = vmatmul.f32.gmra.mxu0 %v710
    %v787 = vpop.f32.mrf.mxu0
    %v788 = vadd.f32 %v747, %v787
    %789 = vmatmul.f32.gmra.mxu0 %v711
    %v790 = vpop.f32.mrf.mxu0
    %v791 = vadd.f32 %v747, %v790
    %792 = vmatmul.f32.gmra.mxu0 %v712
    %v793 = vpop.f32.mrf.mxu0
    %v794 = vadd.f32 %v747, %v793
    %795 = vmatmul.f32.gmra.mxu0 %v713
    %v796 = vpop.f32.mrf.mxu0
    %v797 = vadd.f32 %v747, %v796
    %798 = vmatmul.f32.gmra.mxu0 %v714
    %v799 = vpop.f32.mrf.mxu0
    %v800 = vadd.f32 %v747, %v799
    %801 = vmatmul.f32.gmra.mxu0 %v715
    %v802 = vpop.f32.mrf.mxu0
    %v803 = vadd.f32 %v747, %v802
    %804 = vmatmul.f32.gmra.mxu0 %v716
    %v805 = vpop.f32.mrf.mxu0
    %v806 = vadd.f32 %v747, %v805
    %807 = vmatmul.f32.gmra.mxu0 %v717
    %v808 = vpop.f32.mrf.mxu0
    %v809 = vadd.f32 %v747, %v808
    %810 = vmatmul.f32.gmra.mxu0 %v718
    %v811 = vpop.f32.mrf.mxu0
    %v812 = vadd.f32 %v747, %v811
    %813 = vmatmul.f32.gmra.mxu0 %v719
    %v814 = vpop.f32.mrf.mxu0
    %v815 = vadd.f32 %v747, %v814
    %816 = vmatmul.f32.gmra.mxu0 %v720
    %v817 = vpop.f32.mrf.mxu0
    %v818 = vadd.f32 %v747, %v817
    %819 = vmatmul.f32.gmra.mxu0 %v721
    %v820 = vpop.f32.mrf.mxu0
    %v821 = vadd.f32 %v747, %v820
    %822 = vmatmul.f32.gmra.mxu0 %v722
    %v823 = vpop.f32.mrf.mxu0
    %v824 = vadd.f32 %v747, %v823
    %825 = vmatmul.f32.gmra.mxu0 %v723
    %v826 = vpop.f32.mrf.mxu0
    %v827 = vadd.f32 %v747, %v826
    %828 = vmatmul.f32.gmra.mxu0 %v724
    %v829 = vpop.f32.mrf.mxu0
    %v830 = vadd.f32 %v747, %v829
    %831 = vmatmul.f32.gmra.mxu0 %v725
    %v832 = vpop.f32.mrf.mxu0
    %v833 = vadd.f32 %v747, %v832
    %834 = vmatmul.f32.gmra.mxu0 %v726
    %v835 = vpop.f32.mrf.mxu0
    %v836 = vadd.f32 %v747, %v835
    %837 = vmatmul.f32.gmra.mxu0 %v727
    %v838 = vpop.f32.mrf.mxu0
    %v839 = vadd.f32 %v747, %v838
    %840 = vmatmul.f32.gmra.mxu0 %v728
    %v841 = vpop.f32.mrf.mxu0
    %v842 = vadd.f32 %v747, %v841
    %843 = vdwg.mxu0
    %v844 = vmul.f32 %v767, 0.01
    %v845 = vmul.f32 %v770, 0.01
    %v846 = vmul.f32 %v773, 0.01
    %v847 = vmul.f32 %v776, 0.01
    %v848 = vmul.f32 %v779, 0.01
    %v849 = vmul.f32 %v782, 0.01
    %v850 = vmul.f32 %v785, 0.01
    %v851 = vmul.f32 %v788, 0.01
    %v852 = vmul.f32 %v791, 0.01
    %v853 = vmul.f32 %v794, 0.01
    %v854 = vmul.f32 %v797, 0.01
    %v855 = vmul.f32 %v800, 0.01
    %v856 = vmul.f32 %v803, 0.01
    %v857 = vmul.f32 %v806, 0.01
    %v858 = vmul.f32 %v809, 0.01
    %v859 = vmul.f32 %v812, 0.01
    %v860 = vmul.f32 %v815, 0.01
    %v861 = vmul.f32 %v818, 0.01
    %v862 = vmul.f32 %v821, 0.01
    %v863 = vmul.f32 %v824, 0.01
    %v864 = vmul.f32 %v827, 0.01
    %v865 = vmul.f32 %v830, 0.01
    %v866 = vmul.f32 %v833, 0.01
    %v867 = vmul.f32 %v836, 0.01
    %v868 = vmul.f32 %v839, 0.01
    %v869 = vmul.f32 %v842, 0.01
    %v870 = vmax.f32 %v767, %v844
    %v871 = vmax.f32 %v770, %v845
    %v872 = vmax.f32 %v773, %v846
    %v873 = vmax.f32 %v776, %v847
    %v874 = vmax.f32 %v779, %v848
    %v875 = vmax.f32 %v782, %v849
    %v876 = vmax.f32 %v785, %v850
    %v877 = vmax.f32 %v788, %v851
    %v878 = vmax.f32 %v791, %v852
    %v879 = vmax.f32 %v794, %v853
    %v880 = vmax.f32 %v797, %v854
    %v881 = vmax.f32 %v800, %v855
    %v882 = vmax.f32 %v803, %v856
    %v883 = vmax.f32 %v806, %v857
    %v884 = vmax.f32 %v809, %v858
    %v885 = vmax.f32 %v812, %v859
    %v886 = vmax.f32 %v815, %v860
    %v887 = vmax.f32 %v818, %v861
    %v888 = vmax.f32 %v821, %v862
    %v889 = vmax.f32 %v824, %v863
    %v890 = vmax.f32 %v827, %v864
    %v891 = vmax.f32 %v830, %v865
    %v892 = vmax.f32 %v833, %v866
    %v893 = vmax.f32 %v836, %v867
    %v894 = vmax.f32 %v839, %v868
    %v895 = vmax.f32 %v842, %v869
    %v896 = vld [vmem:[%s7] sm:$0xff]
    %v897 = vld [vmem:[%s7 + $0x8] sm:$0xff]
    %v898 = vld [vmem:[%s7 + $0x10] sm:$0xff]
    %v899 = vld [vmem:[%s7 + $0x18] sm:$0xff]
    %v900 = vld [vmem:[%s7 + $0x20] sm:$0xff]
    %v901 = vld [vmem:[%s7 + $0x28] sm:$0xff]
    %v902 = vld [vmem:[%s7 + $0x30] sm:$0xff]
    %v903 = vld [vmem:[%s7 + $0x38] sm:$0xff]
    %v904 = vld [vmem:[%s8] sm:$0x1]
    %v906 = vperm.slane %v904, 0
    %vm908 = vcmask 523264
    %v910 = vsel %vm908, %v870, 0
    %v913 = vsel %vm908, %v871, 0
    %v916 = vsel %vm908, %v872, 0
    %v919 = vsel %vm908, %v873, 0
    %v922 = vsel %vm908, %v874, 0
    %v925 = vsel %vm908, %v875, 0
    %v928 = vsel %vm908, %v876, 0
    %v931 = vsel %vm908, %v877, 0
    %v934 = vsel %vm908, %v878, 0
    %v937 = vsel %vm908, %v879, 0
    %v940 = vsel %vm908, %v880, 0
    %v943 = vsel %vm908, %v881, 0
    %v946 = vsel %vm908, %v882, 0
    %v949 = vsel %vm908, %v883, 0
    %v952 = vsel %vm908, %v884, 0
    %v955 = vsel %vm908, %v885, 0
    %v958 = vsel %vm908, %v886, 0
    %v961 = vsel %vm908, %v887, 0
    %v964 = vsel %vm908, %v888, 0
    %v967 = vsel %vm908, %v889, 0
    %v970 = vsel %vm908, %v890, 0
    %v973 = vsel %vm908, %v891, 0
    %v976 = vsel %vm908, %v892, 0
    %v979 = vsel %vm908, %v893, 0
    %v982 = vsel %vm908, %v894, 0
    %v985 = vsel %vm908, %v895, 0
    %987 = vmatpush.msra.mxu0 0.0
    %988 = vmatpush.msra.mxu0 0.0
    %989 = vmatpush.msra.mxu0 0.0
    %990 = vmatpush.msra.mxu0 0.0
    %991 = vmatpush.msra.mxu0 0.0
    %992 = vmatpush.msra.mxu0 0.0
    %993 = vmatpush.msra.mxu0 0.0
    %994 = vmatpush.msra.mxu0 0.0
    %995 = vmatpush.msra.mxu0 %v903
    %996 = vmatpush.msra.mxu0 %v902
    %997 = vmatpush.msra.mxu0 %v901
    %998 = vmatpush.msra.mxu0 %v900
    %999 = vmatpush.msra.mxu0 %v899
    %1000 = vmatpush.msra.mxu0 %v898
    %1001 = vmatpush.msra.mxu0 %v897
    %1002 = vmatpush.msra.mxu0 %v896
    %1003 = vmatmul.f32.gmra.mxu0 %v910
    %v1004 = vpop.f32.mrf.mxu0
    %v1005 = vadd.f32 %v906, %v1004
    %1006 = vmatmul.f32.gmra.mxu0 %v913
    %v1007 = vpop.f32.mrf.mxu0
    %v1008 = vadd.f32 %v906, %v1007
    %1009 = vmatmul.f32.gmra.mxu0 %v916
    %v1010 = vpop.f32.mrf.mxu0
    %v1011 = vadd.f32 %v906, %v1010
    %1012 = vmatmul.f32.gmra.mxu0 %v919
    %v1013 = vpop.f32.mrf.mxu0
    %v1014 = vadd.f32 %v906, %v1013
    %1015 = vmatmul.f32.gmra.mxu0 %v922
    %v1016 = vpop.f32.mrf.mxu0
    %v1017 = vadd.f32 %v906, %v1016
    %1018 = vmatmul.f32.gmra.mxu0 %v925
    %v1019 = vpop.f32.mrf.mxu0
    %v1020 = vadd.f32 %v906, %v1019
    %1021 = vmatmul.f32.gmra.mxu0 %v928
    %v1022 = vpop.f32.mrf.mxu0
    %v1023 = vadd.f32 %v906, %v1022
    %1024 = vmatmul.f32.gmra.mxu0 %v931
    %v1025 = vpop.f32.mrf.mxu0
    %v1026 = vadd.f32 %v906, %v1025
    %1027 = vmatmul.f32.gmra.mxu0 %v934
    %v1028 = vpop.f32.mrf.mxu0
    %v1029 = vadd.f32 %v906, %v1028
    %1030 = vmatmul.f32.gmra.mxu0 %v937
    %v1031 = vpop.f32.mrf.mxu0
    %v1032 = vadd.f32 %v906, %v1031
    %1033 = vmatmul.f32.gmra.mxu0 %v940
    %v1034 = vpop.f32.mrf.mxu0
    %v1035 = vadd.f32 %v906, %v1034
    %1036 = vmatmul.f32.gmra.mxu0 %v943
    %v1037 = vpop.f32.mrf.mxu0
    %v1038 = vadd.f32 %v906, %v1037
    %1039 = vmatmul.f32.gmra.mxu0 %v946
    %v1040 = vpop.f32.mrf.mxu0
    %v1041 = vadd.f32 %v906, %v1040
    %1042 = vmatmul.f32.gmra.mxu0 %v949
    %v1043 = vpop.f32.mrf.mxu0
    %v1044 = vadd.f32 %v906, %v1043
    %1045 = vmatmul.f32.gmra.mxu0 %v952
    %v1046 = vpop.f32.mrf.mxu0
    %v1047 = vadd.f32 %v906, %v1046
    %1048 = vmatmul.f32.gmra.mxu0 %v955
    %v1049 = vpop.f32.mrf.mxu0
    %v1050 = vadd.f32 %v906, %v1049
    %1051 = vmatmul.f32.gmra.mxu0 %v958
    %v1052 = vpop.f32.mrf.mxu0
    %v1053 = vadd.f32 %v906, %v1052
    %1054 = vmatmul.f32.gmra.mxu0 %v961
    %v1055 = vpop.f32.mrf.mxu0
    %v1056 = vadd.f32 %v906, %v1055
    %1057 = vmatmul.f32.gmra.mxu0 %v964
    %v1058 = vpop.f32.mrf.mxu0
    %v1059 = vadd.f32 %v906, %v1058
    %1060 = vmatmul.f32.gmra.mxu0 %v967
    %v1061 = vpop.f32.mrf.mxu0
    %v1062 = vadd.f32 %v906, %v1061
    %1063 = vmatmul.f32.gmra.mxu0 %v970
    %v1064 = vpop.f32.mrf.mxu0
    %v1065 = vadd.f32 %v906, %v1064
    %1066 = vmatmul.f32.gmra.mxu0 %v973
    %v1067 = vpop.f32.mrf.mxu0
    %v1068 = vadd.f32 %v906, %v1067
    %1069 = vmatmul.f32.gmra.mxu0 %v976
    %v1070 = vpop.f32.mrf.mxu0
    %v1071 = vadd.f32 %v906, %v1070
    %1072 = vmatmul.f32.gmra.mxu0 %v979
    %v1073 = vpop.f32.mrf.mxu0
    %v1074 = vadd.f32 %v906, %v1073
    %1075 = vmatmul.f32.gmra.mxu0 %v982
    %v1076 = vpop.f32.mrf.mxu0
    %v1077 = vadd.f32 %v906, %v1076
    %1078 = vmatmul.f32.gmra.mxu0 %v985
    %v1079 = vpop.f32.mrf.mxu0
    %v1080 = vadd.f32 %v906, %v1079
    %1081 = vdwg.mxu0
    %v1082 = vmul.f32 %v1005, 0.01
    %v1083 = vmul.f32 %v1008, 0.01
    %v1084 = vmul.f32 %v1011, 0.01
    %v1085 = vmul.f32 %v1014, 0.01
    %v1086 = vmul.f32 %v1017, 0.01
    %v1087 = vmul.f32 %v1020, 0.01
    %v1088 = vmul.f32 %v1023, 0.01
    %v1089 = vmul.f32 %v1026, 0.01
    %v1090 = vmul.f32 %v1029, 0.01
    %v1091 = vmul.f32 %v1032, 0.01
    %v1092 = vmul.f32 %v1035, 0.01
    %v1093 = vmul.f32 %v1038, 0.01
    %v1094 = vmul.f32 %v1041, 0.01
    %v1095 = vmul.f32 %v1044, 0.01
    %v1096 = vmul.f32 %v1047, 0.01
    %v1097 = vmul.f32 %v1050, 0.01
    %v1098 = vmul.f32 %v1053, 0.01
    %v1099 = vmul.f32 %v1056, 0.01
    %v1100 = vmul.f32 %v1059, 0.01
    %v1101 = vmul.f32 %v1062, 0.01
    %v1102 = vmul.f32 %v1065, 0.01
    %v1103 = vmul.f32 %v1068, 0.01
    %v1104 = vmul.f32 %v1071, 0.01
    %v1105 = vmul.f32 %v1074, 0.01
    %v1106 = vmul.f32 %v1077, 0.01
    %v1107 = vmul.f32 %v1080, 0.01
    %v1108 = vmax.f32 %v1005, %v1082
    %v1109 = vmax.f32 %v1008, %v1083
    %v1110 = vmax.f32 %v1011, %v1084
    %v1111 = vmax.f32 %v1014, %v1085
    %v1112 = vmax.f32 %v1017, %v1086
    %v1113 = vmax.f32 %v1020, %v1087
    %v1114 = vmax.f32 %v1023, %v1088
    %v1115 = vmax.f32 %v1026, %v1089
    %v1116 = vmax.f32 %v1029, %v1090
    %v1117 = vmax.f32 %v1032, %v1091
    %v1118 = vmax.f32 %v1035, %v1092
    %v1119 = vmax.f32 %v1038, %v1093
    %v1120 = vmax.f32 %v1041, %v1094
    %v1121 = vmax.f32 %v1044, %v1095
    %v1122 = vmax.f32 %v1047, %v1096
    %v1123 = vmax.f32 %v1050, %v1097
    %v1124 = vmax.f32 %v1053, %v1098
    %v1125 = vmax.f32 %v1056, %v1099
    %v1126 = vmax.f32 %v1059, %v1100
    %v1127 = vmax.f32 %v1062, %v1101
    %v1128 = vmax.f32 %v1065, %v1102
    %v1129 = vmax.f32 %v1068, %v1103
    %v1130 = vmax.f32 %v1071, %v1104
    %v1131 = vmax.f32 %v1074, %v1105
    %v1132 = vmax.f32 %v1077, %v1106
    %v1133 = vmax.f32 %v1080, %v1107
    %v1134 = vld [vmem:[%s9] sm:$0xff]
    %v1135 = vld [vmem:[%s9 + $0x8] sm:$0xff]
    %v1136 = vld [vmem:[%s9 + $0x10] sm:$0xff]
    %v1137 = vld [vmem:[%s9 + $0x18] sm:$0xff]
    %v1138 = vld [vmem:[%s10] sm:$0x1]
    %v1140 = vperm.slane %v1138, 0
    %v1143 = vsel %vm78, %v1108, 0
    %v1146 = vsel %vm78, %v1109, 0
    %v1149 = vsel %vm78, %v1110, 0
    %v1152 = vsel %vm78, %v1111, 0
    %v1155 = vsel %vm78, %v1112, 0
    %v1158 = vsel %vm78, %v1113, 0
    %v1161 = vsel %vm78, %v1114, 0
    %v1164 = vsel %vm78, %v1115, 0
    %v1167 = vsel %vm78, %v1116, 0
    %v1170 = vsel %vm78, %v1117, 0
    %v1173 = vsel %vm78, %v1118, 0
    %v1176 = vsel %vm78, %v1119, 0
    %v1179 = vsel %vm78, %v1120, 0
    %v1182 = vsel %vm78, %v1121, 0
    %v1185 = vsel %vm78, %v1122, 0
    %v1188 = vsel %vm78, %v1123, 0
    %v1191 = vsel %vm78, %v1124, 0
    %v1194 = vsel %vm78, %v1125, 0
    %v1197 = vsel %vm78, %v1126, 0
    %v1200 = vsel %vm78, %v1127, 0
    %v1203 = vsel %vm78, %v1128, 0
    %v1206 = vsel %vm78, %v1129, 0
    %v1209 = vsel %vm78, %v1130, 0
    %v1212 = vsel %vm78, %v1131, 0
    %v1215 = vsel %vm78, %v1132, 0
    %v1218 = vsel %vm78, %v1133, 0
    %1220 = vmatpush.msra.mxu0 0.0
    %1221 = vmatpush.msra.mxu0 0.0
    %1222 = vmatpush.msra.mxu0 0.0
    %1223 = vmatpush.msra.mxu0 0.0
    %1224 = vmatpush.msra.mxu0 0.0
    %1225 = vmatpush.msra.mxu0 0.0
    %1226 = vmatpush.msra.mxu0 0.0
    %1227 = vmatpush.msra.mxu0 0.0
    %1228 = vmatpush.msra.mxu0 0.0
    %1229 = vmatpush.msra.mxu0 0.0
    %1230 = vmatpush.msra.mxu0 0.0
    %1231 = vmatpush.msra.mxu0 0.0
    %1232 = vmatpush.msra.mxu0 %v1137
    %1233 = vmatpush.msra.mxu0 %v1136
    %1234 = vmatpush.msra.mxu0 %v1135
    %1235 = vmatpush.msra.mxu0 %v1134
    %1236 = vmatmul.f32.gmra.mxu0 %v1143
    %v1237 = vpop.f32.mrf.mxu0
    %v1238 = vadd.f32 %v1140, %v1237
    %1239 = vmatmul.f32.gmra.mxu0 %v1146
    %v1240 = vpop.f32.mrf.mxu0
    %v1241 = vadd.f32 %v1140, %v1240
    %1242 = vmatmul.f32.gmra.mxu0 %v1149
    %v1243 = vpop.f32.mrf.mxu0
    %v1244 = vadd.f32 %v1140, %v1243
    %1245 = vmatmul.f32.gmra.mxu0 %v1152
    %v1246 = vpop.f32.mrf.mxu0
    %v1247 = vadd.f32 %v1140, %v1246
    %1248 = vmatmul.f32.gmra.mxu0 %v1155
    %v1249 = vpop.f32.mrf.mxu0
    %v1250 = vadd.f32 %v1140, %v1249
    %1251 = vmatmul.f32.gmra.mxu0 %v1158
    %v1252 = vpop.f32.mrf.mxu0
    %v1253 = vadd.f32 %v1140, %v1252
    %1254 = vmatmul.f32.gmra.mxu0 %v1161
    %v1255 = vpop.f32.mrf.mxu0
    %v1256 = vadd.f32 %v1140, %v1255
    %1257 = vmatmul.f32.gmra.mxu0 %v1164
    %v1258 = vpop.f32.mrf.mxu0
    %v1259 = vadd.f32 %v1140, %v1258
    %1260 = vmatmul.f32.gmra.mxu0 %v1167
    %v1261 = vpop.f32.mrf.mxu0
    %v1262 = vadd.f32 %v1140, %v1261
    %1263 = vmatmul.f32.gmra.mxu0 %v1170
    %v1264 = vpop.f32.mrf.mxu0
    %v1265 = vadd.f32 %v1140, %v1264
    %1266 = vmatmul.f32.gmra.mxu0 %v1173
    %v1267 = vpop.f32.mrf.mxu0
    %v1268 = vadd.f32 %v1140, %v1267
    %1269 = vmatmul.f32.gmra.mxu0 %v1176
    %v1270 = vpop.f32.mrf.mxu0
    %v1271 = vadd.f32 %v1140, %v1270
    %1272 = vmatmul.f32.gmra.mxu0 %v1179
    %v1273 = vpop.f32.mrf.mxu0
    %v1274 = vadd.f32 %v1140, %v1273
    %1275 = vmatmul.f32.gmra.mxu0 %v1182
    %v1276 = vpop.f32.mrf.mxu0
    %v1277 = vadd.f32 %v1140, %v1276
    %1278 = vmatmul.f32.gmra.mxu0 %v1185
    %v1279 = vpop.f32.mrf.mxu0
    %v1280 = vadd.f32 %v1140, %v1279
    %1281 = vmatmul.f32.gmra.mxu0 %v1188
    %v1282 = vpop.f32.mrf.mxu0
    %v1283 = vadd.f32 %v1140, %v1282
    %1284 = vmatmul.f32.gmra.mxu0 %v1191
    %v1285 = vpop.f32.mrf.mxu0
    %v1286 = vadd.f32 %v1140, %v1285
    %1287 = vmatmul.f32.gmra.mxu0 %v1194
    %v1288 = vpop.f32.mrf.mxu0
    %v1289 = vadd.f32 %v1140, %v1288
    %1290 = vmatmul.f32.gmra.mxu0 %v1197
    %v1291 = vpop.f32.mrf.mxu0
    %v1292 = vadd.f32 %v1140, %v1291
    %1293 = vmatmul.f32.gmra.mxu0 %v1200
    %v1294 = vpop.f32.mrf.mxu0
    %v1295 = vadd.f32 %v1140, %v1294
    %1296 = vmatmul.f32.gmra.mxu0 %v1203
    %v1297 = vpop.f32.mrf.mxu0
    %v1298 = vadd.f32 %v1140, %v1297
    %1299 = vmatmul.f32.gmra.mxu0 %v1206
    %v1300 = vpop.f32.mrf.mxu0
    %v1301 = vadd.f32 %v1140, %v1300
    %1302 = vmatmul.f32.gmra.mxu0 %v1209
    %v1303 = vpop.f32.mrf.mxu0
    %v1304 = vadd.f32 %v1140, %v1303
    %1305 = vmatmul.f32.gmra.mxu0 %v1212
    %v1306 = vpop.f32.mrf.mxu0
    %v1307 = vadd.f32 %v1140, %v1306
    %1308 = vmatmul.f32.gmra.mxu0 %v1215
    %v1309 = vpop.f32.mrf.mxu0
    %v1310 = vadd.f32 %v1140, %v1309
    %1311 = vmatmul.f32.gmra.mxu0 %v1218
    %v1312 = vpop.f32.mrf.mxu0
    %v1313 = vadd.f32 %v1140, %v1312
    %1314 = vdwg.mxu0
    %v1315 = vlaneseq
    %v1316 = vand.u32 %v1315, 127
    %vm1317 = vcmp.lt.s32.totalorder %v1316, 2
    %v1318 = vxor.u32 %v1238, 2147483648
    %v1319 = vxor.u32 %v1241, 2147483648
    %v1320 = vxor.u32 %v1244, 2147483648
    %v1321 = vxor.u32 %v1247, 2147483648
    %v1322 = vxor.u32 %v1250, 2147483648
    %v1323 = vxor.u32 %v1253, 2147483648
    %v1324 = vxor.u32 %v1256, 2147483648
    %v1325 = vxor.u32 %v1259, 2147483648
    %v1326 = vxor.u32 %v1262, 2147483648
    %v1327 = vxor.u32 %v1265, 2147483648
    %v1328 = vxor.u32 %v1268, 2147483648
    %v1329 = vxor.u32 %v1271, 2147483648
    %v1330 = vxor.u32 %v1274, 2147483648
    %v1331 = vxor.u32 %v1277, 2147483648
    %v1332 = vxor.u32 %v1280, 2147483648
    %v1333 = vxor.u32 %v1283, 2147483648
    %v1334 = vxor.u32 %v1286, 2147483648
    %v1335 = vxor.u32 %v1289, 2147483648
    %v1336 = vxor.u32 %v1292, 2147483648
    %v1337 = vxor.u32 %v1295, 2147483648
    %v1338 = vxor.u32 %v1298, 2147483648
    %v1339 = vxor.u32 %v1301, 2147483648
    %v1340 = vxor.u32 %v1304, 2147483648
    %v1341 = vxor.u32 %v1307, 2147483648
    %v1342 = vxor.u32 %v1310, 2147483648
    %v1343 = vxor.u32 %v1313, 2147483648
    %v1344 = vmul.f32 %v1318, 1.442695
    %v1345 = vpow.pop %v1344
    %v1346 = vmul.f32 %v1319, 1.442695
    %v1347 = vpow.pop %v1346
    %v1348 = vmul.f32 %v1320, 1.442695
    %v1349 = vpow.pop %v1348
    %v1350 = vmul.f32 %v1321, 1.442695
    %v1351 = vpow.pop %v1350
    %v1352 = vmul.f32 %v1322, 1.442695
    %v1353 = vpow.pop %v1352
    %v1354 = vmul.f32 %v1323, 1.442695
    %v1355 = vpow.pop %v1354
    %v1356 = vmul.f32 %v1324, 1.442695
    %v1357 = vpow.pop %v1356
    %v1358 = vmul.f32 %v1325, 1.442695
    %v1359 = vpow.pop %v1358
    %v1360 = vmul.f32 %v1326, 1.442695
    %v1361 = vpow.pop %v1360
    %v1362 = vmul.f32 %v1327, 1.442695
    %v1363 = vpow.pop %v1362
    %v1364 = vmul.f32 %v1328, 1.442695
    %v1365 = vpow.pop %v1364
    %v1366 = vmul.f32 %v1329, 1.442695
    %v1367 = vpow.pop %v1366
    %v1368 = vmul.f32 %v1330, 1.442695
    %v1369 = vpow.pop %v1368
    %v1370 = vmul.f32 %v1331, 1.442695
    %v1371 = vpow.pop %v1370
    %v1372 = vmul.f32 %v1332, 1.442695
    %v1373 = vpow.pop %v1372
    %v1374 = vmul.f32 %v1333, 1.442695
    %v1375 = vpow.pop %v1374
    %v1376 = vmul.f32 %v1334, 1.442695
    %v1377 = vpow.pop %v1376
    %v1378 = vmul.f32 %v1335, 1.442695
    %v1379 = vpow.pop %v1378
    %v1380 = vmul.f32 %v1336, 1.442695
    %v1381 = vpow.pop %v1380
    %v1382 = vmul.f32 %v1337, 1.442695
    %v1383 = vpow.pop %v1382
    %v1384 = vmul.f32 %v1338, 1.442695
    %v1385 = vpow.pop %v1384
    %v1386 = vmul.f32 %v1339, 1.442695
    %v1387 = vpow.pop %v1386
    %v1388 = vmul.f32 %v1340, 1.442695
    %v1389 = vpow.pop %v1388
    %v1390 = vmul.f32 %v1341, 1.442695
    %v1391 = vpow.pop %v1390
    %v1392 = vmul.f32 %v1342, 1.442695
    %v1393 = vpow.pop %v1392
    %v1394 = vmul.f32 %v1343, 1.442695
    %v1395 = vpow.pop %v1394
    %v1396 = vadd.f32 %v1345, 1.0
    %v1397 = vadd.f32 %v1347, 1.0
    %v1398 = vadd.f32 %v1349, 1.0
    %v1399 = vadd.f32 %v1351, 1.0
    %v1400 = vadd.f32 %v1353, 1.0
    %v1401 = vadd.f32 %v1355, 1.0
    %v1402 = vadd.f32 %v1357, 1.0
    %v1403 = vadd.f32 %v1359, 1.0
    %v1404 = vadd.f32 %v1361, 1.0
    %v1405 = vadd.f32 %v1363, 1.0
    %v1406 = vadd.f32 %v1365, 1.0
    %v1407 = vadd.f32 %v1367, 1.0
    %v1408 = vadd.f32 %v1369, 1.0
    %v1409 = vadd.f32 %v1371, 1.0
    %v1410 = vadd.f32 %v1373, 1.0
    %v1411 = vadd.f32 %v1375, 1.0
    %v1412 = vadd.f32 %v1377, 1.0
    %v1413 = vadd.f32 %v1379, 1.0
    %v1414 = vadd.f32 %v1381, 1.0
    %v1415 = vadd.f32 %v1383, 1.0
    %v1416 = vadd.f32 %v1385, 1.0
    %v1417 = vadd.f32 %v1387, 1.0
    %v1418 = vadd.f32 %v1389, 1.0
    %v1419 = vadd.f32 %v1391, 1.0
    %v1420 = vadd.f32 %v1393, 1.0
    %v1421 = vadd.f32 %v1395, 1.0
    %v1422 = vrcp.pop %v1396
    %v1423 = vmul.f32 %v1396, %v1422
    %v1424 = vsub.f32 1.0, %v1423
    %v1425 = vmul.f32 %v1422, %v1424
    %v1426 = vadd.f32 %v1422, %v1425
    %vm1427 = vweird.f32 %v1396
    %vm1428 = vweird.f32 %v1422
    %vm1429 = vmor %vm1427, %vm1428
    %v1430 = vsel %vm1429, %v1422, %v1426
    %v1431 = vand.u32 2147483647, %v1396
    %vm1432 = vcmp.eq.f32.partialorder %v1431, 8.507059e+37
    %v1433 = vand.u32 %v1396, 2147483648
    %v1434 = vor.u32 1.1754944e-38, %v1433
    %v1435 = vsel %vm1432, %v1434, %v1430
    %v1436 = vmul.f32 1.0, %v1435
    %v1437 = vrcp.pop %v1397
    %v1438 = vmul.f32 %v1397, %v1437
    %v1439 = vsub.f32 1.0, %v1438
    %v1440 = vmul.f32 %v1437, %v1439
    %v1441 = vadd.f32 %v1437, %v1440
    %vm1442 = vweird.f32 %v1397
    %vm1443 = vweird.f32 %v1437
    %vm1444 = vmor %vm1442, %vm1443
    %v1445 = vsel %vm1444, %v1437, %v1441
    %v1446 = vand.u32 2147483647, %v1397
    %vm1447 = vcmp.eq.f32.partialorder %v1446, 8.507059e+37
    %v1448 = vand.u32 %v1397, 2147483648
    %v1449 = vor.u32 1.1754944e-38, %v1448
    %v1450 = vsel %vm1447, %v1449, %v1445
    %v1451 = vmul.f32 1.0, %v1450
    %v1452 = vrcp.pop %v1398
    %v1453 = vmul.f32 %v1398, %v1452
    %v1454 = vsub.f32 1.0, %v1453
    %v1455 = vmul.f32 %v1452, %v1454
    %v1456 = vadd.f32 %v1452, %v1455
    %vm1457 = vweird.f32 %v1398
    %vm1458 = vweird.f32 %v1452
    %vm1459 = vmor %vm1457, %vm1458
    %v1460 = vsel %vm1459, %v1452, %v1456
    %v1461 = vand.u32 2147483647, %v1398
    %vm1462 = vcmp.eq.f32.partialorder %v1461, 8.507059e+37
    %v1463 = vand.u32 %v1398, 2147483648
    %v1464 = vor.u32 1.1754944e-38, %v1463
    %v1465 = vsel %vm1462, %v1464, %v1460
    %v1466 = vmul.f32 1.0, %v1465
    %v1467 = vrcp.pop %v1399
    %v1468 = vmul.f32 %v1399, %v1467
    %v1469 = vsub.f32 1.0, %v1468
    %v1470 = vmul.f32 %v1467, %v1469
    %v1471 = vadd.f32 %v1467, %v1470
    %vm1472 = vweird.f32 %v1399
    %vm1473 = vweird.f32 %v1467
    %vm1474 = vmor %vm1472, %vm1473
    %v1475 = vsel %vm1474, %v1467, %v1471
    %v1476 = vand.u32 2147483647, %v1399
    %vm1477 = vcmp.eq.f32.partialorder %v1476, 8.507059e+37
    %v1478 = vand.u32 %v1399, 2147483648
    %v1479 = vor.u32 1.1754944e-38, %v1478
    %v1480 = vsel %vm1477, %v1479, %v1475
    %v1481 = vmul.f32 1.0, %v1480
    %v1482 = vrcp.pop %v1400
    %v1483 = vmul.f32 %v1400, %v1482
    %v1484 = vsub.f32 1.0, %v1483
    %v1485 = vmul.f32 %v1482, %v1484
    %v1486 = vadd.f32 %v1482, %v1485
    %vm1487 = vweird.f32 %v1400
    %vm1488 = vweird.f32 %v1482
    %vm1489 = vmor %vm1487, %vm1488
    %v1490 = vsel %vm1489, %v1482, %v1486
    %v1491 = vand.u32 2147483647, %v1400
    %vm1492 = vcmp.eq.f32.partialorder %v1491, 8.507059e+37
    %v1493 = vand.u32 %v1400, 2147483648
    %v1494 = vor.u32 1.1754944e-38, %v1493
    %v1495 = vsel %vm1492, %v1494, %v1490
    %v1496 = vmul.f32 1.0, %v1495
    %v1497 = vrcp.pop %v1401
    %v1498 = vmul.f32 %v1401, %v1497
    %v1499 = vsub.f32 1.0, %v1498
    %v1500 = vmul.f32 %v1497, %v1499
    %v1501 = vadd.f32 %v1497, %v1500
    %vm1502 = vweird.f32 %v1401
    %vm1503 = vweird.f32 %v1497
    %vm1504 = vmor %vm1502, %vm1503
    %v1505 = vsel %vm1504, %v1497, %v1501
    %v1506 = vand.u32 2147483647, %v1401
    %vm1507 = vcmp.eq.f32.partialorder %v1506, 8.507059e+37
    %v1508 = vand.u32 %v1401, 2147483648
    %v1509 = vor.u32 1.1754944e-38, %v1508
    %v1510 = vsel %vm1507, %v1509, %v1505
    %v1511 = vmul.f32 1.0, %v1510
    %v1512 = vrcp.pop %v1402
    %v1513 = vmul.f32 %v1402, %v1512
    %v1514 = vsub.f32 1.0, %v1513
    %v1515 = vmul.f32 %v1512, %v1514
    %v1516 = vadd.f32 %v1512, %v1515
    %vm1517 = vweird.f32 %v1402
    %vm1518 = vweird.f32 %v1512
    %vm1519 = vmor %vm1517, %vm1518
    %v1520 = vsel %vm1519, %v1512, %v1516
    %v1521 = vand.u32 2147483647, %v1402
    %vm1522 = vcmp.eq.f32.partialorder %v1521, 8.507059e+37
    %v1523 = vand.u32 %v1402, 2147483648
    %v1524 = vor.u32 1.1754944e-38, %v1523
    %v1525 = vsel %vm1522, %v1524, %v1520
    %v1526 = vmul.f32 1.0, %v1525
    %v1527 = vrcp.pop %v1403
    %v1528 = vmul.f32 %v1403, %v1527
    %v1529 = vsub.f32 1.0, %v1528
    %v1530 = vmul.f32 %v1527, %v1529
    %v1531 = vadd.f32 %v1527, %v1530
    %vm1532 = vweird.f32 %v1403
    %vm1533 = vweird.f32 %v1527
    %vm1534 = vmor %vm1532, %vm1533
    %v1535 = vsel %vm1534, %v1527, %v1531
    %v1536 = vand.u32 2147483647, %v1403
    %vm1537 = vcmp.eq.f32.partialorder %v1536, 8.507059e+37
    %v1538 = vand.u32 %v1403, 2147483648
    %v1539 = vor.u32 1.1754944e-38, %v1538
    %v1540 = vsel %vm1537, %v1539, %v1535
    %v1541 = vmul.f32 1.0, %v1540
    %v1542 = vrcp.pop %v1404
    %v1543 = vmul.f32 %v1404, %v1542
    %v1544 = vsub.f32 1.0, %v1543
    %v1545 = vmul.f32 %v1542, %v1544
    %v1546 = vadd.f32 %v1542, %v1545
    %vm1547 = vweird.f32 %v1404
    %vm1548 = vweird.f32 %v1542
    %vm1549 = vmor %vm1547, %vm1548
    %v1550 = vsel %vm1549, %v1542, %v1546
    %v1551 = vand.u32 2147483647, %v1404
    %vm1552 = vcmp.eq.f32.partialorder %v1551, 8.507059e+37
    %v1553 = vand.u32 %v1404, 2147483648
    %v1554 = vor.u32 1.1754944e-38, %v1553
    %v1555 = vsel %vm1552, %v1554, %v1550
    %v1556 = vmul.f32 1.0, %v1555
    %v1557 = vrcp.pop %v1405
    %v1558 = vmul.f32 %v1405, %v1557
    %v1559 = vsub.f32 1.0, %v1558
    %v1560 = vmul.f32 %v1557, %v1559
    %v1561 = vadd.f32 %v1557, %v1560
    %vm1562 = vweird.f32 %v1405
    %vm1563 = vweird.f32 %v1557
    %vm1564 = vmor %vm1562, %vm1563
    %v1565 = vsel %vm1564, %v1557, %v1561
    %v1566 = vand.u32 2147483647, %v1405
    %vm1567 = vcmp.eq.f32.partialorder %v1566, 8.507059e+37
    %v1568 = vand.u32 %v1405, 2147483648
    %v1569 = vor.u32 1.1754944e-38, %v1568
    %v1570 = vsel %vm1567, %v1569, %v1565
    %v1571 = vmul.f32 1.0, %v1570
    %v1572 = vrcp.pop %v1406
    %v1573 = vmul.f32 %v1406, %v1572
    %v1574 = vsub.f32 1.0, %v1573
    %v1575 = vmul.f32 %v1572, %v1574
    %v1576 = vadd.f32 %v1572, %v1575
    %vm1577 = vweird.f32 %v1406
    %vm1578 = vweird.f32 %v1572
    %vm1579 = vmor %vm1577, %vm1578
    %v1580 = vsel %vm1579, %v1572, %v1576
    %v1581 = vand.u32 2147483647, %v1406
    %vm1582 = vcmp.eq.f32.partialorder %v1581, 8.507059e+37
    %v1583 = vand.u32 %v1406, 2147483648
    %v1584 = vor.u32 1.1754944e-38, %v1583
    %v1585 = vsel %vm1582, %v1584, %v1580
    %v1586 = vmul.f32 1.0, %v1585
    %v1587 = vrcp.pop %v1407
    %v1588 = vmul.f32 %v1407, %v1587
    %v1589 = vsub.f32 1.0, %v1588
    %v1590 = vmul.f32 %v1587, %v1589
    %v1591 = vadd.f32 %v1587, %v1590
    %vm1592 = vweird.f32 %v1407
    %vm1593 = vweird.f32 %v1587
    %vm1594 = vmor %vm1592, %vm1593
    %v1595 = vsel %vm1594, %v1587, %v1591
    %v1596 = vand.u32 2147483647, %v1407
    %vm1597 = vcmp.eq.f32.partialorder %v1596, 8.507059e+37
    %v1598 = vand.u32 %v1407, 2147483648
    %v1599 = vor.u32 1.1754944e-38, %v1598
    %v1600 = vsel %vm1597, %v1599, %v1595
    %v1601 = vmul.f32 1.0, %v1600
    %v1602 = vrcp.pop %v1408
    %v1603 = vmul.f32 %v1408, %v1602
    %v1604 = vsub.f32 1.0, %v1603
    %v1605 = vmul.f32 %v1602, %v1604
    %v1606 = vadd.f32 %v1602, %v1605
    %vm1607 = vweird.f32 %v1408
    %vm1608 = vweird.f32 %v1602
    %vm1609 = vmor %vm1607, %vm1608
    %v1610 = vsel %vm1609, %v1602, %v1606
    %v1611 = vand.u32 2147483647, %v1408
    %vm1612 = vcmp.eq.f32.partialorder %v1611, 8.507059e+37
    %v1613 = vand.u32 %v1408, 2147483648
    %v1614 = vor.u32 1.1754944e-38, %v1613
    %v1615 = vsel %vm1612, %v1614, %v1610
    %v1616 = vmul.f32 1.0, %v1615
    %v1617 = vrcp.pop %v1409
    %v1618 = vmul.f32 %v1409, %v1617
    %v1619 = vsub.f32 1.0, %v1618
    %v1620 = vmul.f32 %v1617, %v1619
    %v1621 = vadd.f32 %v1617, %v1620
    %vm1622 = vweird.f32 %v1409
    %vm1623 = vweird.f32 %v1617
    %vm1624 = vmor %vm1622, %vm1623
    %v1625 = vsel %vm1624, %v1617, %v1621
    %v1626 = vand.u32 2147483647, %v1409
    %vm1627 = vcmp.eq.f32.partialorder %v1626, 8.507059e+37
    %v1628 = vand.u32 %v1409, 2147483648
    %v1629 = vor.u32 1.1754944e-38, %v1628
    %v1630 = vsel %vm1627, %v1629, %v1625
    %v1631 = vmul.f32 1.0, %v1630
    %v1632 = vrcp.pop %v1410
    %v1633 = vmul.f32 %v1410, %v1632
    %v1634 = vsub.f32 1.0, %v1633
    %v1635 = vmul.f32 %v1632, %v1634
    %v1636 = vadd.f32 %v1632, %v1635
    %vm1637 = vweird.f32 %v1410
    %vm1638 = vweird.f32 %v1632
    %vm1639 = vmor %vm1637, %vm1638
    %v1640 = vsel %vm1639, %v1632, %v1636
    %v1641 = vand.u32 2147483647, %v1410
    %vm1642 = vcmp.eq.f32.partialorder %v1641, 8.507059e+37
    %v1643 = vand.u32 %v1410, 2147483648
    %v1644 = vor.u32 1.1754944e-38, %v1643
    %v1645 = vsel %vm1642, %v1644, %v1640
    %v1646 = vmul.f32 1.0, %v1645
    %v1647 = vrcp.pop %v1411
    %v1648 = vmul.f32 %v1411, %v1647
    %v1649 = vsub.f32 1.0, %v1648
    %v1650 = vmul.f32 %v1647, %v1649
    %v1651 = vadd.f32 %v1647, %v1650
    %vm1652 = vweird.f32 %v1411
    %vm1653 = vweird.f32 %v1647
    %vm1654 = vmor %vm1652, %vm1653
    %v1655 = vsel %vm1654, %v1647, %v1651
    %v1656 = vand.u32 2147483647, %v1411
    %vm1657 = vcmp.eq.f32.partialorder %v1656, 8.507059e+37
    %v1658 = vand.u32 %v1411, 2147483648
    %v1659 = vor.u32 1.1754944e-38, %v1658
    %v1660 = vsel %vm1657, %v1659, %v1655
    %v1661 = vmul.f32 1.0, %v1660
    %v1662 = vrcp.pop %v1412
    %v1663 = vmul.f32 %v1412, %v1662
    %v1664 = vsub.f32 1.0, %v1663
    %v1665 = vmul.f32 %v1662, %v1664
    %v1666 = vadd.f32 %v1662, %v1665
    %vm1667 = vweird.f32 %v1412
    %vm1668 = vweird.f32 %v1662
    %vm1669 = vmor %vm1667, %vm1668
    %v1670 = vsel %vm1669, %v1662, %v1666
    %v1671 = vand.u32 2147483647, %v1412
    %vm1672 = vcmp.eq.f32.partialorder %v1671, 8.507059e+37
    %v1673 = vand.u32 %v1412, 2147483648
    %v1674 = vor.u32 1.1754944e-38, %v1673
    %v1675 = vsel %vm1672, %v1674, %v1670
    %v1676 = vmul.f32 1.0, %v1675
    %v1677 = vrcp.pop %v1413
    %v1678 = vmul.f32 %v1413, %v1677
    %v1679 = vsub.f32 1.0, %v1678
    %v1680 = vmul.f32 %v1677, %v1679
    %v1681 = vadd.f32 %v1677, %v1680
    %vm1682 = vweird.f32 %v1413
    %vm1683 = vweird.f32 %v1677
    %vm1684 = vmor %vm1682, %vm1683
    %v1685 = vsel %vm1684, %v1677, %v1681
    %v1686 = vand.u32 2147483647, %v1413
    %vm1687 = vcmp.eq.f32.partialorder %v1686, 8.507059e+37
    %v1688 = vand.u32 %v1413, 2147483648
    %v1689 = vor.u32 1.1754944e-38, %v1688
    %v1690 = vsel %vm1687, %v1689, %v1685
    %v1691 = vmul.f32 1.0, %v1690
    %v1692 = vrcp.pop %v1414
    %v1693 = vmul.f32 %v1414, %v1692
    %v1694 = vsub.f32 1.0, %v1693
    %v1695 = vmul.f32 %v1692, %v1694
    %v1696 = vadd.f32 %v1692, %v1695
    %vm1697 = vweird.f32 %v1414
    %vm1698 = vweird.f32 %v1692
    %vm1699 = vmor %vm1697, %vm1698
    %v1700 = vsel %vm1699, %v1692, %v1696
    %v1701 = vand.u32 2147483647, %v1414
    %vm1702 = vcmp.eq.f32.partialorder %v1701, 8.507059e+37
    %v1703 = vand.u32 %v1414, 2147483648
    %v1704 = vor.u32 1.1754944e-38, %v1703
    %v1705 = vsel %vm1702, %v1704, %v1700
    %v1706 = vmul.f32 1.0, %v1705
    %v1707 = vrcp.pop %v1415
    %v1708 = vmul.f32 %v1415, %v1707
    %v1709 = vsub.f32 1.0, %v1708
    %v1710 = vmul.f32 %v1707, %v1709
    %v1711 = vadd.f32 %v1707, %v1710
    %vm1712 = vweird.f32 %v1415
    %vm1713 = vweird.f32 %v1707
    %vm1714 = vmor %vm1712, %vm1713
    %v1715 = vsel %vm1714, %v1707, %v1711
    %v1716 = vand.u32 2147483647, %v1415
    %vm1717 = vcmp.eq.f32.partialorder %v1716, 8.507059e+37
    %v1718 = vand.u32 %v1415, 2147483648
    %v1719 = vor.u32 1.1754944e-38, %v1718
    %v1720 = vsel %vm1717, %v1719, %v1715
    %v1721 = vmul.f32 1.0, %v1720
    %v1722 = vrcp.pop %v1416
    %v1723 = vmul.f32 %v1416, %v1722
    %v1724 = vsub.f32 1.0, %v1723
    %v1725 = vmul.f32 %v1722, %v1724
    %v1726 = vadd.f32 %v1722, %v1725
    %vm1727 = vweird.f32 %v1416
    %vm1728 = vweird.f32 %v1722
    %vm1729 = vmor %vm1727, %vm1728
    %v1730 = vsel %vm1729, %v1722, %v1726
    %v1731 = vand.u32 2147483647, %v1416
    %vm1732 = vcmp.eq.f32.partialorder %v1731, 8.507059e+37
    %v1733 = vand.u32 %v1416, 2147483648
    %v1734 = vor.u32 1.1754944e-38, %v1733
    %v1735 = vsel %vm1732, %v1734, %v1730
    %v1736 = vmul.f32 1.0, %v1735
    %v1737 = vrcp.pop %v1417
    %v1738 = vmul.f32 %v1417, %v1737
    %v1739 = vsub.f32 1.0, %v1738
    %v1740 = vmul.f32 %v1737, %v1739
    %v1741 = vadd.f32 %v1737, %v1740
    %vm1742 = vweird.f32 %v1417
    %vm1743 = vweird.f32 %v1737
    %vm1744 = vmor %vm1742, %vm1743
    %v1745 = vsel %vm1744, %v1737, %v1741
    %v1746 = vand.u32 2147483647, %v1417
    %vm1747 = vcmp.eq.f32.partialorder %v1746, 8.507059e+37
    %v1748 = vand.u32 %v1417, 2147483648
    %v1749 = vor.u32 1.1754944e-38, %v1748
    %v1750 = vsel %vm1747, %v1749, %v1745
    %v1751 = vmul.f32 1.0, %v1750
    %v1752 = vrcp.pop %v1418
    %v1753 = vmul.f32 %v1418, %v1752
    %v1754 = vsub.f32 1.0, %v1753
    %v1755 = vmul.f32 %v1752, %v1754
    %v1756 = vadd.f32 %v1752, %v1755
    %vm1757 = vweird.f32 %v1418
    %vm1758 = vweird.f32 %v1752
    %vm1759 = vmor %vm1757, %vm1758
    %v1760 = vsel %vm1759, %v1752, %v1756
    %v1761 = vand.u32 2147483647, %v1418
    %vm1762 = vcmp.eq.f32.partialorder %v1761, 8.507059e+37
    %v1763 = vand.u32 %v1418, 2147483648
    %v1764 = vor.u32 1.1754944e-38, %v1763
    %v1765 = vsel %vm1762, %v1764, %v1760
    %v1766 = vmul.f32 1.0, %v1765
    %v1767 = vrcp.pop %v1419
    %v1768 = vmul.f32 %v1419, %v1767
    %v1769 = vsub.f32 1.0, %v1768
    %v1770 = vmul.f32 %v1767, %v1769
    %v1771 = vadd.f32 %v1767, %v1770
    %vm1772 = vweird.f32 %v1419
    %vm1773 = vweird.f32 %v1767
    %vm1774 = vmor %vm1772, %vm1773
    %v1775 = vsel %vm1774, %v1767, %v1771
    %v1776 = vand.u32 2147483647, %v1419
    %vm1777 = vcmp.eq.f32.partialorder %v1776, 8.507059e+37
    %v1778 = vand.u32 %v1419, 2147483648
    %v1779 = vor.u32 1.1754944e-38, %v1778
    %v1780 = vsel %vm1777, %v1779, %v1775
    %v1781 = vmul.f32 1.0, %v1780
    %v1782 = vrcp.pop %v1420
    %v1783 = vmul.f32 %v1420, %v1782
    %v1784 = vsub.f32 1.0, %v1783
    %v1785 = vmul.f32 %v1782, %v1784
    %v1786 = vadd.f32 %v1782, %v1785
    %vm1787 = vweird.f32 %v1420
    %vm1788 = vweird.f32 %v1782
    %vm1789 = vmor %vm1787, %vm1788
    %v1790 = vsel %vm1789, %v1782, %v1786
    %v1791 = vand.u32 2147483647, %v1420
    %vm1792 = vcmp.eq.f32.partialorder %v1791, 8.507059e+37
    %v1793 = vand.u32 %v1420, 2147483648
    %v1794 = vor.u32 1.1754944e-38, %v1793
    %v1795 = vsel %vm1792, %v1794, %v1790
    %v1796 = vmul.f32 1.0, %v1795
    %v1797 = vrcp.pop %v1421
    %v1798 = vmul.f32 %v1421, %v1797
    %v1799 = vsub.f32 1.0, %v1798
    %v1800 = vmul.f32 %v1797, %v1799
    %v1801 = vadd.f32 %v1797, %v1800
    %vm1802 = vweird.f32 %v1421
    %vm1803 = vweird.f32 %v1797
    %vm1804 = vmor %vm1802, %vm1803
    %v1805 = vsel %vm1804, %v1797, %v1801
    %v1806 = vand.u32 2147483647, %v1421
    %vm1807 = vcmp.eq.f32.partialorder %v1806, 8.507059e+37
    %v1808 = vand.u32 %v1421, 2147483648
    %v1809 = vor.u32 1.1754944e-38, %v1808
    %v1810 = vsel %vm1807, %v1809, %v1805
    %v1811 = vmul.f32 1.0, %v1810
    %v1812 = vsel %vm1317, %v1436, %v1238
    %v1813 = vsel %vm1317, %v1451, %v1241
    %v1814 = vsel %vm1317, %v1466, %v1244
    %v1815 = vsel %vm1317, %v1481, %v1247
    %v1816 = vsel %vm1317, %v1496, %v1250
    %v1817 = vsel %vm1317, %v1511, %v1253
    %v1818 = vsel %vm1317, %v1526, %v1256
    %v1819 = vsel %vm1317, %v1541, %v1259
    %v1820 = vsel %vm1317, %v1556, %v1262
    %v1821 = vsel %vm1317, %v1571, %v1265
    %v1822 = vsel %vm1317, %v1586, %v1268
    %v1823 = vsel %vm1317, %v1601, %v1271
    %v1824 = vsel %vm1317, %v1616, %v1274
    %v1825 = vsel %vm1317, %v1631, %v1277
    %v1826 = vsel %vm1317, %v1646, %v1280
    %v1827 = vsel %vm1317, %v1661, %v1283
    %v1828 = vsel %vm1317, %v1676, %v1286
    %v1829 = vsel %vm1317, %v1691, %v1289
    %v1830 = vsel %vm1317, %v1706, %v1292
    %v1831 = vsel %vm1317, %v1721, %v1295
    %v1832 = vsel %vm1317, %v1736, %v1298
    %v1833 = vsel %vm1317, %v1751, %v1301
    %v1834 = vsel %vm1317, %v1766, %v1304
    %v1835 = vsel %vm1317, %v1781, %v1307
    %v1836 = vsel %vm1317, %v1796, %v1310
    %v1837 = vsel %vm1317, %v1811, %v1313
    %vm1838 = vcmask 48128
    %1839 = vst.msk [vmem:[#allocation2] sm:$0xff] %vm1838, %v1812
    %1840 = vst.msk [vmem:[#allocation2 + $0x8] sm:$0xff] %vm1838, %v1813
    %1841 = vst.msk [vmem:[#allocation2 + $0x10] sm:$0xff] %vm1838, %v1814
    %1842 = vst.msk [vmem:[#allocation2 + $0x18] sm:$0xff] %vm1838, %v1815
    %1843 = vst.msk [vmem:[#allocation2 + $0x20] sm:$0xff] %vm1838, %v1816
    %1844 = vst.msk [vmem:[#allocation2 + $0x28] sm:$0xff] %vm1838, %v1817
    %1845 = vst.msk [vmem:[#allocation2 + $0x30] sm:$0xff] %vm1838, %v1818
    %1846 = vst.msk [vmem:[#allocation2 + $0x38] sm:$0xff] %vm1838, %v1819
    %1847 = vst.msk [vmem:[#allocation2 + $0x40] sm:$0xff] %vm1838, %v1820
    %1848 = vst.msk [vmem:[#allocation2 + $0x48] sm:$0xff] %vm1838, %v1821
    %1849 = vst.msk [vmem:[#allocation2 + $0x50] sm:$0xff] %vm1838, %v1822
    %1850 = vst.msk [vmem:[#allocation2 + $0x58] sm:$0xff] %vm1838, %v1823
    %1851 = vst.msk [vmem:[#allocation2 + $0x60] sm:$0xff] %vm1838, %v1824
    %1852 = vst.msk [vmem:[#allocation2 + $0x68] sm:$0xff] %vm1838, %v1825
    %1853 = vst.msk [vmem:[#allocation2 + $0x70] sm:$0xff] %vm1838, %v1826
    %1854 = vst.msk [vmem:[#allocation2 + $0x78] sm:$0xff] %vm1838, %v1827
    %1855 = vst.msk [vmem:[#allocation2 + $0x80] sm:$0xff] %vm1838, %v1828
    %1856 = vst.msk [vmem:[#allocation2 + $0x88] sm:$0xff] %vm1838, %v1829
    %1857 = vst.msk [vmem:[#allocation2 + $0x90] sm:$0xff] %vm1838, %v1830
    %1858 = vst.msk [vmem:[#allocation2 + $0x98] sm:$0xff] %vm1838, %v1831
    %1859 = vst.msk [vmem:[#allocation2 + $0xa0] sm:$0xff] %vm1838, %v1832
    %1860 = vst.msk [vmem:[#allocation2 + $0xa8] sm:$0xff] %vm1838, %v1833
    %1861 = vst.msk [vmem:[#allocation2 + $0xb0] sm:$0xff] %vm1838, %v1834
    %1862 = vst.msk [vmem:[#allocation2 + $0xb8] sm:$0xff] %vm1838, %v1835
    %1863 = vst.msk [vmem:[#allocation2 + $0xc0] sm:$0xff] %vm1838, %v1836
    %1864 = vst.msk [vmem:[#allocation2 + $0xc8] sm:$0xff] %vm1838, %v1837
    // Predicated region
    $region46: #{tpu_custom_call.1} parent=1 // pred_check
      _
    $region47: #{tpu_custom_call.1} parent=1 // pred_check_branch
      %1866 = sbr.rel (0) target = $region49
    $region48: #{tpu_custom_call.1} parent=1 // pred_region
      // Predicated region
      $region50: #{tpu_custom_call.1} parent=48 // pred_check
        _
      $region51: #{tpu_custom_call.1} parent=48 // pred_check_branch
        %1868 = sbr.rel (0) target = $region53
      $region52: #{tpu_custom_call.1} parent=48 // pred_region
        // Predicated region
        $region54: #{tpu_custom_call.1} parent=52 // pred_check
          _
        $region55: #{tpu_custom_call.1} parent=52 // pred_check_branch
          %1870 = sbr.rel (0) target = $region57
        $region56: #{tpu_custom_call.1} parent=52 // pred_region
          // Predicated region
          $region69: #{tpu_custom_call.1} parent=56 // pred_check
            _
          $region70: #{tpu_custom_call.1} parent=56 // pred_check_branch
            %1934 = sbr.rel (0) target = $region72
          $region71: #{tpu_custom_call.1} parent=56 // pred_region
            loop: start=0, step=1, limit=1
            $region73: #{tpu_custom_call.1} parent=71 // loop_pre_header
              _
            $region74: #{tpu_custom_call.1} parent=71 // loop_header
              %s1936 = sphi 0, %s1940
              %p1937 = scmp.ge.s32.totalorder %s1936, 1
              %s1941 = sphi [#allocation2], [#allocation2]
              %s1942 = sphi %s11, %s11
            $region75: #{tpu_custom_call.1} parent=71 // loop_header_branch
              %1939 = sbr.rel (%p1937) target = $region79
            $region76: #{tpu_custom_call.1} parent=71 // loop_body
              %v1943 = vld [vmem:[%s1941] sm:$0xff]
              %1944 = vst [vmem:[%s1942] sm:$0xff] %v1943
              %v1945 = vld [vmem:[%s1941 + $0x8] sm:$0xff]
              %1946 = vst [vmem:[%s1942 + $0x8] sm:$0xff] %v1945
              %v1947 = vld [vmem:[%s1941 + $0x10] sm:$0xff]
              %1948 = vst [vmem:[%s1942 + $0x10] sm:$0xff] %v1947
              %v1949 = vld [vmem:[%s1941 + $0x18] sm:$0xff]
              %1950 = vst [vmem:[%s1942 + $0x18] sm:$0xff] %v1949
              %v1951 = vld [vmem:[%s1941 + $0x20] sm:$0xff]
              %1952 = vst [vmem:[%s1942 + $0x20] sm:$0xff] %v1951
              %v1953 = vld [vmem:[%s1941 + $0x28] sm:$0xff]
              %1954 = vst [vmem:[%s1942 + $0x28] sm:$0xff] %v1953
              %v1955 = vld [vmem:[%s1941 + $0x30] sm:$0xff]
              %1956 = vst [vmem:[%s1942 + $0x30] sm:$0xff] %v1955
              %v1957 = vld [vmem:[%s1941 + $0x38] sm:$0xff]
              %1958 = vst [vmem:[%s1942 + $0x38] sm:$0xff] %v1957
              %v1959 = vld [vmem:[%s1941 + $0x40] sm:$0xff]
              %1960 = vst [vmem:[%s1942 + $0x40] sm:$0xff] %v1959
              %v1961 = vld [vmem:[%s1941 + $0x48] sm:$0xff]
              %1962 = vst [vmem:[%s1942 + $0x48] sm:$0xff] %v1961
              %v1963 = vld [vmem:[%s1941 + $0x50] sm:$0xff]
              %1964 = vst [vmem:[%s1942 + $0x50] sm:$0xff] %v1963
              %v1965 = vld [vmem:[%s1941 + $0x58] sm:$0xff]
              %1966 = vst [vmem:[%s1942 + $0x58] sm:$0xff] %v1965
              %v1967 = vld [vmem:[%s1941 + $0x60] sm:$0xff]
              %1968 = vst [vmem:[%s1942 + $0x60] sm:$0xff] %v1967
              %v1969 = vld [vmem:[%s1941 + $0x68] sm:$0xff]
              %1970 = vst [vmem:[%s1942 + $0x68] sm:$0xff] %v1969
              %v1971 = vld [vmem:[%s1941 + $0x70] sm:$0xff]
              %1972 = vst [vmem:[%s1942 + $0x70] sm:$0xff] %v1971
              %v1973 = vld [vmem:[%s1941 + $0x78] sm:$0xff]
              %1974 = vst [vmem:[%s1942 + $0x78] sm:$0xff] %v1973
              %v1975 = vld [vmem:[%s1941 + $0x80] sm:$0xff]
              %1976 = vst [vmem:[%s1942 + $0x80] sm:$0xff] %v1975
              %v1977 = vld [vmem:[%s1941 + $0x88] sm:$0xff]
              %1978 = vst [vmem:[%s1942 + $0x88] sm:$0xff] %v1977
              %v1979 = vld [vmem:[%s1941 + $0x90] sm:$0xff]
              %1980 = vst [vmem:[%s1942 + $0x90] sm:$0xff] %v1979
              %v1981 = vld [vmem:[%s1941 + $0x98] sm:$0xff]
              %1982 = vst [vmem:[%s1942 + $0x98] sm:$0xff] %v1981
              %v1983 = vld [vmem:[%s1941 + $0xa0] sm:$0xff]
              %1984 = vst [vmem:[%s1942 + $0xa0] sm:$0xff] %v1983
              %v1985 = vld [vmem:[%s1941 + $0xa8] sm:$0xff]
              %1986 = vst [vmem:[%s1942 + $0xa8] sm:$0xff] %v1985
              %v1987 = vld [vmem:[%s1941 + $0xb0] sm:$0xff]
              %1988 = vst [vmem:[%s1942 + $0xb0] sm:$0xff] %v1987
              %v1989 = vld [vmem:[%s1941 + $0xb8] sm:$0xff]
              %1990 = vst [vmem:[%s1942 + $0xb8] sm:$0xff] %v1989
              %v1991 = vld [vmem:[%s1941 + $0xc0] sm:$0xff]
              %1992 = vst [vmem:[%s1942 + $0xc0] sm:$0xff] %v1991
            $region77: #{tpu_custom_call.1} parent=71 // loop_footer
              %s1940 = sadd.s32 1, %s1936
            $region78: #{tpu_custom_call.1} parent=71 // loop_footer_branch
              %1935 = sbr.rel target = $region74
            $region79: #{tpu_custom_call.1} parent=71 // loop_exit
              _
          $region72: #{tpu_custom_call.1} parent=56 // pred_fallthru
            _
          // Predicated region
          $region80: #{tpu_custom_call.1} parent=56 // pred_check
            _
          $region81: #{tpu_custom_call.1} parent=56 // pred_check_branch
            %1994 = sbr.rel target = $region83
          $region82: #{tpu_custom_call.1} parent=56 // pred_region
            _
          $region83: #{tpu_custom_call.1} parent=56 // pred_fallthru
            _
        $region57: #{tpu_custom_call.1} parent=52 // pred_fallthru
          _
        // Predicated region
        $region58: #{tpu_custom_call.1} parent=52 // pred_check
          _
        $region59: #{tpu_custom_call.1} parent=52 // pred_check_branch
          %1872 = sbr.rel target = $region61
        $region60: #{tpu_custom_call.1} parent=52 // pred_region
          %s1874 = ssub.s32 256, 1
          loop: start=0, step=1, limit=1
          $region62: #{tpu_custom_call.1} parent=60 // loop_pre_header
            _
          $region63: #{tpu_custom_call.1} parent=60 // loop_header
            %s1876 = sphi 0, %s1880
            %p1877 = scmp.ge.s32.totalorder %s1876, 1
            %s1881 = sphi [#allocation2], [#allocation2]
            %s1882 = sphi %s11, %s11
          $region64: #{tpu_custom_call.1} parent=60 // loop_header_branch
            %1879 = sbr.rel (%p1877) target = $region68
          $region65: #{tpu_custom_call.1} parent=60 // loop_body
            %v1883 = vld [vmem:[%s1881] sm:%s1874]
            %1884 = vst [vmem:[%s1882] sm:%s1874] %v1883
            %v1885 = vld [vmem:[%s1881 + $0x8] sm:%s1874]
            %1886 = vst [vmem:[%s1882 + $0x8] sm:%s1874] %v1885
            %v1887 = vld [vmem:[%s1881 + $0x10] sm:%s1874]
            %1888 = vst [vmem:[%s1882 + $0x10] sm:%s1874] %v1887
            %v1889 = vld [vmem:[%s1881 + $0x18] sm:%s1874]
            %1890 = vst [vmem:[%s1882 + $0x18] sm:%s1874] %v1889
            %v1891 = vld [vmem:[%s1881 + $0x20] sm:%s1874]
            %1892 = vst [vmem:[%s1882 + $0x20] sm:%s1874] %v1891
            %v1893 = vld [vmem:[%s1881 + $0x28] sm:%s1874]
            %1894 = vst [vmem:[%s1882 + $0x28] sm:%s1874] %v1893
            %v1895 = vld [vmem:[%s1881 + $0x30] sm:%s1874]
            %1896 = vst [vmem:[%s1882 + $0x30] sm:%s1874] %v1895
            %v1897 = vld [vmem:[%s1881 + $0x38] sm:%s1874]
            %1898 = vst [vmem:[%s1882 + $0x38] sm:%s1874] %v1897
            %v1899 = vld [vmem:[%s1881 + $0x40] sm:%s1874]
            %1900 = vst [vmem:[%s1882 + $0x40] sm:%s1874] %v1899
            %v1901 = vld [vmem:[%s1881 + $0x48] sm:%s1874]
            %1902 = vst [vmem:[%s1882 + $0x48] sm:%s1874] %v1901
            %v1903 = vld [vmem:[%s1881 + $0x50] sm:%s1874]
            %1904 = vst [vmem:[%s1882 + $0x50] sm:%s1874] %v1903
            %v1905 = vld [vmem:[%s1881 + $0x58] sm:%s1874]
            %1906 = vst [vmem:[%s1882 + $0x58] sm:%s1874] %v1905
            %v1907 = vld [vmem:[%s1881 + $0x60] sm:%s1874]
            %1908 = vst [vmem:[%s1882 + $0x60] sm:%s1874] %v1907
            %v1909 = vld [vmem:[%s1881 + $0x68] sm:%s1874]
            %1910 = vst [vmem:[%s1882 + $0x68] sm:%s1874] %v1909
            %v1911 = vld [vmem:[%s1881 + $0x70] sm:%s1874]
            %1912 = vst [vmem:[%s1882 + $0x70] sm:%s1874] %v1911
            %v1913 = vld [vmem:[%s1881 + $0x78] sm:%s1874]
            %1914 = vst [vmem:[%s1882 + $0x78] sm:%s1874] %v1913
            %v1915 = vld [vmem:[%s1881 + $0x80] sm:%s1874]
            %1916 = vst [vmem:[%s1882 + $0x80] sm:%s1874] %v1915
            %v1917 = vld [vmem:[%s1881 + $0x88] sm:%s1874]
            %1918 = vst [vmem:[%s1882 + $0x88] sm:%s1874] %v1917
            %v1919 = vld [vmem:[%s1881 + $0x90] sm:%s1874]
            %1920 = vst [vmem:[%s1882 + $0x90] sm:%s1874] %v1919
            %v1921 = vld [vmem:[%s1881 + $0x98] sm:%s1874]
            %1922 = vst [vmem:[%s1882 + $0x98] sm:%s1874] %v1921
            %v1923 = vld [vmem:[%s1881 + $0xa0] sm:%s1874]
            %1924 = vst [vmem:[%s1882 + $0xa0] sm:%s1874] %v1923
            %v1925 = vld [vmem:[%s1881 + $0xa8] sm:%s1874]
            %1926 = vst [vmem:[%s1882 + $0xa8] sm:%s1874] %v1925
            %v1927 = vld [vmem:[%s1881 + $0xb0] sm:%s1874]
            %1928 = vst [vmem:[%s1882 + $0xb0] sm:%s1874] %v1927
            %v1929 = vld [vmem:[%s1881 + $0xb8] sm:%s1874]
            %1930 = vst [vmem:[%s1882 + $0xb8] sm:%s1874] %v1929
            %v1931 = vld [vmem:[%s1881 + $0xc0] sm:%s1874]
            %1932 = vst [vmem:[%s1882 + $0xc0] sm:%s1874] %v1931
          $region66: #{tpu_custom_call.1} parent=60 // loop_footer
            %s1880 = sadd.s32 1, %s1876
          $region67: #{tpu_custom_call.1} parent=60 // loop_footer_branch
            %1875 = sbr.rel target = $region63
          $region68: #{tpu_custom_call.1} parent=60 // loop_exit
            _
        $region61: #{tpu_custom_call.1} parent=52 // pred_fallthru
          _
      $region53: #{tpu_custom_call.1} parent=48 // pred_fallthru
        _
      %1995 = vnop
    $region49: #{tpu_custom_call.1} parent=1 // pred_fallthru
      _
    // Predicated region
    $region84: #{tpu_custom_call.1} parent=1 // pred_check
      _
    $region85: #{tpu_custom_call.1} parent=1 // pred_check_branch
      %1997 = sbr.rel (0) target = $region87
    $region86: #{tpu_custom_call.1} parent=1 // pred_region
      _
    $region87: #{tpu_custom_call.1} parent=1 // pred_fallthru
      _

// kernel: tpu_custom_call.1
$region0: #{tpu_custom_call.1}
  #allocation0 [shape = 'u32[]', space=smem, size = 0x4, offset = 0x4, fixed_abs, tag = 'smem constant byte address 0x4 - core index']
  #allocation1 [shape = 'u32[72,128]{1,0:T(1,128)}', space=vmem, size = 0x9000, scoped, tag = 'internal scratch']
  %s0 = inlined_call_operand.vmem [shape: f32[200,32], index: 0, kind: input, shape index: {}]
  %s1 = inlined_call_operand.vmem [shape: f32[32,256], index: 1, kind: input, shape index: {}]
  %s2 = inlined_call_operand.vmem [shape: f32[1,256], index: 2, kind: input, shape index: {}]
  %s3 = inlined_call_operand.vmem [shape: f32[256,128], index: 3, kind: input, shape index: {}]
  %s4 = inlined_call_operand.vmem [shape: f32[1,128], index: 4, kind: input, shape index: {}]
  %s5 = inlined_call_operand.vmem [shape: f32[128,64], index: 5, kind: input, shape index: {}]
  %s6 = inlined_call_operand.vmem [shape: f32[1,64], index: 6, kind: input, shape index: {}]
  %s7 = inlined_call_operand.vmem [shape: f32[64,32], index: 7, kind: input, shape index: {}]
  %s8 = inlined_call_operand.vmem [shape: f32[1,32], index: 8, kind: input, shape index: {}]
  %s9 = inlined_call_operand.vmem [shape: f32[32,6], index: 9, kind: input, shape index: {}]
  %s10 = inlined_call_operand.vmem [shape: f32[1,6], index: 10, kind: input, shape index: {}]
  %s11 = inlined_call_operand.vmem [shape: f32[200,6], index: 11, kind: output, shape index: {}]
  %s12 = sld [smem:[#allocation0]]
  $region88: #{tpu_custom_call.1} parent=0
    _
  %s14 = ssub.s32 1, %s12
  %s15 = scalar_select 0, %s14, %s12
  $region1: #{tpu_custom_call.1} parent=0
    #allocation2 [shape = 'u8[106496]{0}', space=vmem, size = 0x1a000, scoped, tag = 'output window, operand 0, single buffered']
    // Predicated region
    $region2: #{tpu_custom_call.1} parent=1 // pred_check
      _
    $region3: #{tpu_custom_call.1} parent=1 // pred_check_branch
      %17 = sbr.rel (0) target = $region5
    $region4: #{tpu_custom_call.1} parent=1 // pred_region
      _
    $region5: #{tpu_custom_call.1} parent=1 // pred_fallthru
      _
    // Predicated region
    $region6: #{tpu_custom_call.1} parent=1 // pred_check
      _
    $region7: #{tpu_custom_call.1} parent=1 // pred_check_branch
      %19 = sbr.rel (0) target = $region9
    $region8: #{tpu_custom_call.1} parent=1 // pred_region
      _
    $region9: #{tpu_custom_call.1} parent=1 // pred_fallthru
      _
    // Predicated region
    $region10: #{tpu_custom_call.1} parent=1 // pred_check
      _
    $region11: #{tpu_custom_call.1} parent=1 // pred_check_branch
      %21 = sbr.rel (0) target = $region13
    $region12: #{tpu_custom_call.1} parent=1 // pred_region
      _
    $region13: #{tpu_custom_call.1} parent=1 // pred_fallthru
      _
    // Predicated region
    $region14: #{tpu_custom_call.1} parent=1 // pred_check
      _
    $region15: #{tpu_custom_call.1} parent=1 // pred_check_branch
      %23 = sbr.rel (0) target = $region17
    $region16: #{tpu_custom_call.1} parent=1 // pred_region
      _
    $region17: #{tpu_custom_call.1} parent=1 // pred_fallthru
      _
    // Predicated region
    $region18: #{tpu_custom_call.1} parent=1 // pred_check
      _
    $region19: #{tpu_custom_call.1} parent=1 // pred_check_branch
      %25 = sbr.rel (0) target = $region21
    $region20: #{tpu_custom_call.1} parent=1 // pred_region
      _
    $region21: #{tpu_custom_call.1} parent=1 // pred_fallthru
      _
    // Predicated region
    $region22: #{tpu_custom_call.1} parent=1 // pred_check
      _
    $region23: #{tpu_custom_call.1} parent=1 // pred_check_branch
      %27 = sbr.rel (0) target = $region25
    $region24: #{tpu_custom_call.1} parent=1 // pred_region
      _
    $region25: #{tpu_custom_call.1} parent=1 // pred_fallthru
      _
    // Predicated region
    $region26: #{tpu_custom_call.1} parent=1 // pred_check
      _
    $region27: #{tpu_custom_call.1} parent=1 // pred_check_branch
      %29 = sbr.rel (0) target = $region29
    $region28: #{tpu_custom_call.1} parent=1 // pred_region
      _
    $region29: #{tpu_custom_call.1} parent=1 // pred_fallthru
      _
    // Predicated region
    $region30: #{tpu_custom_call.1} parent=1 // pred_check
      _
    $region31: #{tpu_custom_call.1} parent=1 // pred_check_branch
      %31 = sbr.rel (0) target = $region33
    $region32: #{tpu_custom_call.1} parent=1 // pred_region
      _
    $region33: #{tpu_custom_call.1} parent=1 // pred_fallthru
      _
    // Predicated region
    $region34: #{tpu_custom_call.1} parent=1 // pred_check
      _
    $region35: #{tpu_custom_call.1} parent=1 // pred_check_branch
      %33 = sbr.rel (0) target = $region37
    $region36: #{tpu_custom_call.1} parent=1 // pred_region
      _
    $region37: #{tpu_custom_call.1} parent=1 // pred_fallthru
      _
    // Predicated region
    $region38: #{tpu_custom_call.1} parent=1 // pred_check
      _
    $region39: #{tpu_custom_call.1} parent=1 // pred_check_branch
      %35 = sbr.rel (0) target = $region41
    $region40: #{tpu_custom_call.1} parent=1 // pred_region
      _
    $region41: #{tpu_custom_call.1} parent=1 // pred_fallthru
      _
    // Predicated region
    $region42: #{tpu_custom_call.1} parent=1 // pred_check
      _
    $region43: #{tpu_custom_call.1} parent=1 // pred_check_branch
      %37 = sbr.rel (0) target = $region45
    $region44: #{tpu_custom_call.1} parent=1 // pred_region
      _
    $region45: #{tpu_custom_call.1} parent=1 // pred_fallthru
      _
    %v38 = vld [vmem:[%s0] sm:$0xff]
    %v39 = vld [vmem:[%s0 + $0x8] sm:$0xff]
    %v40 = vld [vmem:[%s0 + $0x10] sm:$0xff]
    %v41 = vld [vmem:[%s0 + $0x18] sm:$0xff]
    %v42 = vld [vmem:[%s0 + $0x20] sm:$0xff]
    %v43 = vld [vmem:[%s0 + $0x28] sm:$0xff]
    %v44 = vld [vmem:[%s0 + $0x30] sm:$0xff]
    %v45 = vld [vmem:[%s0 + $0x38] sm:$0xff]
    %v46 = vld [vmem:[%s0 + $0x40] sm:$0xff]
    %v47 = vld [vmem:[%s0 + $0x48] sm:$0xff]
    %v48 = vld [vmem:[%s0 + $0x50] sm:$0xff]
    %v49 = vld [vmem:[%s0 + $0x58] sm:$0xff]
    %v50 = vld [vmem:[%s0 + $0x60] sm:$0xff]
    %v51 = vld [vmem:[%s0 + $0x68] sm:$0xff]
    %v52 = vld [vmem:[%s0 + $0x70] sm:$0xff]
    %v53 = vld [vmem:[%s0 + $0x78] sm:$0xff]
    %v54 = vld [vmem:[%s0 + $0x80] sm:$0xff]
    %v55 = vld [vmem:[%s0 + $0x88] sm:$0xff]
    %v56 = vld [vmem:[%s0 + $0x90] sm:$0xff]
    %v57 = vld [vmem:[%s0 + $0x98] sm:$0xff]
    %v58 = vld [vmem:[%s0 + $0xa0] sm:$0xff]
    %v59 = vld [vmem:[%s0 + $0xa8] sm:$0xff]
    %v60 = vld [vmem:[%s0 + $0xb0] sm:$0xff]
    %v61 = vld [vmem:[%s0 + $0xb8] sm:$0xff]
    %v62 = vld [vmem:[%s0 + $0xc0] sm:$0xff]
    %v63 = vld [vmem:[%s0 + $0xc8] sm:$0xff]
    %v64 = vld [vmem:[%s1] sm:$0xff]
    %v65 = vld [vmem:[%s1 + $0x8] sm:$0xff]
    %v66 = vld [vmem:[%s1 + $0x10] sm:$0xff]
    %v67 = vld [vmem:[%s1 + $0x18] sm:$0xff]
    %v68 = vld [vmem:[%s1 + $0x20] sm:$0xff]
    %v69 = vld [vmem:[%s1 + $0x28] sm:$0xff]
    %v70 = vld [vmem:[%s1 + $0x30] sm:$0xff]
    %v71 = vld [vmem:[%s1 + $0x38] sm:$0xff]
    %v72 = vld [vmem:[%s2] sm:$0x3]
    %v74 = vperm.slane %v72, 0
    %v75 = vperm.slane %v72, 1
    %vm78 = vcmask 261120
    %v80 = vsel %vm78, %v38, 0
    %v83 = vsel %vm78, %v39, 0
    %v86 = vsel %vm78, %v40, 0
    %v89 = vsel %vm78, %v41, 0
    %v92 = vsel %vm78, %v42, 0
    %v95 = vsel %vm78, %v43, 0
    %v98 = vsel %vm78, %v44, 0
    %v101 = vsel %vm78, %v45, 0
    %v104 = vsel %vm78, %v46, 0
    %v107 = vsel %vm78, %v47, 0
    %v110 = vsel %vm78, %v48, 0
    %v113 = vsel %vm78, %v49, 0
    %v116 = vsel %vm78, %v50, 0
    %v119 = vsel %vm78, %v51, 0
    %v122 = vsel %vm78, %v52, 0
    %v125 = vsel %vm78, %v53, 0
    %v128 = vsel %vm78, %v54, 0
    %v131 = vsel %vm78, %v55, 0
    %v134 = vsel %vm78, %v56, 0
    %v137 = vsel %vm78, %v57, 0
    %v140 = vsel %vm78, %v58, 0
    %v143 = vsel %vm78, %v59, 0
    %v146 = vsel %vm78, %v60, 0
    %v149 = vsel %vm78, %v61, 0
    %v152 = vsel %vm78, %v62, 0
    %v155 = vsel %vm78, %v63, 0
    %157 = vmatpush.msra.mxu0 0.0
    %158 = vmatpush.msra.mxu0 0.0
    %159 = vmatpush.msra.mxu0 0.0
    %160 = vmatpush.msra.mxu0 0.0
    %161 = vmatpush.msra.mxu0 0.0
    %162 = vmatpush.msra.mxu0 0.0
    %163 = vmatpush.msra.mxu0 0.0
    %164 = vmatpush.msra.mxu0 0.0
    %165 = vmatpush.msra.mxu0 0.0
    %166 = vmatpush.msra.mxu0 0.0
    %167 = vmatpush.msra.mxu0 0.0
    %168 = vmatpush.msra.mxu0 0.0
    %169 = vmatpush.msra.mxu0 %v70
    %170 = vmatpush.msra.mxu0 %v68
    %171 = vmatpush.msra.mxu0 %v66
    %172 = vmatpush.msra.mxu0 %v64
    %173 = vmatmul.f32.gmra.mxu0 %v80
    %v174 = vpop.f32.mrf.mxu0
    %v175 = vadd.f32 %v74, %v174
    %176 = vmatmul.f32.gmra.mxu0 %v83
    %v177 = vpop.f32.mrf.mxu0
    %v178 = vadd.f32 %v74, %v177
    %179 = vmatmul.f32.gmra.mxu0 %v86
    %v180 = vpop.f32.mrf.mxu0
    %v181 = vadd.f32 %v74, %v180
    %182 = vmatmul.f32.gmra.mxu0 %v89
    %v183 = vpop.f32.mrf.mxu0
    %v184 = vadd.f32 %v74, %v183
    %185 = vmatmul.f32.gmra.mxu0 %v92
    %v186 = vpop.f32.mrf.mxu0
    %v187 = vadd.f32 %v74, %v186
    %188 = vmatmul.f32.gmra.mxu0 %v95
    %v189 = vpop.f32.mrf.mxu0
    %v190 = vadd.f32 %v74, %v189
    %191 = vmatmul.f32.gmra.mxu0 %v98
    %v192 = vpop.f32.mrf.mxu0
    %v193 = vadd.f32 %v74, %v192
    %194 = vmatmul.f32.gmra.mxu0 %v101
    %v195 = vpop.f32.mrf.mxu0
    %v196 = vadd.f32 %v74, %v195
    %197 = vmatmul.f32.gmra.mxu0 %v104
    %v198 = vpop.f32.mrf.mxu0
    %v199 = vadd.f32 %v74, %v198
    %200 = vmatmul.f32.gmra.mxu0 %v107
    %v201 = vpop.f32.mrf.mxu0
    %v202 = vadd.f32 %v74, %v201
    %203 = vmatmul.f32.gmra.mxu0 %v110
    %v204 = vpop.f32.mrf.mxu0
    %v205 = vadd.f32 %v74, %v204
    %206 = vmatmul.f32.gmra.mxu0 %v113
    %v207 = vpop.f32.mrf.mxu0
    %v208 = vadd.f32 %v74, %v207
    %209 = vmatmul.f32.gmra.mxu0 %v116
    %v210 = vpop.f32.mrf.mxu0
    %v211 = vadd.f32 %v74, %v210
    %212 = vmatmul.f32.gmra.mxu0 %v119
    %v213 = vpop.f32.mrf.mxu0
    %v214 = vadd.f32 %v74, %v213
    %215 = vmatmul.f32.gmra.mxu0 %v122
    %v216 = vpop.f32.mrf.mxu0
    %v217 = vadd.f32 %v74, %v216
    %218 = vmatmul.f32.gmra.mxu0 %v125
    %v219 = vpop.f32.mrf.mxu0
    %v220 = vadd.f32 %v74, %v219
    %221 = vmatmul.f32.gmra.mxu0 %v128
    %v222 = vpop.f32.mrf.mxu0
    %v223 = vadd.f32 %v74, %v222
    %224 = vmatmul.f32.gmra.mxu0 %v131
    %v225 = vpop.f32.mrf.mxu0
    %v226 = vadd.f32 %v74, %v225
    %227 = vmatmul.f32.gmra.mxu0 %v134
    %v228 = vpop.f32.mrf.mxu0
    %v229 = vadd.f32 %v74, %v228
    %230 = vmatmul.f32.gmra.mxu0 %v137
    %v231 = vpop.f32.mrf.mxu0
    %v232 = vadd.f32 %v74, %v231
    %233 = vmatmul.f32.gmra.mxu0 %v140
    %v234 = vpop.f32.mrf.mxu0
    %v235 = vadd.f32 %v74, %v234
    %236 = vmatmul.f32.gmra.mxu0 %v143
    %v237 = vpop.f32.mrf.mxu0
    %v238 = vadd.f32 %v74, %v237
    %239 = vmatmul.f32.gmra.mxu0 %v146
    %v240 = vpop.f32.mrf.mxu0
    %v241 = vadd.f32 %v74, %v240
    %242 = vmatmul.f32.gmra.mxu0 %v149
    %v243 = vpop.f32.mrf.mxu0
    %v244 = vadd.f32 %v74, %v243
    %245 = vmatmul.f32.gmra.mxu0 %v152
    %v246 = vpop.f32.mrf.mxu0
    %v247 = vadd.f32 %v74, %v246
    %248 = vmatmul.f32.gmra.mxu0 %v155
    %v249 = vpop.f32.mrf.mxu0
    %v250 = vadd.f32 %v74, %v249
    %251 = vdwg.mxu0
    %252 = vmatpush.msra.mxu0 0.0
    %253 = vmatpush.msra.mxu0 0.0
    %254 = vmatpush.msra.mxu0 0.0
    %255 = vmatpush.msra.mxu0 0.0
    %256 = vmatpush.msra.mxu0 0.0
    %257 = vmatpush.msra.mxu0 0.0
    %258 = vmatpush.msra.mxu0 0.0
    %259 = vmatpush.msra.mxu0 0.0
    %260 = vmatpush.msra.mxu0 0.0
    %261 = vmatpush.msra.mxu0 0.0
    %262 = vmatpush.msra.mxu0 0.0
    %263 = vmatpush.msra.mxu0 0.0
    %264 = vmatpush.msra.mxu0 %v71
    %265 = vmatpush.msra.mxu0 %v69
    %266 = vmatpush.msra.mxu0 %v67
    %267 = vmatpush.msra.mxu0 %v65
    %268 = vmatmul.f32.gmra.mxu0 %v80
    %v269 = vpop.f32.mrf.mxu0
    %v270 = vadd.f32 %v75, %v269
    %271 = vmatmul.f32.gmra.mxu0 %v83
    %v272 = vpop.f32.mrf.mxu0
    %v273 = vadd.f32 %v75, %v272
    %274 = vmatmul.f32.gmra.mxu0 %v86
    %v275 = vpop.f32.mrf.mxu0
    %v276 = vadd.f32 %v75, %v275
    %277 = vmatmul.f32.gmra.mxu0 %v89
    %v278 = vpop.f32.mrf.mxu0
    %v279 = vadd.f32 %v75, %v278
    %280 = vmatmul.f32.gmra.mxu0 %v92
    %v281 = vpop.f32.mrf.mxu0
    %v282 = vadd.f32 %v75, %v281
    %283 = vmatmul.f32.gmra.mxu0 %v95
    %v284 = vpop.f32.mrf.mxu0
    %v285 = vadd.f32 %v75, %v284
    %286 = vmatmul.f32.gmra.mxu0 %v98
    %v287 = vpop.f32.mrf.mxu0
    %v288 = vadd.f32 %v75, %v287
    %289 = vmatmul.f32.gmra.mxu0 %v101
    %v290 = vpop.f32.mrf.mxu0
    %v291 = vadd.f32 %v75, %v290
    %292 = vmatmul.f32.gmra.mxu0 %v104
    %v293 = vpop.f32.mrf.mxu0
    %v294 = vadd.f32 %v75, %v293
    %295 = vmatmul.f32.gmra.mxu0 %v107
    %v296 = vpop.f32.mrf.mxu0
    %v297 = vadd.f32 %v75, %v296
    %298 = vmatmul.f32.gmra.mxu0 %v110
    %v299 = vpop.f32.mrf.mxu0
    %v300 = vadd.f32 %v75, %v299
    %301 = vmatmul.f32.gmra.mxu0 %v113
    %v302 = vpop.f32.mrf.mxu0
    %v303 = vadd.f32 %v75, %v302
    %304 = vmatmul.f32.gmra.mxu0 %v116
    %v305 = vpop.f32.mrf.mxu0
    %v306 = vadd.f32 %v75, %v305
    %307 = vmatmul.f32.gmra.mxu0 %v119
    %v308 = vpop.f32.mrf.mxu0
    %v309 = vadd.f32 %v75, %v308
    %310 = vmatmul.f32.gmra.mxu0 %v122
    %v311 = vpop.f32.mrf.mxu0
    %v312 = vadd.f32 %v75, %v311
    %313 = vmatmul.f32.gmra.mxu0 %v125
    %v314 = vpop.f32.mrf.mxu0
    %v315 = vadd.f32 %v75, %v314
    %316 = vmatmul.f32.gmra.mxu0 %v128
    %v317 = vpop.f32.mrf.mxu0
    %v318 = vadd.f32 %v75, %v317
    %319 = vmatmul.f32.gmra.mxu0 %v131
    %v320 = vpop.f32.mrf.mxu0
    %v321 = vadd.f32 %v75, %v320
    %322 = vmatmul.f32.gmra.mxu0 %v134
    %v323 = vpop.f32.mrf.mxu0
    %v324 = vadd.f32 %v75, %v323
    %325 = vmatmul.f32.gmra.mxu0 %v137
    %v326 = vpop.f32.mrf.mxu0
    %v327 = vadd.f32 %v75, %v326
    %328 = vmatmul.f32.gmra.mxu0 %v140
    %v329 = vpop.f32.mrf.mxu0
    %v330 = vadd.f32 %v75, %v329
    %331 = vmatmul.f32.gmra.mxu0 %v143
    %v332 = vpop.f32.mrf.mxu0
    %v333 = vadd.f32 %v75, %v332
    %334 = vmatmul.f32.gmra.mxu0 %v146
    %v335 = vpop.f32.mrf.mxu0
    %v336 = vadd.f32 %v75, %v335
    %337 = vmatmul.f32.gmra.mxu0 %v149
    %v338 = vpop.f32.mrf.mxu0
    %v339 = vadd.f32 %v75, %v338
    %340 = vmatmul.f32.gmra.mxu0 %v152
    %v341 = vpop.f32.mrf.mxu0
    %v342 = vadd.f32 %v75, %v341
    %343 = vmatmul.f32.gmra.mxu0 %v155
    %v344 = vpop.f32.mrf.mxu0
    %v345 = vadd.f32 %v75, %v344
    %346 = vdwg.mxu0
    %v347 = vmul.f32 %v175, 0.01
    %v348 = vmul.f32 %v270, 0.01
    %v349 = vmul.f32 %v178, 0.01
    %v350 = vmul.f32 %v273, 0.01
    %v351 = vmul.f32 %v181, 0.01
    %v352 = vmul.f32 %v276, 0.01
    %v353 = vmul.f32 %v184, 0.01
    %v354 = vmul.f32 %v279, 0.01
    %v355 = vmul.f32 %v187, 0.01
    %v356 = vmul.f32 %v282, 0.01
    %v357 = vmul.f32 %v190, 0.01
    %v358 = vmul.f32 %v285, 0.01
    %v359 = vmul.f32 %v193, 0.01
    %v360 = vmul.f32 %v288, 0.01
    %v361 = vmul.f32 %v196, 0.01
    %v362 = vmul.f32 %v291, 0.01
    %v363 = vmul.f32 %v199, 0.01
    %v364 = vmul.f32 %v294, 0.01
    %v365 = vmul.f32 %v202, 0.01
    %v366 = vmul.f32 %v297, 0.01
    %v367 = vmul.f32 %v205, 0.01
    %v368 = vmul.f32 %v300, 0.01
    %v369 = vmul.f32 %v208, 0.01
    %v370 = vmul.f32 %v303, 0.01
    %v371 = vmul.f32 %v211, 0.01
    %v372 = vmul.f32 %v306, 0.01
    %v373 = vmul.f32 %v214, 0.01
    %v374 = vmul.f32 %v309, 0.01
    %v375 = vmul.f32 %v217, 0.01
    %v376 = vmul.f32 %v312, 0.01
    %v377 = vmul.f32 %v220, 0.01
    %v378 = vmul.f32 %v315, 0.01
    %v379 = vmul.f32 %v223, 0.01
    %v380 = vmul.f32 %v318, 0.01
    %v381 = vmul.f32 %v226, 0.01
    %v382 = vmul.f32 %v321, 0.01
    %v383 = vmul.f32 %v229, 0.01
    %v384 = vmul.f32 %v324, 0.01
    %v385 = vmul.f32 %v232, 0.01
    %v386 = vmul.f32 %v327, 0.01
    %v387 = vmul.f32 %v235, 0.01
    %v388 = vmul.f32 %v330, 0.01
    %v389 = vmul.f32 %v238, 0.01
    %v390 = vmul.f32 %v333, 0.01
    %v391 = vmul.f32 %v241, 0.01
    %v392 = vmul.f32 %v336, 0.01
    %v393 = vmul.f32 %v244, 0.01
    %v394 = vmul.f32 %v339, 0.01
    %v395 = vmul.f32 %v247, 0.01
    %v396 = vmul.f32 %v342, 0.01
    %v397 = vmul.f32 %v250, 0.01
    %v398 = vmul.f32 %v345, 0.01
    %v399 = vmax.f32 %v175, %v347
    %v400 = vmax.f32 %v270, %v348
    %v401 = vmax.f32 %v178, %v349
    %v402 = vmax.f32 %v273, %v350
    %v403 = vmax.f32 %v181, %v351
    %v404 = vmax.f32 %v276, %v352
    %v405 = vmax.f32 %v184, %v353
    %v406 = vmax.f32 %v279, %v354
    %v407 = vmax.f32 %v187, %v355
    %v408 = vmax.f32 %v282, %v356
    %v409 = vmax.f32 %v190, %v357
    %v410 = vmax.f32 %v285, %v358
    %v411 = vmax.f32 %v193, %v359
    %v412 = vmax.f32 %v288, %v360
    %v413 = vmax.f32 %v196, %v361
    %v414 = vmax.f32 %v291, %v362
    %v415 = vmax.f32 %v199, %v363
    %v416 = vmax.f32 %v294, %v364
    %v417 = vmax.f32 %v202, %v365
    %v418 = vmax.f32 %v297, %v366
    %v419 = vmax.f32 %v205, %v367
    %v420 = vmax.f32 %v300, %v368
    %v421 = vmax.f32 %v208, %v369
    %v422 = vmax.f32 %v303, %v370
    %v423 = vmax.f32 %v211, %v371
    %v424 = vmax.f32 %v306, %v372
    %v425 = vmax.f32 %v214, %v373
    %v426 = vmax.f32 %v309, %v374
    %v427 = vmax.f32 %v217, %v375
    %v428 = vmax.f32 %v312, %v376
    %v429 = vmax.f32 %v220, %v377
    %v430 = vmax.f32 %v315, %v378
    %v431 = vmax.f32 %v223, %v379
    %v432 = vmax.f32 %v318, %v380
    %v433 = vmax.f32 %v226, %v381
    %v434 = vmax.f32 %v321, %v382
    %v435 = vmax.f32 %v229, %v383
    %v436 = vmax.f32 %v324, %v384
    %v437 = vmax.f32 %v232, %v385
    %v438 = vmax.f32 %v327, %v386
    %v439 = vmax.f32 %v235, %v387
    %v440 = vmax.f32 %v330, %v388
    %v441 = vmax.f32 %v238, %v389
    %v442 = vmax.f32 %v333, %v390
    %v443 = vmax.f32 %v241, %v391
    %v444 = vmax.f32 %v336, %v392
    %v445 = vmax.f32 %v244, %v393
    %v446 = vmax.f32 %v339, %v394
    %v447 = vmax.f32 %v247, %v395
    %v448 = vmax.f32 %v342, %v396
    %v449 = vmax.f32 %v250, %v397
    %v450 = vmax.f32 %v345, %v398
    %v451 = vld [vmem:[%s3] sm:$0xff]
    %v452 = vld [vmem:[%s3 + $0x8] sm:$0xff]
    %v453 = vld [vmem:[%s3 + $0x10] sm:$0xff]
    %v454 = vld [vmem:[%s3 + $0x18] sm:$0xff]
    %v455 = vld [vmem:[%s3 + $0x20] sm:$0xff]
    %v456 = vld [vmem:[%s3 + $0x28] sm:$0xff]
    %v457 = vld [vmem:[%s3 + $0x30] sm:$0xff]
    %v458 = vld [vmem:[%s3 + $0x38] sm:$0xff]
    %v459 = vld [vmem:[%s3 + $0x40] sm:$0xff]
    %v460 = vld [vmem:[%s3 + $0x48] sm:$0xff]
    %v461 = vld [vmem:[%s3 + $0x50] sm:$0xff]
    %v462 = vld [vmem:[%s3 + $0x58] sm:$0xff]
    %v463 = vld [vmem:[%s3 + $0x60] sm:$0xff]
    %v464 = vld [vmem:[%s3 + $0x68] sm:$0xff]
    %v465 = vld [vmem:[%s3 + $0x70] sm:$0xff]
    %v466 = vld [vmem:[%s3 + $0x78] sm:$0xff]
    %v467 = vld [vmem:[%s3 + $0x80] sm:$0xff]
    %v468 = vld [vmem:[%s3 + $0x88] sm:$0xff]
    %v469 = vld [vmem:[%s3 + $0x90] sm:$0xff]
    %v470 = vld [vmem:[%s3 + $0x98] sm:$0xff]
    %v471 = vld [vmem:[%s3 + $0xa0] sm:$0xff]
    %v472 = vld [vmem:[%s3 + $0xa8] sm:$0xff]
    %v473 = vld [vmem:[%s3 + $0xb0] sm:$0xff]
    %v474 = vld [vmem:[%s3 + $0xb8] sm:$0xff]
    %v475 = vld [vmem:[%s3 + $0xc0] sm:$0xff]
    %v476 = vld [vmem:[%s3 + $0xc8] sm:$0xff]
    %v477 = vld [vmem:[%s3 + $0xd0] sm:$0xff]
    %v478 = vld [vmem:[%s3 + $0xd8] sm:$0xff]
    %v479 = vld [vmem:[%s3 + $0xe0] sm:$0xff]
    %v480 = vld [vmem:[%s3 + $0xe8] sm:$0xff]
    %v481 = vld [vmem:[%s3 + $0xf0] sm:$0xff]
    %v482 = vld [vmem:[%s3 + $0xf8] sm:$0xff]
    %v483 = vld [vmem:[%s4] sm:$0x1]
    %v485 = vperm.slane %v483, 0
    %487 = vmatpush.msra.mxu0 %v466
    %488 = vmatpush.msra.mxu0 %v465
    %489 = vmatpush.msra.mxu0 %v464
    %490 = vmatpush.msra.mxu0 %v463
    %491 = vmatpush.msra.mxu0 %v462
    %492 = vmatpush.msra.mxu0 %v461
    %493 = vmatpush.msra.mxu0 %v460
    %494 = vmatpush.msra.mxu0 %v459
    %495 = vmatpush.msra.mxu0 %v458
    %496 = vmatpush.msra.mxu0 %v457
    %497 = vmatpush.msra.mxu0 %v456
    %498 = vmatpush.msra.mxu0 %v455
    %499 = vmatpush.msra.mxu0 %v454
    %500 = vmatpush.msra.mxu0 %v453
    %501 = vmatpush.msra.mxu0 %v452
    %502 = vmatpush.msra.mxu0 %v451
    %503 = vmatmul.f32.gmra.mxu0 %v399
    %v504 = vpop.f32.mrf.mxu0
    %v505 = vadd.f32 %v485, %v504
    %506 = vmatmul.f32.gmra.mxu0 %v401
    %v507 = vpop.f32.mrf.mxu0
    %v508 = vadd.f32 %v485, %v507
    %509 = vmatmul.f32.gmra.mxu0 %v403
    %v510 = vpop.f32.mrf.mxu0
    %v511 = vadd.f32 %v485, %v510
    %512 = vmatmul.f32.gmra.mxu0 %v405
    %v513 = vpop.f32.mrf.mxu0
    %v514 = vadd.f32 %v485, %v513
    %515 = vmatmul.f32.gmra.mxu0 %v407
    %v516 = vpop.f32.mrf.mxu0
    %v517 = vadd.f32 %v485, %v516
    %518 = vmatmul.f32.gmra.mxu0 %v409
    %v519 = vpop.f32.mrf.mxu0
    %v520 = vadd.f32 %v485, %v519
    %521 = vmatmul.f32.gmra.mxu0 %v411
    %v522 = vpop.f32.mrf.mxu0
    %v523 = vadd.f32 %v485, %v522
    %524 = vmatmul.f32.gmra.mxu0 %v413
    %v525 = vpop.f32.mrf.mxu0
    %v526 = vadd.f32 %v485, %v525
    %527 = vmatmul.f32.gmra.mxu0 %v415
    %v528 = vpop.f32.mrf.mxu0
    %v529 = vadd.f32 %v485, %v528
    %530 = vmatmul.f32.gmra.mxu0 %v417
    %v531 = vpop.f32.mrf.mxu0
    %v532 = vadd.f32 %v485, %v531
    %533 = vmatmul.f32.gmra.mxu0 %v419
    %v534 = vpop.f32.mrf.mxu0
    %v535 = vadd.f32 %v485, %v534
    %536 = vmatmul.f32.gmra.mxu0 %v421
    %v537 = vpop.f32.mrf.mxu0
    %v538 = vadd.f32 %v485, %v537
    %539 = vmatmul.f32.gmra.mxu0 %v423
    %v540 = vpop.f32.mrf.mxu0
    %v541 = vadd.f32 %v485, %v540
    %542 = vmatmul.f32.gmra.mxu0 %v425
    %v543 = vpop.f32.mrf.mxu0
    %v544 = vadd.f32 %v485, %v543
    %545 = vmatmul.f32.gmra.mxu0 %v427
    %v546 = vpop.f32.mrf.mxu0
    %v547 = vadd.f32 %v485, %v546
    %548 = vmatmul.f32.gmra.mxu0 %v429
    %v549 = vpop.f32.mrf.mxu0
    %v550 = vadd.f32 %v485, %v549
    %551 = vmatmul.f32.gmra.mxu0 %v431
    %v552 = vpop.f32.mrf.mxu0
    %v553 = vadd.f32 %v485, %v552
    %554 = vmatmul.f32.gmra.mxu0 %v433
    %v555 = vpop.f32.mrf.mxu0
    %v556 = vadd.f32 %v485, %v555
    %557 = vmatmul.f32.gmra.mxu0 %v435
    %v558 = vpop.f32.mrf.mxu0
    %v559 = vadd.f32 %v485, %v558
    %560 = vmatmul.f32.gmra.mxu0 %v437
    %v561 = vpop.f32.mrf.mxu0
    %v562 = vadd.f32 %v485, %v561
    %563 = vmatmul.f32.gmra.mxu0 %v439
    %v564 = vpop.f32.mrf.mxu0
    %v565 = vadd.f32 %v485, %v564
    %566 = vmatmul.f32.gmra.mxu0 %v441
    %v567 = vpop.f32.mrf.mxu0
    %v568 = vadd.f32 %v485, %v567
    %569 = vmatmul.f32.gmra.mxu0 %v443
    %v570 = vpop.f32.mrf.mxu0
    %v571 = vadd.f32 %v485, %v570
    %572 = vmatmul.f32.gmra.mxu0 %v445
    %v573 = vpop.f32.mrf.mxu0
    %v574 = vadd.f32 %v485, %v573
    %575 = vmatmul.f32.gmra.mxu0 %v447
    %v576 = vpop.f32.mrf.mxu0
    %v577 = vadd.f32 %v485, %v576
    %578 = vmatmul.f32.gmra.mxu0 %v449
    %v579 = vpop.f32.mrf.mxu0
    %v580 = vadd.f32 %v485, %v579
    %581 = vdwg.mxu0
    %582 = vmatpush.msra.mxu0 %v482
    %583 = vmatpush.msra.mxu0 %v481
    %584 = vmatpush.msra.mxu0 %v480
    %585 = vmatpush.msra.mxu0 %v479
    %586 = vmatpush.msra.mxu0 %v478
    %587 = vmatpush.msra.mxu0 %v477
    %588 = vmatpush.msra.mxu0 %v476
    %589 = vmatpush.msra.mxu0 %v475
    %590 = vmatpush.msra.mxu0 %v474
    %591 = vmatpush.msra.mxu0 %v473
    %592 = vmatpush.msra.mxu0 %v472
    %593 = vmatpush.msra.mxu0 %v471
    %594 = vmatpush.msra.mxu0 %v470
    %595 = vmatpush.msra.mxu0 %v469
    %596 = vmatpush.msra.mxu0 %v468
    %597 = vmatpush.msra.mxu0 %v467
    %598 = vmatmul.f32.gmra.mxu0 %v400
    %v599 = vpop.f32.mrf.mxu0
    %v600 = vadd.f32 %v505, %v599
    %601 = vmatmul.f32.gmra.mxu0 %v402
    %v602 = vpop.f32.mrf.mxu0
    %v603 = vadd.f32 %v508, %v602
    %604 = vmatmul.f32.gmra.mxu0 %v404
    %v605 = vpop.f32.mrf.mxu0
    %v606 = vadd.f32 %v511, %v605
    %607 = vmatmul.f32.gmra.mxu0 %v406
    %v608 = vpop.f32.mrf.mxu0
    %v609 = vadd.f32 %v514, %v608
    %610 = vmatmul.f32.gmra.mxu0 %v408
    %v611 = vpop.f32.mrf.mxu0
    %v612 = vadd.f32 %v517, %v611
    %613 = vmatmul.f32.gmra.mxu0 %v410
    %v614 = vpop.f32.mrf.mxu0
    %v615 = vadd.f32 %v520, %v614
    %616 = vmatmul.f32.gmra.mxu0 %v412
    %v617 = vpop.f32.mrf.mxu0
    %v618 = vadd.f32 %v523, %v617
    %619 = vmatmul.f32.gmra.mxu0 %v414
    %v620 = vpop.f32.mrf.mxu0
    %v621 = vadd.f32 %v526, %v620
    %622 = vmatmul.f32.gmra.mxu0 %v416
    %v623 = vpop.f32.mrf.mxu0
    %v624 = vadd.f32 %v529, %v623
    %625 = vmatmul.f32.gmra.mxu0 %v418
    %v626 = vpop.f32.mrf.mxu0
    %v627 = vadd.f32 %v532, %v626
    %628 = vmatmul.f32.gmra.mxu0 %v420
    %v629 = vpop.f32.mrf.mxu0
    %v630 = vadd.f32 %v535, %v629
    %631 = vmatmul.f32.gmra.mxu0 %v422
    %v632 = vpop.f32.mrf.mxu0
    %v633 = vadd.f32 %v538, %v632
    %634 = vmatmul.f32.gmra.mxu0 %v424
    %v635 = vpop.f32.mrf.mxu0
    %v636 = vadd.f32 %v541, %v635
    %637 = vmatmul.f32.gmra.mxu0 %v426
    %v638 = vpop.f32.mrf.mxu0
    %v639 = vadd.f32 %v544, %v638
    %640 = vmatmul.f32.gmra.mxu0 %v428
    %v641 = vpop.f32.mrf.mxu0
    %v642 = vadd.f32 %v547, %v641
    %643 = vmatmul.f32.gmra.mxu0 %v430
    %v644 = vpop.f32.mrf.mxu0
    %v645 = vadd.f32 %v550, %v644
    %646 = vmatmul.f32.gmra.mxu0 %v432
    %v647 = vpop.f32.mrf.mxu0
    %v648 = vadd.f32 %v553, %v647
    %649 = vmatmul.f32.gmra.mxu0 %v434
    %v650 = vpop.f32.mrf.mxu0
    %v651 = vadd.f32 %v556, %v650
    %652 = vmatmul.f32.gmra.mxu0 %v436
    %v653 = vpop.f32.mrf.mxu0
    %v654 = vadd.f32 %v559, %v653
    %655 = vmatmul.f32.gmra.mxu0 %v438
    %v656 = vpop.f32.mrf.mxu0
    %v657 = vadd.f32 %v562, %v656
    %658 = vmatmul.f32.gmra.mxu0 %v440
    %v659 = vpop.f32.mrf.mxu0
    %v660 = vadd.f32 %v565, %v659
    %661 = vmatmul.f32.gmra.mxu0 %v442
    %v662 = vpop.f32.mrf.mxu0
    %v663 = vadd.f32 %v568, %v662
    %664 = vmatmul.f32.gmra.mxu0 %v444
    %v665 = vpop.f32.mrf.mxu0
    %v666 = vadd.f32 %v571, %v665
    %667 = vmatmul.f32.gmra.mxu0 %v446
    %v668 = vpop.f32.mrf.mxu0
    %v669 = vadd.f32 %v574, %v668
    %670 = vmatmul.f32.gmra.mxu0 %v448
    %v671 = vpop.f32.mrf.mxu0
    %v672 = vadd.f32 %v577, %v671
    %673 = vmatmul.f32.gmra.mxu0 %v450
    %v674 = vpop.f32.mrf.mxu0
    %v675 = vadd.f32 %v580, %v674
    %676 = vdwg.mxu0
    %v677 = vmul.f32 %v600, 0.01
    %v678 = vmul.f32 %v603, 0.01
    %v679 = vmul.f32 %v606, 0.01
    %v680 = vmul.f32 %v609, 0.01
    %v681 = vmul.f32 %v612, 0.01
    %v682 = vmul.f32 %v615, 0.01
    %v683 = vmul.f32 %v618, 0.01
    %v684 = vmul.f32 %v621, 0.01
    %v685 = vmul.f32 %v624, 0.01
    %v686 = vmul.f32 %v627, 0.01
    %v687 = vmul.f32 %v630, 0.01
    %v688 = vmul.f32 %v633, 0.01
    %v689 = vmul.f32 %v636, 0.01
    %v690 = vmul.f32 %v639, 0.01
    %v691 = vmul.f32 %v642, 0.01
    %v692 = vmul.f32 %v645, 0.01
    %v693 = vmul.f32 %v648, 0.01
    %v694 = vmul.f32 %v651, 0.01
    %v695 = vmul.f32 %v654, 0.01
    %v696 = vmul.f32 %v657, 0.01
    %v697 = vmul.f32 %v660, 0.01
    %v698 = vmul.f32 %v663, 0.01
    %v699 = vmul.f32 %v666, 0.01
    %v700 = vmul.f32 %v669, 0.01
    %v701 = vmul.f32 %v672, 0.01
    %v702 = vmul.f32 %v675, 0.01
    %v703 = vmax.f32 %v600, %v677
    %v704 = vmax.f32 %v603, %v678
    %v705 = vmax.f32 %v606, %v679
    %v706 = vmax.f32 %v609, %v680
    %v707 = vmax.f32 %v612, %v681
    %v708 = vmax.f32 %v615, %v682
    %v709 = vmax.f32 %v618, %v683
    %v710 = vmax.f32 %v621, %v684
    %v711 = vmax.f32 %v624, %v685
    %v712 = vmax.f32 %v627, %v686
    %v713 = vmax.f32 %v630, %v687
    %v714 = vmax.f32 %v633, %v688
    %v715 = vmax.f32 %v636, %v689
    %v716 = vmax.f32 %v639, %v690
    %v717 = vmax.f32 %v642, %v691
    %v718 = vmax.f32 %v645, %v692
    %v719 = vmax.f32 %v648, %v693
    %v720 = vmax.f32 %v651, %v694
    %v721 = vmax.f32 %v654, %v695
    %v722 = vmax.f32 %v657, %v696
    %v723 = vmax.f32 %v660, %v697
    %v724 = vmax.f32 %v663, %v698
    %v725 = vmax.f32 %v666, %v699
    %v726 = vmax.f32 %v669, %v700
    %v727 = vmax.f32 %v672, %v701
    %v728 = vmax.f32 %v675, %v702
    %v729 = vld [vmem:[%s5] sm:$0xff]
    %v730 = vld [vmem:[%s5 + $0x8] sm:$0xff]
    %v731 = vld [vmem:[%s5 + $0x10] sm:$0xff]
    %v732 = vld [vmem:[%s5 + $0x18] sm:$0xff]
    %v733 = vld [vmem:[%s5 + $0x20] sm:$0xff]
    %v734 = vld [vmem:[%s5 + $0x28] sm:$0xff]
    %v735 = vld [vmem:[%s5 + $0x30] sm:$0xff]
    %v736 = vld [vmem:[%s5 + $0x38] sm:$0xff]
    %v737 = vld [vmem:[%s5 + $0x40] sm:$0xff]
    %v738 = vld [vmem:[%s5 + $0x48] sm:$0xff]
    %v739 = vld [vmem:[%s5 + $0x50] sm:$0xff]
    %v740 = vld [vmem:[%s5 + $0x58] sm:$0xff]
    %v741 = vld [vmem:[%s5 + $0x60] sm:$0xff]
    %v742 = vld [vmem:[%s5 + $0x68] sm:$0xff]
    %v743 = vld [vmem:[%s5 + $0x70] sm:$0xff]
    %v744 = vld [vmem:[%s5 + $0x78] sm:$0xff]
    %v745 = vld [vmem:[%s6] sm:$0x1]
    %v747 = vperm.slane %v745, 0
    %749 = vmatpush.msra.mxu0 %v744
    %750 = vmatpush.msra.mxu0 %v743
    %751 = vmatpush.msra.mxu0 %v742
    %752 = vmatpush.msra.mxu0 %v741
    %753 = vmatpush.msra.mxu0 %v740
    %754 = vmatpush.msra.mxu0 %v739
    %755 = vmatpush.msra.mxu0 %v738
    %756 = vmatpush.msra.mxu0 %v737
    %757 = vmatpush.msra.mxu0 %v736
    %758 = vmatpush.msra.mxu0 %v735
    %759 = vmatpush.msra.mxu0 %v734
    %760 = vmatpush.msra.mxu0 %v733
    %761 = vmatpush.msra.mxu0 %v732
    %762 = vmatpush.msra.mxu0 %v731
    %763 = vmatpush.msra.mxu0 %v730
    %764 = vmatpush.msra.mxu0 %v729
    %765 = vmatmul.f32.gmra.mxu0 %v703
    %v766 = vpop.f32.mrf.mxu0
    %v767 = vadd.f32 %v747, %v766
    %768 = vmatmul.f32.gmra.mxu0 %v704
    %v769 = vpop.f32.mrf.mxu0
    %v770 = vadd.f32 %v747, %v769
    %771 = vmatmul.f32.gmra.mxu0 %v705
    %v772 = vpop.f32.mrf.mxu0
    %v773 = vadd.f32 %v747, %v772
    %774 = vmatmul.f32.gmra.mxu0 %v706
    %v775 = vpop.f32.mrf.mxu0
    %v776 = vadd.f32 %v747, %v775
    %777 = vmatmul.f32.gmra.mxu0 %v707
    %v778 = vpop.f32.mrf.mxu0
    %v779 = vadd.f32 %v747, %v778
    %780 = vmatmul.f32.gmra.mxu0 %v708
    %v781 = vpop.f32.mrf.mxu0
    %v782 = vadd.f32 %v747, %v781
    %783 = vmatmul.f32.gmra.mxu0 %v709
    %v784 = vpop.f32.mrf.mxu0
    %v785 = vadd.f32 %v747, %v784
    %786 = vmatmul.f32.gmra.mxu0 %v710
    %v787 = vpop.f32.mrf.mxu0
    %v788 = vadd.f32 %v747, %v787
    %789 = vmatmul.f32.gmra.mxu0 %v711
    %v790 = vpop.f32.mrf.mxu0
    %v791 = vadd.f32 %v747, %v790
    %792 = vmatmul.f32.gmra.mxu0 %v712
    %v793 = vpop.f32.mrf.mxu0
    %v794 = vadd.f32 %v747, %v793
    %795 = vmatmul.f32.gmra.mxu0 %v713
    %v796 = vpop.f32.mrf.mxu0
    %v797 = vadd.f32 %v747, %v796
    %798 = vmatmul.f32.gmra.mxu0 %v714
    %v799 = vpop.f32.mrf.mxu0
    %v800 = vadd.f32 %v747, %v799
    %801 = vmatmul.f32.gmra.mxu0 %v715
    %v802 = vpop.f32.mrf.mxu0
    %v803 = vadd.f32 %v747, %v802
    %804 = vmatmul.f32.gmra.mxu0 %v716
    %v805 = vpop.f32.mrf.mxu0
    %v806 = vadd.f32 %v747, %v805
    %807 = vmatmul.f32.gmra.mxu0 %v717
    %v808 = vpop.f32.mrf.mxu0
    %v809 = vadd.f32 %v747, %v808
    %810 = vmatmul.f32.gmra.mxu0 %v718
    %v811 = vpop.f32.mrf.mxu0
    %v812 = vadd.f32 %v747, %v811
    %813 = vmatmul.f32.gmra.mxu0 %v719
    %v814 = vpop.f32.mrf.mxu0
    %v815 = vadd.f32 %v747, %v814
    %816 = vmatmul.f32.gmra.mxu0 %v720
    %v817 = vpop.f32.mrf.mxu0
    %v818 = vadd.f32 %v747, %v817
    %819 = vmatmul.f32.gmra.mxu0 %v721
    %v820 = vpop.f32.mrf.mxu0
    %v821 = vadd.f32 %v747, %v820
    %822 = vmatmul.f32.gmra.mxu0 %v722
    %v823 = vpop.f32.mrf.mxu0
    %v824 = vadd.f32 %v747, %v823
    %825 = vmatmul.f32.gmra.mxu0 %v723
    %v826 = vpop.f32.mrf.mxu0
    %v827 = vadd.f32 %v747, %v826
    %828 = vmatmul.f32.gmra.mxu0 %v724
    %v829 = vpop.f32.mrf.mxu0
    %v830 = vadd.f32 %v747, %v829
    %831 = vmatmul.f32.gmra.mxu0 %v725
    %v832 = vpop.f32.mrf.mxu0
    %v833 = vadd.f32 %v747, %v832
    %834 = vmatmul.f32.gmra.mxu0 %v726
    %v835 = vpop.f32.mrf.mxu0
    %v836 = vadd.f32 %v747, %v835
    %837 = vmatmul.f32.gmra.mxu0 %v727
    %v838 = vpop.f32.mrf.mxu0
    %v839 = vadd.f32 %v747, %v838
    %840 = vmatmul.f32.gmra.mxu0 %v728
    %v841 = vpop.f32.mrf.mxu0
    %v842 = vadd.f32 %v747, %v841
    %843 = vdwg.mxu0
    %v844 = vmul.f32 %v767, 0.01
    %v845 = vmul.f32 %v770, 0.01
    %v846 = vmul.f32 %v773, 0.01
    %v847 = vmul.f32 %v776, 0.01
    %v848 = vmul.f32 %v779, 0.01
    %v849 = vmul.f32 %v782, 0.01
    %v850 = vmul.f32 %v785, 0.01
    %v851 = vmul.f32 %v788, 0.01
    %v852 = vmul.f32 %v791, 0.01
    %v853 = vmul.f32 %v794, 0.01
    %v854 = vmul.f32 %v797, 0.01
    %v855 = vmul.f32 %v800, 0.01
    %v856 = vmul.f32 %v803, 0.01
    %v857 = vmul.f32 %v806, 0.01
    %v858 = vmul.f32 %v809, 0.01
    %v859 = vmul.f32 %v812, 0.01
    %v860 = vmul.f32 %v815, 0.01
    %v861 = vmul.f32 %v818, 0.01
    %v862 = vmul.f32 %v821, 0.01
    %v863 = vmul.f32 %v824, 0.01
    %v864 = vmul.f32 %v827, 0.01
    %v865 = vmul.f32 %v830, 0.01
    %v866 = vmul.f32 %v833, 0.01
    %v867 = vmul.f32 %v836, 0.01
    %v868 = vmul.f32 %v839, 0.01
    %v869 = vmul.f32 %v842, 0.01
    %v870 = vmax.f32 %v767, %v844
    %v871 = vmax.f32 %v770, %v845
    %v872 = vmax.f32 %v773, %v846
    %v873 = vmax.f32 %v776, %v847
    %v874 = vmax.f32 %v779, %v848
    %v875 = vmax.f32 %v782, %v849
    %v876 = vmax.f32 %v785, %v850
    %v877 = vmax.f32 %v788, %v851
    %v878 = vmax.f32 %v791, %v852
    %v879 = vmax.f32 %v794, %v853
    %v880 = vmax.f32 %v797, %v854
    %v881 = vmax.f32 %v800, %v855
    %v882 = vmax.f32 %v803, %v856
    %v883 = vmax.f32 %v806, %v857
    %v884 = vmax.f32 %v809, %v858
    %v885 = vmax.f32 %v812, %v859
    %v886 = vmax.f32 %v815, %v860
    %v887 = vmax.f32 %v818, %v861
    %v888 = vmax.f32 %v821, %v862
    %v889 = vmax.f32 %v824, %v863
    %v890 = vmax.f32 %v827, %v864
    %v891 = vmax.f32 %v830, %v865
    %v892 = vmax.f32 %v833, %v866
    %v893 = vmax.f32 %v836, %v867
    %v894 = vmax.f32 %v839, %v868
    %v895 = vmax.f32 %v842, %v869
    %v896 = vld [vmem:[%s7] sm:$0xff]
    %v897 = vld [vmem:[%s7 + $0x8] sm:$0xff]
    %v898 = vld [vmem:[%s7 + $0x10] sm:$0xff]
    %v899 = vld [vmem:[%s7 + $0x18] sm:$0xff]
    %v900 = vld [vmem:[%s7 + $0x20] sm:$0xff]
    %v901 = vld [vmem:[%s7 + $0x28] sm:$0xff]
    %v902 = vld [vmem:[%s7 + $0x30] sm:$0xff]
    %v903 = vld [vmem:[%s7 + $0x38] sm:$0xff]
    %v904 = vld [vmem:[%s8] sm:$0x1]
    %v906 = vperm.slane %v904, 0
    %vm908 = vcmask 523264
    %v910 = vsel %vm908, %v870, 0
    %v913 = vsel %vm908, %v871, 0
    %v916 = vsel %vm908, %v872, 0
    %v919 = vsel %vm908, %v873, 0
    %v922 = vsel %vm908, %v874, 0
    %v925 = vsel %vm908, %v875, 0
    %v928 = vsel %vm908, %v876, 0
    %v931 = vsel %vm908, %v877, 0
    %v934 = vsel %vm908, %v878, 0
    %v937 = vsel %vm908, %v879, 0
    %v940 = vsel %vm908, %v880, 0
    %v943 = vsel %vm908, %v881, 0
    %v946 = vsel %vm908, %v882, 0
    %v949 = vsel %vm908, %v883, 0
    %v952 = vsel %vm908, %v884, 0
    %v955 = vsel %vm908, %v885, 0
    %v958 = vsel %vm908, %v886, 0
    %v961 = vsel %vm908, %v887, 0
    %v964 = vsel %vm908, %v888, 0
    %v967 = vsel %vm908, %v889, 0
    %v970 = vsel %vm908, %v890, 0
    %v973 = vsel %vm908, %v891, 0
    %v976 = vsel %vm908, %v892, 0
    %v979 = vsel %vm908, %v893, 0
    %v982 = vsel %vm908, %v894, 0
    %v985 = vsel %vm908, %v895, 0
    %987 = vmatpush.msra.mxu0 0.0
    %988 = vmatpush.msra.mxu0 0.0
    %989 = vmatpush.msra.mxu0 0.0
    %990 = vmatpush.msra.mxu0 0.0
    %991 = vmatpush.msra.mxu0 0.0
    %992 = vmatpush.msra.mxu0 0.0
    %993 = vmatpush.msra.mxu0 0.0
    %994 = vmatpush.msra.mxu0 0.0
    %995 = vmatpush.msra.mxu0 %v903
    %996 = vmatpush.msra.mxu0 %v902
    %997 = vmatpush.msra.mxu0 %v901
    %998 = vmatpush.msra.mxu0 %v900
    %999 = vmatpush.msra.mxu0 %v899
    %1000 = vmatpush.msra.mxu0 %v898
    %1001 = vmatpush.msra.mxu0 %v897
    %1002 = vmatpush.msra.mxu0 %v896
    %1003 = vmatmul.f32.gmra.mxu0 %v910
    %v1004 = vpop.f32.mrf.mxu0
    %v1005 = vadd.f32 %v906, %v1004
    %1006 = vmatmul.f32.gmra.mxu0 %v913
    %v1007 = vpop.f32.mrf.mxu0
    %v1008 = vadd.f32 %v906, %v1007
    %1009 = vmatmul.f32.gmra.mxu0 %v916
    %v1010 = vpop.f32.mrf.mxu0
    %v1011 = vadd.f32 %v906, %v1010
    %1012 = vmatmul.f32.gmra.mxu0 %v919
    %v1013 = vpop.f32.mrf.mxu0
    %v1014 = vadd.f32 %v906, %v1013
    %1015 = vmatmul.f32.gmra.mxu0 %v922
    %v1016 = vpop.f32.mrf.mxu0
    %v1017 = vadd.f32 %v906, %v1016
    %1018 = vmatmul.f32.gmra.mxu0 %v925
    %v1019 = vpop.f32.mrf.mxu0
    %v1020 = vadd.f32 %v906, %v1019
    %1021 = vmatmul.f32.gmra.mxu0 %v928
    %v1022 = vpop.f32.mrf.mxu0
    %v1023 = vadd.f32 %v906, %v1022
    %1024 = vmatmul.f32.gmra.mxu0 %v931
    %v1025 = vpop.f32.mrf.mxu0
    %v1026 = vadd.f32 %v906, %v1025
    %1027 = vmatmul.f32.gmra.mxu0 %v934
    %v1028 = vpop.f32.mrf.mxu0
    %v1029 = vadd.f32 %v906, %v1028
    %1030 = vmatmul.f32.gmra.mxu0 %v937
    %v1031 = vpop.f32.mrf.mxu0
    %v1032 = vadd.f32 %v906, %v1031
    %1033 = vmatmul.f32.gmra.mxu0 %v940
    %v1034 = vpop.f32.mrf.mxu0
    %v1035 = vadd.f32 %v906, %v1034
    %1036 = vmatmul.f32.gmra.mxu0 %v943
    %v1037 = vpop.f32.mrf.mxu0
    %v1038 = vadd.f32 %v906, %v1037
    %1039 = vmatmul.f32.gmra.mxu0 %v946
    %v1040 = vpop.f32.mrf.mxu0
    %v1041 = vadd.f32 %v906, %v1040
    %1042 = vmatmul.f32.gmra.mxu0 %v949
    %v1043 = vpop.f32.mrf.mxu0
    %v1044 = vadd.f32 %v906, %v1043
    %1045 = vmatmul.f32.gmra.mxu0 %v952
    %v1046 = vpop.f32.mrf.mxu0
    %v1047 = vadd.f32 %v906, %v1046
    %1048 = vmatmul.f32.gmra.mxu0 %v955
    %v1049 = vpop.f32.mrf.mxu0
    %v1050 = vadd.f32 %v906, %v1049
    %1051 = vmatmul.f32.gmra.mxu0 %v958
    %v1052 = vpop.f32.mrf.mxu0
    %v1053 = vadd.f32 %v906, %v1052
    %1054 = vmatmul.f32.gmra.mxu0 %v961
    %v1055 = vpop.f32.mrf.mxu0
    %v1056 = vadd.f32 %v906, %v1055
    %1057 = vmatmul.f32.gmra.mxu0 %v964
    %v1058 = vpop.f32.mrf.mxu0
    %v1059 = vadd.f32 %v906, %v1058
    %1060 = vmatmul.f32.gmra.mxu0 %v967
    %v1061 = vpop.f32.mrf.mxu0
    %v1062 = vadd.f32 %v906, %v1061
    %1063 = vmatmul.f32.gmra.mxu0 %v970
    %v1064 = vpop.f32.mrf.mxu0
    %v1065 = vadd.f32 %v906, %v1064
    %1066 = vmatmul.f32.gmra.mxu0 %v973
    %v1067 = vpop.f32.mrf.mxu0
    %v1068 = vadd.f32 %v906, %v1067
    %1069 = vmatmul.f32.gmra.mxu0 %v976
    %v1070 = vpop.f32.mrf.mxu0
    %v1071 = vadd.f32 %v906, %v1070
    %1072 = vmatmul.f32.gmra.mxu0 %v979
    %v1073 = vpop.f32.mrf.mxu0
    %v1074 = vadd.f32 %v906, %v1073
    %1075 = vmatmul.f32.gmra.mxu0 %v982
    %v1076 = vpop.f32.mrf.mxu0
    %v1077 = vadd.f32 %v906, %v1076
    %1078 = vmatmul.f32.gmra.mxu0 %v985
    %v1079 = vpop.f32.mrf.mxu0
    %v1080 = vadd.f32 %v906, %v1079
    %1081 = vdwg.mxu0
    %v1082 = vmul.f32 %v1005, 0.01
    %v1083 = vmul.f32 %v1008, 0.01
    %v1084 = vmul.f32 %v1011, 0.01
    %v1085 = vmul.f32 %v1014, 0.01
    %v1086 = vmul.f32 %v1017, 0.01
    %v1087 = vmul.f32 %v1020, 0.01
    %v1088 = vmul.f32 %v1023, 0.01
    %v1089 = vmul.f32 %v1026, 0.01
    %v1090 = vmul.f32 %v1029, 0.01
    %v1091 = vmul.f32 %v1032, 0.01
    %v1092 = vmul.f32 %v1035, 0.01
    %v1093 = vmul.f32 %v1038, 0.01
    %v1094 = vmul.f32 %v1041, 0.01
    %v1095 = vmul.f32 %v1044, 0.01
    %v1096 = vmul.f32 %v1047, 0.01
    %v1097 = vmul.f32 %v1050, 0.01
    %v1098 = vmul.f32 %v1053, 0.01
    %v1099 = vmul.f32 %v1056, 0.01
    %v1100 = vmul.f32 %v1059, 0.01
    %v1101 = vmul.f32 %v1062, 0.01
    %v1102 = vmul.f32 %v1065, 0.01
    %v1103 = vmul.f32 %v1068, 0.01
    %v1104 = vmul.f32 %v1071, 0.01
    %v1105 = vmul.f32 %v1074, 0.01
    %v1106 = vmul.f32 %v1077, 0.01
    %v1107 = vmul.f32 %v1080, 0.01
    %v1108 = vmax.f32 %v1005, %v1082
    %v1109 = vmax.f32 %v1008, %v1083
    %v1110 = vmax.f32 %v1011, %v1084
    %v1111 = vmax.f32 %v1014, %v1085
    %v1112 = vmax.f32 %v1017, %v1086
    %v1113 = vmax.f32 %v1020, %v1087
    %v1114 = vmax.f32 %v1023, %v1088
    %v1115 = vmax.f32 %v1026, %v1089
    %v1116 = vmax.f32 %v1029, %v1090
    %v1117 = vmax.f32 %v1032, %v1091
    %v1118 = vmax.f32 %v1035, %v1092
    %v1119 = vmax.f32 %v1038, %v1093
    %v1120 = vmax.f32 %v1041, %v1094
    %v1121 = vmax.f32 %v1044, %v1095
    %v1122 = vmax.f32 %v1047, %v1096
    %v1123 = vmax.f32 %v1050, %v1097
    %v1124 = vmax.f32 %v1053, %v1098
    %v1125 = vmax.f32 %v1056, %v1099
    %v1126 = vmax.f32 %v1059, %v1100
    %v1127 = vmax.f32 %v1062, %v1101
    %v1128 = vmax.f32 %v1065, %v1102
    %v1129 = vmax.f32 %v1068, %v1103
    %v1130 = vmax.f32 %v1071, %v1104
    %v1131 = vmax.f32 %v1074, %v1105
    %v1132 = vmax.f32 %v1077, %v1106
    %v1133 = vmax.f32 %v1080, %v1107
    %v1134 = vld [vmem:[%s9] sm:$0xff]
    %v1135 = vld [vmem:[%s9 + $0x8] sm:$0xff]
    %v1136 = vld [vmem:[%s9 + $0x10] sm:$0xff]
    %v1137 = vld [vmem:[%s9 + $0x18] sm:$0xff]
    %v1138 = vld [vmem:[%s10] sm:$0x1]
    %v1140 = vperm.slane %v1138, 0
    %v1143 = vsel %vm78, %v1108, 0
    %v1146 = vsel %vm78, %v1109, 0
    %v1149 = vsel %vm78, %v1110, 0
    %v1152 = vsel %vm78, %v1111, 0
    %v1155 = vsel %vm78, %v1112, 0
    %v1158 = vsel %vm78, %v1113, 0
    %v1161 = vsel %vm78, %v1114, 0
    %v1164 = vsel %vm78, %v1115, 0
    %v1167 = vsel %vm78, %v1116, 0
    %v1170 = vsel %vm78, %v1117, 0
    %v1173 = vsel %vm78, %v1118, 0
    %v1176 = vsel %vm78, %v1119, 0
    %v1179 = vsel %vm78, %v1120, 0
    %v1182 = vsel %vm78, %v1121, 0
    %v1185 = vsel %vm78, %v1122, 0
    %v1188 = vsel %vm78, %v1123, 0
    %v1191 = vsel %vm78, %v1124, 0
    %v1194 = vsel %vm78, %v1125, 0
    %v1197 = vsel %vm78, %v1126, 0
    %v1200 = vsel %vm78, %v1127, 0
    %v1203 = vsel %vm78, %v1128, 0
    %v1206 = vsel %vm78, %v1129, 0
    %v1209 = vsel %vm78, %v1130, 0
    %v1212 = vsel %vm78, %v1131, 0
    %v1215 = vsel %vm78, %v1132, 0
    %v1218 = vsel %vm78, %v1133, 0
    %1220 = vmatpush.msra.mxu0 0.0
    %1221 = vmatpush.msra.mxu0 0.0
    %1222 = vmatpush.msra.mxu0 0.0
    %1223 = vmatpush.msra.mxu0 0.0
    %1224 = vmatpush.msra.mxu0 0.0
    %1225 = vmatpush.msra.mxu0 0.0
    %1226 = vmatpush.msra.mxu0 0.0
    %1227 = vmatpush.msra.mxu0 0.0
    %1228 = vmatpush.msra.mxu0 0.0
    %1229 = vmatpush.msra.mxu0 0.0
    %1230 = vmatpush.msra.mxu0 0.0
    %1231 = vmatpush.msra.mxu0 0.0
    %1232 = vmatpush.msra.mxu0 %v1137
    %1233 = vmatpush.msra.mxu0 %v1136
    %1234 = vmatpush.msra.mxu0 %v1135
    %1235 = vmatpush.msra.mxu0 %v1134
    %1236 = vmatmul.f32.gmra.mxu0 %v1143
    %v1237 = vpop.f32.mrf.mxu0
    %v1238 = vadd.f32 %v1140, %v1237
    %1239 = vmatmul.f32.gmra.mxu0 %v1146
    %v1240 = vpop.f32.mrf.mxu0
    %v1241 = vadd.f32 %v1140, %v1240
    %1242 = vmatmul.f32.gmra.mxu0 %v1149
    %v1243 = vpop.f32.mrf.mxu0
    %v1244 = vadd.f32 %v1140, %v1243
    %1245 = vmatmul.f32.gmra.mxu0 %v1152
    %v1246 = vpop.f32.mrf.mxu0
    %v1247 = vadd.f32 %v1140, %v1246
    %1248 = vmatmul.f32.gmra.mxu0 %v1155
    %v1249 = vpop.f32.mrf.mxu0
    %v1250 = vadd.f32 %v1140, %v1249
    %1251 = vmatmul.f32.gmra.mxu0 %v1158
    %v1252 = vpop.f32.mrf.mxu0
    %v1253 = vadd.f32 %v1140, %v1252
    %1254 = vmatmul.f32.gmra.mxu0 %v1161
    %v1255 = vpop.f32.mrf.mxu0
    %v1256 = vadd.f32 %v1140, %v1255
    %1257 = vmatmul.f32.gmra.mxu0 %v1164
    %v1258 = vpop.f32.mrf.mxu0
    %v1259 = vadd.f32 %v1140, %v1258
    %1260 = vmatmul.f32.gmra.mxu0 %v1167
    %v1261 = vpop.f32.mrf.mxu0
    %v1262 = vadd.f32 %v1140, %v1261
    %1263 = vmatmul.f32.gmra.mxu0 %v1170
    %v1264 = vpop.f32.mrf.mxu0
    %v1265 = vadd.f32 %v1140, %v1264
    %1266 = vmatmul.f32.gmra.mxu0 %v1173
    %v1267 = vpop.f32.mrf.mxu0
    %v1268 = vadd.f32 %v1140, %v1267
    %1269 = vmatmul.f32.gmra.mxu0 %v1176
    %v1270 = vpop.f32.mrf.mxu0
    %v1271 = vadd.f32 %v1140, %v1270
    %1272 = vmatmul.f32.gmra.mxu0 %v1179
    %v1273 = vpop.f32.mrf.mxu0
    %v1274 = vadd.f32 %v1140, %v1273
    %1275 = vmatmul.f32.gmra.mxu0 %v1182
    %v1276 = vpop.f32.mrf.mxu0
    %v1277 = vadd.f32 %v1140, %v1276
    %1278 = vmatmul.f32.gmra.mxu0 %v1185
    %v1279 = vpop.f32.mrf.mxu0
    %v1280 = vadd.f32 %v1140, %v1279
    %1281 = vmatmul.f32.gmra.mxu0 %v1188
    %v1282 = vpop.f32.mrf.mxu0
    %v1283 = vadd.f32 %v1140, %v1282
    %1284 = vmatmul.f32.gmra.mxu0 %v1191
    %v1285 = vpop.f32.mrf.mxu0
    %v1286 = vadd.f32 %v1140, %v1285
    %1287 = vmatmul.f32.gmra.mxu0 %v1194
    %v1288 = vpop.f32.mrf.mxu0
    %v1289 = vadd.f32 %v1140, %v1288
    %1290 = vmatmul.f32.gmra.mxu0 %v1197
    %v1291 = vpop.f32.mrf.mxu0
    %v1292 = vadd.f32 %v1140, %v1291
    %1293 = vmatmul.f32.gmra.mxu0 %v1200
    %v1294 = vpop.f32.mrf.mxu0
    %v1295 = vadd.f32 %v1140, %v1294
    %1296 = vmatmul.f32.gmra.mxu0 %v1203
    %v1297 = vpop.f32.mrf.mxu0
    %v1298 = vadd.f32 %v1140, %v1297
    %1299 = vmatmul.f32.gmra.mxu0 %v1206
    %v1300 = vpop.f32.mrf.mxu0
    %v1301 = vadd.f32 %v1140, %v1300
    %1302 = vmatmul.f32.gmra.mxu0 %v1209
    %v1303 = vpop.f32.mrf.mxu0
    %v1304 = vadd.f32 %v1140, %v1303
    %1305 = vmatmul.f32.gmra.mxu0 %v1212
    %v1306 = vpop.f32.mrf.mxu0
    %v1307 = vadd.f32 %v1140, %v1306
    %1308 = vmatmul.f32.gmra.mxu0 %v1215
    %v1309 = vpop.f32.mrf.mxu0
    %v1310 = vadd.f32 %v1140, %v1309
    %1311 = vmatmul.f32.gmra.mxu0 %v1218
    %v1312 = vpop.f32.mrf.mxu0
    %v1313 = vadd.f32 %v1140, %v1312
    %1314 = vdwg.mxu0
    %v1315 = vlaneseq
    %v1316 = vand.u32 %v1315, 127
    %vm1317 = vcmp.lt.s32.totalorder %v1316, 2
    %v1318 = vxor.u32 %v1238, 2147483648
    %v1319 = vxor.u32 %v1241, 2147483648
    %v1320 = vxor.u32 %v1244, 2147483648
    %v1321 = vxor.u32 %v1247, 2147483648
    %v1322 = vxor.u32 %v1250, 2147483648
    %v1323 = vxor.u32 %v1253, 2147483648
    %v1324 = vxor.u32 %v1256, 2147483648
    %v1325 = vxor.u32 %v1259, 2147483648
    %v1326 = vxor.u32 %v1262, 2147483648
    %v1327 = vxor.u32 %v1265, 2147483648
    %v1328 = vxor.u32 %v1268, 2147483648
    %v1329 = vxor.u32 %v1271, 2147483648
    %v1330 = vxor.u32 %v1274, 2147483648
    %v1331 = vxor.u32 %v1277, 2147483648
    %v1332 = vxor.u32 %v1280, 2147483648
    %v1333 = vxor.u32 %v1283, 2147483648
    %v1334 = vxor.u32 %v1286, 2147483648
    %v1335 = vxor.u32 %v1289, 2147483648
    %v1336 = vxor.u32 %v1292, 2147483648
    %v1337 = vxor.u32 %v1295, 2147483648
    %v1338 = vxor.u32 %v1298, 2147483648
    %v1339 = vxor.u32 %v1301, 2147483648
    %v1340 = vxor.u32 %v1304, 2147483648
    %v1341 = vxor.u32 %v1307, 2147483648
    %v1342 = vxor.u32 %v1310, 2147483648
    %v1343 = vxor.u32 %v1313, 2147483648
    %v1344 = vmul.f32 %v1318, 1.442695
    %v1345 = vpow.pop %v1344
    %v1346 = vmul.f32 %v1319, 1.442695
    %v1347 = vpow.pop %v1346
    %v1348 = vmul.f32 %v1320, 1.442695
    %v1349 = vpow.pop %v1348
    %v1350 = vmul.f32 %v1321, 1.442695
    %v1351 = vpow.pop %v1350
    %v1352 = vmul.f32 %v1322, 1.442695
    %v1353 = vpow.pop %v1352
    %v1354 = vmul.f32 %v1323, 1.442695
    %v1355 = vpow.pop %v1354
    %v1356 = vmul.f32 %v1324, 1.442695
    %v1357 = vpow.pop %v1356
    %v1358 = vmul.f32 %v1325, 1.442695
    %v1359 = vpow.pop %v1358
    %v1360 = vmul.f32 %v1326, 1.442695
    %v1361 = vpow.pop %v1360
    %v1362 = vmul.f32 %v1327, 1.442695
    %v1363 = vpow.pop %v1362
    %v1364 = vmul.f32 %v1328, 1.442695
    %v1365 = vpow.pop %v1364
    %v1366 = vmul.f32 %v1329, 1.442695
    %v1367 = vpow.pop %v1366
    %v1368 = vmul.f32 %v1330, 1.442695
    %v1369 = vpow.pop %v1368
    %v1370 = vmul.f32 %v1331, 1.442695
    %v1371 = vpow.pop %v1370
    %v1372 = vmul.f32 %v1332, 1.442695
    %v1373 = vpow.pop %v1372
    %v1374 = vmul.f32 %v1333, 1.442695
    %v1375 = vpow.pop %v1374
    %v1376 = vmul.f32 %v1334, 1.442695
    %v1377 = vpow.pop %v1376
    %v1378 = vmul.f32 %v1335, 1.442695
    %v1379 = vpow.pop %v1378
    %v1380 = vmul.f32 %v1336, 1.442695
    %v1381 = vpow.pop %v1380
    %v1382 = vmul.f32 %v1337, 1.442695
    %v1383 = vpow.pop %v1382
    %v1384 = vmul.f32 %v1338, 1.442695
    %v1385 = vpow.pop %v1384
    %v1386 = vmul.f32 %v1339, 1.442695
    %v1387 = vpow.pop %v1386
    %v1388 = vmul.f32 %v1340, 1.442695
    %v1389 = vpow.pop %v1388
    %v1390 = vmul.f32 %v1341, 1.442695
    %v1391 = vpow.pop %v1390
    %v1392 = vmul.f32 %v1342, 1.442695
    %v1393 = vpow.pop %v1392
    %v1394 = vmul.f32 %v1343, 1.442695
    %v1395 = vpow.pop %v1394
    %v1396 = vadd.f32 %v1345, 1.0
    %v1397 = vadd.f32 %v1347, 1.0
    %v1398 = vadd.f32 %v1349, 1.0
    %v1399 = vadd.f32 %v1351, 1.0
    %v1400 = vadd.f32 %v1353, 1.0
    %v1401 = vadd.f32 %v1355, 1.0
    %v1402 = vadd.f32 %v1357, 1.0
    %v1403 = vadd.f32 %v1359, 1.0
    %v1404 = vadd.f32 %v1361, 1.0
    %v1405 = vadd.f32 %v1363, 1.0
    %v1406 = vadd.f32 %v1365, 1.0
    %v1407 = vadd.f32 %v1367, 1.0
    %v1408 = vadd.f32 %v1369, 1.0
    %v1409 = vadd.f32 %v1371, 1.0
    %v1410 = vadd.f32 %v1373, 1.0
    %v1411 = vadd.f32 %v1375, 1.0
    %v1412 = vadd.f32 %v1377, 1.0
    %v1413 = vadd.f32 %v1379, 1.0
    %v1414 = vadd.f32 %v1381, 1.0
    %v1415 = vadd.f32 %v1383, 1.0
    %v1416 = vadd.f32 %v1385, 1.0
    %v1417 = vadd.f32 %v1387, 1.0
    %v1418 = vadd.f32 %v1389, 1.0
    %v1419 = vadd.f32 %v1391, 1.0
    %v1420 = vadd.f32 %v1393, 1.0
    %v1421 = vadd.f32 %v1395, 1.0
    %v1422 = vrcp.pop %v1396
    %v1423 = vmul.f32 %v1396, %v1422
    %v1424 = vsub.f32 1.0, %v1423
    %v1425 = vmul.f32 %v1422, %v1424
    %v1426 = vadd.f32 %v1422, %v1425
    %vm1427 = vweird.f32 %v1396
    %vm1428 = vweird.f32 %v1422
    %vm1429 = vmor %vm1427, %vm1428
    %v1430 = vsel %vm1429, %v1422, %v1426
    %v1431 = vand.u32 2147483647, %v1396
    %vm1432 = vcmp.eq.f32.partialorder %v1431, 8.507059e+37
    %v1433 = vand.u32 %v1396, 2147483648
    %v1434 = vor.u32 1.1754944e-38, %v1433
    %v1435 = vsel %vm1432, %v1434, %v1430
    %v1436 = vmul.f32 1.0, %v1435
    %v1437 = vrcp.pop %v1397
    %v1438 = vmul.f32 %v1397, %v1437
    %v1439 = vsub.f32 1.0, %v1438
    %v1440 = vmul.f32 %v1437, %v1439
    %v1441 = vadd.f32 %v1437, %v1440
    %vm1442 = vweird.f32 %v1397
    %vm1443 = vweird.f32 %v1437
    %vm1444 = vmor %vm1442, %vm1443
    %v1445 = vsel %vm1444, %v1437, %v1441
    %v1446 = vand.u32 2147483647, %v1397
    %vm1447 = vcmp.eq.f32.partialorder %v1446, 8.507059e+37
    %v1448 = vand.u32 %v1397, 2147483648
    %v1449 = vor.u32 1.1754944e-38, %v1448
    %v1450 = vsel %vm1447, %v1449, %v1445
    %v1451 = vmul.f32 1.0, %v1450
    %v1452 = vrcp.pop %v1398
    %v1453 = vmul.f32 %v1398, %v1452
    %v1454 = vsub.f32 1.0, %v1453
    %v1455 = vmul.f32 %v1452, %v1454
    %v1456 = vadd.f32 %v1452, %v1455
    %vm1457 = vweird.f32 %v1398
    %vm1458 = vweird.f32 %v1452
    %vm1459 = vmor %vm1457, %vm1458
    %v1460 = vsel %vm1459, %v1452, %v1456
    %v1461 = vand.u32 2147483647, %v1398
    %vm1462 = vcmp.eq.f32.partialorder %v1461, 8.507059e+37
    %v1463 = vand.u32 %v1398, 2147483648
    %v1464 = vor.u32 1.1754944e-38, %v1463
    %v1465 = vsel %vm1462, %v1464, %v1460
    %v1466 = vmul.f32 1.0, %v1465
    %v1467 = vrcp.pop %v1399
    %v1468 = vmul.f32 %v1399, %v1467
    %v1469 = vsub.f32 1.0, %v1468
    %v1470 = vmul.f32 %v1467, %v1469
    %v1471 = vadd.f32 %v1467, %v1470
    %vm1472 = vweird.f32 %v1399
    %vm1473 = vweird.f32 %v1467
    %vm1474 = vmor %vm1472, %vm1473
    %v1475 = vsel %vm1474, %v1467, %v1471
    %v1476 = vand.u32 2147483647, %v1399
    %vm1477 = vcmp.eq.f32.partialorder %v1476, 8.507059e+37
    %v1478 = vand.u32 %v1399, 2147483648
    %v1479 = vor.u32 1.1754944e-38, %v1478
    %v1480 = vsel %vm1477, %v1479, %v1475
    %v1481 = vmul.f32 1.0, %v1480
    %v1482 = vrcp.pop %v1400
    %v1483 = vmul.f32 %v1400, %v1482
    %v1484 = vsub.f32 1.0, %v1483
    %v1485 = vmul.f32 %v1482, %v1484
    %v1486 = vadd.f32 %v1482, %v1485
    %vm1487 = vweird.f32 %v1400
    %vm1488 = vweird.f32 %v1482
    %vm1489 = vmor %vm1487, %vm1488
    %v1490 = vsel %vm1489, %v1482, %v1486
    %v1491 = vand.u32 2147483647, %v1400
    %vm1492 = vcmp.eq.f32.partialorder %v1491, 8.507059e+37
    %v1493 = vand.u32 %v1400, 2147483648
    %v1494 = vor.u32 1.1754944e-38, %v1493
    %v1495 = vsel %vm1492, %v1494, %v1490
    %v1496 = vmul.f32 1.0, %v1495
    %v1497 = vrcp.pop %v1401
    %v1498 = vmul.f32 %v1401, %v1497
    %v1499 = vsub.f32 1.0, %v1498
    %v1500 = vmul.f32 %v1497, %v1499
    %v1501 = vadd.f32 %v1497, %v1500
    %vm1502 = vweird.f32 %v1401
    %vm1503 = vweird.f32 %v1497
    %vm1504 = vmor %vm1502, %vm1503
    %v1505 = vsel %vm1504, %v1497, %v1501
    %v1506 = vand.u32 2147483647, %v1401
    %vm1507 = vcmp.eq.f32.partialorder %v1506, 8.507059e+37
    %v1508 = vand.u32 %v1401, 2147483648
    %v1509 = vor.u32 1.1754944e-38, %v1508
    %v1510 = vsel %vm1507, %v1509, %v1505
    %v1511 = vmul.f32 1.0, %v1510
    %v1512 = vrcp.pop %v1402
    %v1513 = vmul.f32 %v1402, %v1512
    %v1514 = vsub.f32 1.0, %v1513
    %v1515 = vmul.f32 %v1512, %v1514
    %v1516 = vadd.f32 %v1512, %v1515
    %vm1517 = vweird.f32 %v1402
    %vm1518 = vweird.f32 %v1512
    %vm1519 = vmor %vm1517, %vm1518
    %v1520 = vsel %vm1519, %v1512, %v1516
    %v1521 = vand.u32 2147483647, %v1402
    %vm1522 = vcmp.eq.f32.partialorder %v1521, 8.507059e+37
    %v1523 = vand.u32 %v1402, 2147483648
    %v1524 = vor.u32 1.1754944e-38, %v1523
    %v1525 = vsel %vm1522, %v1524, %v1520
    %v1526 = vmul.f32 1.0, %v1525
    %v1527 = vrcp.pop %v1403
    %v1528 = vmul.f32 %v1403, %v1527
    %v1529 = vsub.f32 1.0, %v1528
    %v1530 = vmul.f32 %v1527, %v1529
    %v1531 = vadd.f32 %v1527, %v1530
    %vm1532 = vweird.f32 %v1403
    %vm1533 = vweird.f32 %v1527
    %vm1534 = vmor %vm1532, %vm1533
    %v1535 = vsel %vm1534, %v1527, %v1531
    %v1536 = vand.u32 2147483647, %v1403
    %vm1537 = vcmp.eq.f32.partialorder %v1536, 8.507059e+37
    %v1538 = vand.u32 %v1403, 2147483648
    %v1539 = vor.u32 1.1754944e-38, %v1538
    %v1540 = vsel %vm1537, %v1539, %v1535
    %v1541 = vmul.f32 1.0, %v1540
    %v1542 = vrcp.pop %v1404
    %v1543 = vmul.f32 %v1404, %v1542
    %v1544 = vsub.f32 1.0, %v1543
    %v1545 = vmul.f32 %v1542, %v1544
    %v1546 = vadd.f32 %v1542, %v1545
    %vm1547 = vweird.f32 %v1404
    %vm1548 = vweird.f32 %v1542
    %vm1549 = vmor %vm1547, %vm1548
    %v1550 = vsel %vm1549, %v1542, %v1546
    %v1551 = vand.u32 2147483647, %v1404
    %vm1552 = vcmp.eq.f32.partialorder %v1551, 8.507059e+37
    %v1553 = vand.u32 %v1404, 2147483648
    %v1554 = vor.u32 1.1754944e-38, %v1553
    %v1555 = vsel %vm1552, %v1554, %v1550
    %v1556 = vmul.f32 1.0, %v1555
    %v1557 = vrcp.pop %v1405
    %v1558 = vmul.f32 %v1405, %v1557
    %v1559 = vsub.f32 1.0, %v1558
    %v1560 = vmul.f32 %v1557, %v1559
    %v1561 = vadd.f32 %v1557, %v1560
    %vm1562 = vweird.f32 %v1405
    %vm1563 = vweird.f32 %v1557
    %vm1564 = vmor %vm1562, %vm1563
    %v1565 = vsel %vm1564, %v1557, %v1561
    %v1566 = vand.u32 2147483647, %v1405
    %vm1567 = vcmp.eq.f32.partialorder %v1566, 8.507059e+37
    %v1568 = vand.u32 %v1405, 2147483648
    %v1569 = vor.u32 1.1754944e-38, %v1568
    %v1570 = vsel %vm1567, %v1569, %v1565
    %v1571 = vmul.f32 1.0, %v1570
    %v1572 = vrcp.pop %v1406
    %v1573 = vmul.f32 %v1406, %v1572
    %v1574 = vsub.f32 1.0, %v1573
    %v1575 = vmul.f32 %v1572, %v1574
    %v1576 = vadd.f32 %v1572, %v1575
    %vm1577 = vweird.f32 %v1406
    %vm1578 = vweird.f32 %v1572
    %vm1579 = vmor %vm1577, %vm1578
    %v1580 = vsel %vm1579, %v1572, %v1576
    %v1581 = vand.u32 2147483647, %v1406
    %vm1582 = vcmp.eq.f32.partialorder %v1581, 8.507059e+37
    %v1583 = vand.u32 %v1406, 2147483648
    %v1584 = vor.u32 1.1754944e-38, %v1583
    %v1585 = vsel %vm1582, %v1584, %v1580
    %v1586 = vmul.f32 1.0, %v1585
    %v1587 = vrcp.pop %v1407
    %v1588 = vmul.f32 %v1407, %v1587
    %v1589 = vsub.f32 1.0, %v1588
    %v1590 = vmul.f32 %v1587, %v1589
    %v1591 = vadd.f32 %v1587, %v1590
    %vm1592 = vweird.f32 %v1407
    %vm1593 = vweird.f32 %v1587
    %vm1594 = vmor %vm1592, %vm1593
    %v1595 = vsel %vm1594, %v1587, %v1591
    %v1596 = vand.u32 2147483647, %v1407
    %vm1597 = vcmp.eq.f32.partialorder %v1596, 8.507059e+37
    %v1598 = vand.u32 %v1407, 2147483648
    %v1599 = vor.u32 1.1754944e-38, %v1598
    %v1600 = vsel %vm1597, %v1599, %v1595
    %v1601 = vmul.f32 1.0, %v1600
    %v1602 = vrcp.pop %v1408
    %v1603 = vmul.f32 %v1408, %v1602
    %v1604 = vsub.f32 1.0, %v1603
    %v1605 = vmul.f32 %v1602, %v1604
    %v1606 = vadd.f32 %v1602, %v1605
    %vm1607 = vweird.f32 %v1408
    %vm1608 = vweird.f32 %v1602
    %vm1609 = vmor %vm1607, %vm1608
    %v1610 = vsel %vm1609, %v1602, %v1606
    %v1611 = vand.u32 2147483647, %v1408
    %vm1612 = vcmp.eq.f32.partialorder %v1611, 8.507059e+37
    %v1613 = vand.u32 %v1408, 2147483648
    %v1614 = vor.u32 1.1754944e-38, %v1613
    %v1615 = vsel %vm1612, %v1614, %v1610
    %v1616 = vmul.f32 1.0, %v1615
    %v1617 = vrcp.pop %v1409
    %v1618 = vmul.f32 %v1409, %v1617
    %v1619 = vsub.f32 1.0, %v1618
    %v1620 = vmul.f32 %v1617, %v1619
    %v1621 = vadd.f32 %v1617, %v1620
    %vm1622 = vweird.f32 %v1409
    %vm1623 = vweird.f32 %v1617
    %vm1624 = vmor %vm1622, %vm1623
    %v1625 = vsel %vm1624, %v1617, %v1621
    %v1626 = vand.u32 2147483647, %v1409
    %vm1627 = vcmp.eq.f32.partialorder %v1626, 8.507059e+37
    %v1628 = vand.u32 %v1409, 2147483648
    %v1629 = vor.u32 1.1754944e-38, %v1628
    %v1630 = vsel %vm1627, %v1629, %v1625
    %v1631 = vmul.f32 1.0, %v1630
    %v1632 = vrcp.pop %v1410
    %v1633 = vmul.f32 %v1410, %v1632
    %v1634 = vsub.f32 1.0, %v1633
    %v1635 = vmul.f32 %v1632, %v1634
    %v1636 = vadd.f32 %v1632, %v1635
    %vm1637 = vweird.f32 %v1410
    %vm1638 = vweird.f32 %v1632
    %vm1639 = vmor %vm1637, %vm1638
    %v1640 = vsel %vm1639, %v1632, %v1636
    %v1641 = vand.u32 2147483647, %v1410
    %vm1642 = vcmp.eq.f32.partialorder %v1641, 8.507059e+37
    %v1643 = vand.u32 %v1410, 2147483648
    %v1644 = vor.u32 1.1754944e-38, %v1643
    %v1645 = vsel %vm1642, %v1644, %v1640
    %v1646 = vmul.f32 1.0, %v1645
    %v1647 = vrcp.pop %v1411
    %v1648 = vmul.f32 %v1411, %v1647
    %v1649 = vsub.f32 1.0, %v1648
    %v1650 = vmul.f32 %v1647, %v1649
    %v1651 = vadd.f32 %v1647, %v1650
    %vm1652 = vweird.f32 %v1411
    %vm1653 = vweird.f32 %v1647
    %vm1654 = vmor %vm1652, %vm1653
    %v1655 = vsel %vm1654, %v1647, %v1651
    %v1656 = vand.u32 2147483647, %v1411
    %vm1657 = vcmp.eq.f32.partialorder %v1656, 8.507059e+37
    %v1658 = vand.u32 %v1411, 2147483648
    %v1659 = vor.u32 1.1754944e-38, %v1658
    %v1660 = vsel %vm1657, %v1659, %v1655
    %v1661 = vmul.f32 1.0, %v1660
    %v1662 = vrcp.pop %v1412
    %v1663 = vmul.f32 %v1412, %v1662
    %v1664 = vsub.f32 1.0, %v1663
    %v1665 = vmul.f32 %v1662, %v1664
    %v1666 = vadd.f32 %v1662, %v1665
    %vm1667 = vweird.f32 %v1412
    %vm1668 = vweird.f32 %v1662
    %vm1669 = vmor %vm1667, %vm1668
    %v1670 = vsel %vm1669, %v1662, %v1666
    %v1671 = vand.u32 2147483647, %v1412
    %vm1672 = vcmp.eq.f32.partialorder %v1671, 8.507059e+37
    %v1673 = vand.u32 %v1412, 2147483648
    %v1674 = vor.u32 1.1754944e-38, %v1673
    %v1675 = vsel %vm1672, %v1674, %v1670
    %v1676 = vmul.f32 1.0, %v1675
    %v1677 = vrcp.pop %v1413
    %v1678 = vmul.f32 %v1413, %v1677
    %v1679 = vsub.f32 1.0, %v1678
    %v1680 = vmul.f32 %v1677, %v1679
    %v1681 = vadd.f32 %v1677, %v1680
    %vm1682 = vweird.f32 %v1413
    %vm1683 = vweird.f32 %v1677
    %vm1684 = vmor %vm1682, %vm1683
    %v1685 = vsel %vm1684, %v1677, %v1681
    %v1686 = vand.u32 2147483647, %v1413
    %vm1687 = vcmp.eq.f32.partialorder %v1686, 8.507059e+37
    %v1688 = vand.u32 %v1413, 2147483648
    %v1689 = vor.u32 1.1754944e-38, %v1688
    %v1690 = vsel %vm1687, %v1689, %v1685
    %v1691 = vmul.f32 1.0, %v1690
    %v1692 = vrcp.pop %v1414
    %v1693 = vmul.f32 %v1414, %v1692
    %v1694 = vsub.f32 1.0, %v1693
    %v1695 = vmul.f32 %v1692, %v1694
    %v1696 = vadd.f32 %v1692, %v1695
    %vm1697 = vweird.f32 %v1414
    %vm1698 = vweird.f32 %v1692
    %vm1699 = vmor %vm1697, %vm1698
    %v1700 = vsel %vm1699, %v1692, %v1696
    %v1701 = vand.u32 2147483647, %v1414
    %vm1702 = vcmp.eq.f32.partialorder %v1701, 8.507059e+37
    %v1703 = vand.u32 %v1414, 2147483648
    %v1704 = vor.u32 1.1754944e-38, %v1703
    %v1705 = vsel %vm1702, %v1704, %v1700
    %v1706 = vmul.f32 1.0, %v1705
    %v1707 = vrcp.pop %v1415
    %v1708 = vmul.f32 %v1415, %v1707
    %v1709 = vsub.f32 1.0, %v1708
    %v1710 = vmul.f32 %v1707, %v1709
    %v1711 = vadd.f32 %v1707, %v1710
    %vm1712 = vweird.f32 %v1415
    %vm1713 = vweird.f32 %v1707
    %vm1714 = vmor %vm1712, %vm1713
    %v1715 = vsel %vm1714, %v1707, %v1711
    %v1716 = vand.u32 2147483647, %v1415
    %vm1717 = vcmp.eq.f32.partialorder %v1716, 8.507059e+37
    %v1718 = vand.u32 %v1415, 2147483648
    %v1719 = vor.u32 1.1754944e-38, %v1718
    %v1720 = vsel %vm1717, %v1719, %v1715
    %v1721 = vmul.f32 1.0, %v1720
    %v1722 = vrcp.pop %v1416
    %v1723 = vmul.f32 %v1416, %v1722
    %v1724 = vsub.f32 1.0, %v1723
    %v1725 = vmul.f32 %v1722, %v1724
    %v1726 = vadd.f32 %v1722, %v1725
    %vm1727 = vweird.f32 %v1416
    %vm1728 = vweird.f32 %v1722
    %vm1729 = vmor %vm1727, %vm1728
    %v1730 = vsel %vm1729, %v1722, %v1726
    %v1731 = vand.u32 2147483647, %v1416
    %vm1732 = vcmp.eq.f32.partialorder %v1731, 8.507059e+37
    %v1733 = vand.u32 %v1416, 2147483648
    %v1734 = vor.u32 1.1754944e-38, %v1733
    %v1735 = vsel %vm1732, %v1734, %v1730
    %v1736 = vmul.f32 1.0, %v1735
    %v1737 = vrcp.pop %v1417
    %v1738 = vmul.f32 %v1417, %v1737
    %v1739 = vsub.f32 1.0, %v1738
    %v1740 = vmul.f32 %v1737, %v1739
    %v1741 = vadd.f32 %v1737, %v1740
    %vm1742 = vweird.f32 %v1417
    %vm1743 = vweird.f32 %v1737
    %vm1744 = vmor %vm1742, %vm1743
    %v1745 = vsel %vm1744, %v1737, %v1741
    %v1746 = vand.u32 2147483647, %v1417
    %vm1747 = vcmp.eq.f32.partialorder %v1746, 8.507059e+37
    %v1748 = vand.u32 %v1417, 2147483648
    %v1749 = vor.u32 1.1754944e-38, %v1748
    %v1750 = vsel %vm1747, %v1749, %v1745
    %v1751 = vmul.f32 1.0, %v1750
    %v1752 = vrcp.pop %v1418
    %v1753 = vmul.f32 %v1418, %v1752
    %v1754 = vsub.f32 1.0, %v1753
    %v1755 = vmul.f32 %v1752, %v1754
    %v1756 = vadd.f32 %v1752, %v1755
    %vm1757 = vweird.f32 %v1418
    %vm1758 = vweird.f32 %v1752
    %vm1759 = vmor %vm1757, %vm1758
    %v1760 = vsel %vm1759, %v1752, %v1756
    %v1761 = vand.u32 2147483647, %v1418
    %vm1762 = vcmp.eq.f32.partialorder %v1761, 8.507059e+37
    %v1763 = vand.u32 %v1418, 2147483648
    %v1764 = vor.u32 1.1754944e-38, %v1763
    %v1765 = vsel %vm1762, %v1764, %v1760
    %v1766 = vmul.f32 1.0, %v1765
    %v1767 = vrcp.pop %v1419
    %v1768 = vmul.f32 %v1419, %v1767
    %v1769 = vsub.f32 1.0, %v1768
    %v1770 = vmul.f32 %v1767, %v1769
    %v1771 = vadd.f32 %v1767, %v1770
    %vm1772 = vweird.f32 %v1419
    %vm1773 = vweird.f32 %v1767
    %vm1774 = vmor %vm1772, %vm1773
    %v1775 = vsel %vm1774, %v1767, %v1771
    %v1776 = vand.u32 2147483647, %v1419
    %vm1777 = vcmp.eq.f32.partialorder %v1776, 8.507059e+37
    %v1778 = vand.u32 %v1419, 2147483648
    %v1779 = vor.u32 1.1754944e-38, %v1778
    %v1780 = vsel %vm1777, %v1779, %v1775
    %v1781 = vmul.f32 1.0, %v1780
    %v1782 = vrcp.pop %v1420
    %v1783 = vmul.f32 %v1420, %v1782
    %v1784 = vsub.f32 1.0, %v1783
    %v1785 = vmul.f32 %v1782, %v1784
    %v1786 = vadd.f32 %v1782, %v1785
    %vm1787 = vweird.f32 %v1420
    %vm1788 = vweird.f32 %v1782
    %vm1789 = vmor %vm1787, %vm1788
    %v1790 = vsel %vm1789, %v1782, %v1786
    %v1791 = vand.u32 2147483647, %v1420
    %vm1792 = vcmp.eq.f32.partialorder %v1791, 8.507059e+37
    %v1793 = vand.u32 %v1420, 2147483648
    %v1794 = vor.u32 1.1754944e-38, %v1793
    %v1795 = vsel %vm1792, %v1794, %v1790
    %v1796 = vmul.f32 1.0, %v1795
    %v1797 = vrcp.pop %v1421
    %v1798 = vmul.f32 %v1421, %v1797
    %v1799 = vsub.f32 1.0, %v1798
    %v1800 = vmul.f32 %v1797, %v1799
    %v1801 = vadd.f32 %v1797, %v1800
    %vm1802 = vweird.f32 %v1421
    %vm1803 = vweird.f32 %v1797
    %vm1804 = vmor %vm1802, %vm1803
    %v1805 = vsel %vm1804, %v1797, %v1801
    %v1806 = vand.u32 2147483647, %v1421
    %vm1807 = vcmp.eq.f32.partialorder %v1806, 8.507059e+37
    %v1808 = vand.u32 %v1421, 2147483648
    %v1809 = vor.u32 1.1754944e-38, %v1808
    %v1810 = vsel %vm1807, %v1809, %v1805
    %v1811 = vmul.f32 1.0, %v1810
    %v1812 = vsel %vm1317, %v1436, %v1238
    %v1813 = vsel %vm1317, %v1451, %v1241
    %v1814 = vsel %vm1317, %v1466, %v1244
    %v1815 = vsel %vm1317, %v1481, %v1247
    %v1816 = vsel %vm1317, %v1496, %v1250
    %v1817 = vsel %vm1317, %v1511, %v1253
    %v1818 = vsel %vm1317, %v1526, %v1256
    %v1819 = vsel %vm1317, %v1541, %v1259
    %v1820 = vsel %vm1317, %v1556, %v1262
    %v1821 = vsel %vm1317, %v1571, %v1265
    %v1822 = vsel %vm1317, %v1586, %v1268
    %v1823 = vsel %vm1317, %v1601, %v1271
    %v1824 = vsel %vm1317, %v1616, %v1274
    %v1825 = vsel %vm1317, %v1631, %v1277
    %v1826 = vsel %vm1317, %v1646, %v1280
    %v1827 = vsel %vm1317, %v1661, %v1283
    %v1828 = vsel %vm1317, %v1676, %v1286
    %v1829 = vsel %vm1317, %v1691, %v1289
    %v1830 = vsel %vm1317, %v1706, %v1292
    %v1831 = vsel %vm1317, %v1721, %v1295
    %v1832 = vsel %vm1317, %v1736, %v1298
    %v1833 = vsel %vm1317, %v1751, %v1301
    %v1834 = vsel %vm1317, %v1766, %v1304
    %v1835 = vsel %vm1317, %v1781, %v1307
    %v1836 = vsel %vm1317, %v1796, %v1310
    %v1837 = vsel %vm1317, %v1811, %v1313
    %vm1838 = vcmask 48128
    %1839 = vst.msk [vmem:[#allocation2] sm:$0xff] %vm1838, %v1812
    %1840 = vst.msk [vmem:[#allocation2 + $0x8] sm:$0xff] %vm1838, %v1813
    %1841 = vst.msk [vmem:[#allocation2 + $0x10] sm:$0xff] %vm1838, %v1814
    %1842 = vst.msk [vmem:[#allocation2 + $0x18] sm:$0xff] %vm1838, %v1815
    %1843 = vst.msk [vmem:[#allocation2 + $0x20] sm:$0xff] %vm1838, %v1816
    %1844 = vst.msk [vmem:[#allocation2 + $0x28] sm:$0xff] %vm1838, %v1817
    %1845 = vst.msk [vmem:[#allocation2 + $0x30] sm:$0xff] %vm1838, %v1818
    %1846 = vst.msk [vmem:[#allocation2 + $0x38] sm:$0xff] %vm1838, %v1819
    %1847 = vst.msk [vmem:[#allocation2 + $0x40] sm:$0xff] %vm1838, %v1820
    %1848 = vst.msk [vmem:[#allocation2 + $0x48] sm:$0xff] %vm1838, %v1821
    %1849 = vst.msk [vmem:[#allocation2 + $0x50] sm:$0xff] %vm1838, %v1822
    %1850 = vst.msk [vmem:[#allocation2 + $0x58] sm:$0xff] %vm1838, %v1823
    %1851 = vst.msk [vmem:[#allocation2 + $0x60] sm:$0xff] %vm1838, %v1824
    %1852 = vst.msk [vmem:[#allocation2 + $0x68] sm:$0xff] %vm1838, %v1825
    %1853 = vst.msk [vmem:[#allocation2 + $0x70] sm:$0xff] %vm1838, %v1826
    %1854 = vst.msk [vmem:[#allocation2 + $0x78] sm:$0xff] %vm1838, %v1827
    %1855 = vst.msk [vmem:[#allocation2 + $0x80] sm:$0xff] %vm1838, %v1828
    %1856 = vst.msk [vmem:[#allocation2 + $0x88] sm:$0xff] %vm1838, %v1829
    %1857 = vst.msk [vmem:[#allocation2 + $0x90] sm:$0xff] %vm1838, %v1830
    %1858 = vst.msk [vmem:[#allocation2 + $0x98] sm:$0xff] %vm1838, %v1831
    %1859 = vst.msk [vmem:[#allocation2 + $0xa0] sm:$0xff] %vm1838, %v1832
    %1860 = vst.msk [vmem:[#allocation2 + $0xa8] sm:$0xff] %vm1838, %v1833
    %1861 = vst.msk [vmem:[#allocation2 + $0xb0] sm:$0xff] %vm1838, %v1834
    %1862 = vst.msk [vmem:[#allocation2 + $0xb8] sm:$0xff] %vm1838, %v1835
    %1863 = vst.msk [vmem:[#allocation2 + $0xc0] sm:$0xff] %vm1838, %v1836
    %1864 = vst.msk [vmem:[#allocation2 + $0xc8] sm:$0xff] %vm1838, %v1837
    // Predicated region
    $region46: #{tpu_custom_call.1} parent=1 // pred_check
      _
    $region47: #{tpu_custom_call.1} parent=1 // pred_check_branch
      %1866 = sbr.rel (0) target = $region49
    $region48: #{tpu_custom_call.1} parent=1 // pred_region
      // Predicated region
      $region50: #{tpu_custom_call.1} parent=48 // pred_check
        _
      $region51: #{tpu_custom_call.1} parent=48 // pred_check_branch
        %1868 = sbr.rel (0) target = $region53
      $region52: #{tpu_custom_call.1} parent=48 // pred_region
        // Predicated region
        $region54: #{tpu_custom_call.1} parent=52 // pred_check
          _
        $region55: #{tpu_custom_call.1} parent=52 // pred_check_branch
          %1870 = sbr.rel (0) target = $region57
        $region56: #{tpu_custom_call.1} parent=52 // pred_region
          // Predicated region
          $region69: #{tpu_custom_call.1} parent=56 // pred_check
            _
          $region70: #{tpu_custom_call.1} parent=56 // pred_check_branch
            %1934 = sbr.rel (0) target = $region72
          $region71: #{tpu_custom_call.1} parent=56 // pred_region
            loop: start=0, step=1, limit=1
            $region73: #{tpu_custom_call.1} parent=71 // loop_pre_header
              _
            $region74: #{tpu_custom_call.1} parent=71 // loop_header
              %s1936 = sphi 0, %s1940
              %p1937 = scmp.ge.s32.totalorder %s1936, 1
              %s1941 = sphi [#allocation2], [#allocation2]
              %s1942 = sphi %s11, %s11
            $region75: #{tpu_custom_call.1} parent=71 // loop_header_branch
              %1939 = sbr.rel (%p1937) target = $region79
            $region76: #{tpu_custom_call.1} parent=71 // loop_body
              %v1943 = vld [vmem:[%s1941] sm:$0xff]
              %1944 = vst [vmem:[%s1942] sm:$0xff] %v1943
              %v1945 = vld [vmem:[%s1941 + $0x8] sm:$0xff]
              %1946 = vst [vmem:[%s1942 + $0x8] sm:$0xff] %v1945
              %v1947 = vld [vmem:[%s1941 + $0x10] sm:$0xff]
              %1948 = vst [vmem:[%s1942 + $0x10] sm:$0xff] %v1947
              %v1949 = vld [vmem:[%s1941 + $0x18] sm:$0xff]
              %1950 = vst [vmem:[%s1942 + $0x18] sm:$0xff] %v1949
              %v1951 = vld [vmem:[%s1941 + $0x20] sm:$0xff]
              %1952 = vst [vmem:[%s1942 + $0x20] sm:$0xff] %v1951
              %v1953 = vld [vmem:[%s1941 + $0x28] sm:$0xff]
              %1954 = vst [vmem:[%s1942 + $0x28] sm:$0xff] %v1953
              %v1955 = vld [vmem:[%s1941 + $0x30] sm:$0xff]
              %1956 = vst [vmem:[%s1942 + $0x30] sm:$0xff] %v1955
              %v1957 = vld [vmem:[%s1941 + $0x38] sm:$0xff]
              %1958 = vst [vmem:[%s1942 + $0x38] sm:$0xff] %v1957
              %v1959 = vld [vmem:[%s1941 + $0x40] sm:$0xff]
              %1960 = vst [vmem:[%s1942 + $0x40] sm:$0xff] %v1959
              %v1961 = vld [vmem:[%s1941 + $0x48] sm:$0xff]
              %1962 = vst [vmem:[%s1942 + $0x48] sm:$0xff] %v1961
              %v1963 = vld [vmem:[%s1941 + $0x50] sm:$0xff]
              %1964 = vst [vmem:[%s1942 + $0x50] sm:$0xff] %v1963
              %v1965 = vld [vmem:[%s1941 + $0x58] sm:$0xff]
              %1966 = vst [vmem:[%s1942 + $0x58] sm:$0xff] %v1965
              %v1967 = vld [vmem:[%s1941 + $0x60] sm:$0xff]
              %1968 = vst [vmem:[%s1942 + $0x60] sm:$0xff] %v1967
              %v1969 = vld [vmem:[%s1941 + $0x68] sm:$0xff]
              %1970 = vst [vmem:[%s1942 + $0x68] sm:$0xff] %v1969
              %v1971 = vld [vmem:[%s1941 + $0x70] sm:$0xff]
              %1972 = vst [vmem:[%s1942 + $0x70] sm:$0xff] %v1971
              %v1973 = vld [vmem:[%s1941 + $0x78] sm:$0xff]
              %1974 = vst [vmem:[%s1942 + $0x78] sm:$0xff] %v1973
              %v1975 = vld [vmem:[%s1941 + $0x80] sm:$0xff]
              %1976 = vst [vmem:[%s1942 + $0x80] sm:$0xff] %v1975
              %v1977 = vld [vmem:[%s1941 + $0x88] sm:$0xff]
              %1978 = vst [vmem:[%s1942 + $0x88] sm:$0xff] %v1977
              %v1979 = vld [vmem:[%s1941 + $0x90] sm:$0xff]
              %1980 = vst [vmem:[%s1942 + $0x90] sm:$0xff] %v1979
              %v1981 = vld [vmem:[%s1941 + $0x98] sm:$0xff]
              %1982 = vst [vmem:[%s1942 + $0x98] sm:$0xff] %v1981
              %v1983 = vld [vmem:[%s1941 + $0xa0] sm:$0xff]
              %1984 = vst [vmem:[%s1942 + $0xa0] sm:$0xff] %v1983
              %v1985 = vld [vmem:[%s1941 + $0xa8] sm:$0xff]
              %1986 = vst [vmem:[%s1942 + $0xa8] sm:$0xff] %v1985
              %v1987 = vld [vmem:[%s1941 + $0xb0] sm:$0xff]
              %1988 = vst [vmem:[%s1942 + $0xb0] sm:$0xff] %v1987
              %v1989 = vld [vmem:[%s1941 + $0xb8] sm:$0xff]
              %1990 = vst [vmem:[%s1942 + $0xb8] sm:$0xff] %v1989
              %v1991 = vld [vmem:[%s1941 + $0xc0] sm:$0xff]
              %1992 = vst [vmem:[%s1942 + $0xc0] sm:$0xff] %v1991
            $region77: #{tpu_custom_call.1} parent=71 // loop_footer
              %s1940 = sadd.s32 1, %s1936
            $region78: #{tpu_custom_call.1} parent=71 // loop_footer_branch
              %1935 = sbr.rel target = $region74
            $region79: #{tpu_custom_call.1} parent=71 // loop_exit
              _
          $region72: #{tpu_custom_call.1} parent=56 // pred_fallthru
            _
          // Predicated region
          $region80: #{tpu_custom_call.1} parent=56 // pred_check
            _
          $region81: #{tpu_custom_call.1} parent=56 // pred_check_branch
            %1994 = sbr.rel target = $region83
          $region82: #{tpu_custom_call.1} parent=56 // pred_region
            _
          $region83: #{tpu_custom_call.1} parent=56 // pred_fallthru
            _
        $region57: #{tpu_custom_call.1} parent=52 // pred_fallthru
          _
        // Predicated region
        $region58: #{tpu_custom_call.1} parent=52 // pred_check
          _
        $region59: #{tpu_custom_call.1} parent=52 // pred_check_branch
          %1872 = sbr.rel target = $region61
        $region60: #{tpu_custom_call.1} parent=52 // pred_region
          %s1874 = ssub.s32 256, 1
          loop: start=0, step=1, limit=1
          $region62: #{tpu_custom_call.1} parent=60 // loop_pre_header
            _
          $region63: #{tpu_custom_call.1} parent=60 // loop_header
            %s1876 = sphi 0, %s1880
            %p1877 = scmp.ge.s32.totalorder %s1876, 1
            %s1881 = sphi [#allocation2], [#allocation2]
            %s1882 = sphi %s11, %s11
          $region64: #{tpu_custom_call.1} parent=60 // loop_header_branch
            %1879 = sbr.rel (%p1877) target = $region68
          $region65: #{tpu_custom_call.1} parent=60 // loop_body
            %v1883 = vld [vmem:[%s1881] sm:%s1874]
            %1884 = vst [vmem:[%s1882] sm:%s1874] %v1883
            %v1885 = vld [vmem:[%s1881 + $0x8] sm:%s1874]
            %1886 = vst [vmem:[%s1882 + $0x8] sm:%s1874] %v1885
            %v1887 = vld [vmem:[%s1881 + $0x10] sm:%s1874]
            %1888 = vst [vmem:[%s1882 + $0x10] sm:%s1874] %v1887
            %v1889 = vld [vmem:[%s1881 + $0x18] sm:%s1874]
            %1890 = vst [vmem:[%s1882 + $0x18] sm:%s1874] %v1889
            %v1891 = vld [vmem:[%s1881 + $0x20] sm:%s1874]
            %1892 = vst [vmem:[%s1882 + $0x20] sm:%s1874] %v1891
            %v1893 = vld [vmem:[%s1881 + $0x28] sm:%s1874]
            %1894 = vst [vmem:[%s1882 + $0x28] sm:%s1874] %v1893
            %v1895 = vld [vmem:[%s1881 + $0x30] sm:%s1874]
            %1896 = vst [vmem:[%s1882 + $0x30] sm:%s1874] %v1895
            %v1897 = vld [vmem:[%s1881 + $0x38] sm:%s1874]
            %1898 = vst [vmem:[%s1882 + $0x38] sm:%s1874] %v1897
            %v1899 = vld [vmem:[%s1881 + $0x40] sm:%s1874]
            %1900 = vst [vmem:[%s1882 + $0x40] sm:%s1874] %v1899
            %v1901 = vld [vmem:[%s1881 + $0x48] sm:%s1874]
            %1902 = vst [vmem:[%s1882 + $0x48] sm:%s1874] %v1901
            %v1903 = vld [vmem:[%s1881 + $0x50] sm:%s1874]
            %1904 = vst [vmem:[%s1882 + $0x50] sm:%s1874] %v1903
            %v1905 = vld [vmem:[%s1881 + $0x58] sm:%s1874]
            %1906 = vst [vmem:[%s1882 + $0x58] sm:%s1874] %v1905
            %v1907 = vld [vmem:[%s1881 + $0x60] sm:%s1874]
            %1908 = vst [vmem:[%s1882 + $0x60] sm:%s1874] %v1907
            %v1909 = vld [vmem:[%s1881 + $0x68] sm:%s1874]
            %1910 = vst [vmem:[%s1882 + $0x68] sm:%s1874] %v1909
            %v1911 = vld [vmem:[%s1881 + $0x70] sm:%s1874]
            %1912 = vst [vmem:[%s1882 + $0x70] sm:%s1874] %v1911
            %v1913 = vld [vmem:[%s1881 + $0x78] sm:%s1874]
            %1914 = vst [vmem:[%s1882 + $0x78] sm:%s1874] %v1913
            %v1915 = vld [vmem:[%s1881 + $0x80] sm:%s1874]
            %1916 = vst [vmem:[%s1882 + $0x80] sm:%s1874] %v1915
            %v1917 = vld [vmem:[%s1881 + $0x88] sm:%s1874]
            %1918 = vst [vmem:[%s1882 + $0x88] sm:%s1874] %v1917
            %v1919 = vld [vmem:[%s1881 + $0x90] sm:%s1874]
            %1920 = vst [vmem:[%s1882 + $0x90] sm:%s1874] %v1919
            %v1921 = vld [vmem:[%s1881 + $0x98] sm:%s1874]
            %1922 = vst [vmem:[%s1882 + $0x98] sm:%s1874] %v1921
            %v1923 = vld [vmem:[%s1881 + $0xa0] sm:%s1874]
            %1924 = vst [vmem:[%s1882 + $0xa0] sm:%s1874] %v1923
            %v1925 = vld [vmem:[%s1881 + $0xa8] sm:%s1874]
            %1926 = vst [vmem:[%s1882 + $0xa8] sm:%s1874] %v1925
            %v1927 = vld [vmem:[%s1881 + $0xb0] sm:%s1874]
            %1928 = vst [vmem:[%s1882 + $0xb0] sm:%s1874] %v1927
            %v1929 = vld [vmem:[%s1881 + $0xb8] sm:%s1874]
            %1930 = vst [vmem:[%s1882 + $0xb8] sm:%s1874] %v1929
            %v1931 = vld [vmem:[%s1881 + $0xc0] sm:%s1874]
            %1932 = vst [vmem:[%s1882 + $0xc0] sm:%s1874] %v1931
          $region66: #{tpu_custom_call.1} parent=60 // loop_footer
            %s1880 = sadd.s32 1, %s1876
          $region67: #{tpu_custom_call.1} parent=60 // loop_footer_branch
            %1875 = sbr.rel target = $region63
          $region68: #{tpu_custom_call.1} parent=60 // loop_exit
            _
        $region61: #{tpu_custom_call.1} parent=52 // pred_fallthru
          _
      $region53: #{tpu_custom_call.1} parent=48 // pred_fallthru
        _
      %1995 = vnop
    $region49: #{tpu_custom_call.1} parent=1 // pred_fallthru
      _
    // Predicated region
    $region84: #{tpu_custom_call.1} parent=1 // pred_check
      _
    $region85: #{tpu_custom_call.1} parent=1 // pred_check_branch
      %1997 = sbr.rel (0) target = $region87
    $region86: #{tpu_custom_call.1} parent=1 // pred_region
      _
    $region87: #{tpu_custom_call.1} parent=1 // pred_fallthru
      _

</llo_original>
